<compile_context>
chip_gen: v5e
topology: v5e:2x2
jax: 0.10.0
libtpu: 0.0.40
codegen_flags: <defaults>
</compile_context>

<pallas_src>
import functools
import math

import jax
import jax.numpy as jnp
from jax.experimental import pallas as pl
from jax.experimental.pallas import tpu as pltpu

EPS = 1e-5  # PyTorch nn.LayerNorm default eps


def _layernorm(v, g_ref, b_ref):
    mu = jnp.mean(v, axis=-1, keepdims=True)
    var = jnp.mean((v - mu) ** 2, axis=-1, keepdims=True)
    return (v - mu) * jax.lax.rsqrt(var + EPS) * g_ref[...] + b_ref[...]


def block_kernel(xq_ref, xkv_ref,
                 ln1_g_ref, ln1_b_ref,
                 wq_ref, bq_ref, wkv_ref, bkv_ref, wo_ref, bo_ref,
                 ln2_g_ref, ln2_b_ref,
                 w1_ref, b1_ref, w2_ref, b2_ref,
                 o_ref,
                 q_sc, m_sc, l_sc, acc_sc,
                 *, e_chunk):
    H = xq_ref.shape[-1]
    ki = pl.program_id(2)
    n_kv = pl.num_programs(2)

    # -------- first KV step for this query tile: Q projection + init --------
    @pl.when(ki == 0)
    def _init():
        xq = xq_ref[...].astype(jnp.float32)                         # (TQ, H)
        hq = _layernorm(xq, ln1_g_ref, ln1_b_ref).astype(jnp.bfloat16)
        q = jnp.dot(hq, wq_ref[...],
                    preferred_element_type=jnp.float32) + bq_ref[...]
        q_sc[...] = (q * (1.0 / math.sqrt(H))).astype(jnp.bfloat16)
        m_sc[...] = jnp.full_like(m_sc, -jnp.inf)
        l_sc[...] = jnp.zeros_like(l_sc)
        acc_sc[...] = jnp.zeros_like(acc_sc)

    # -------- K/V for the current KV tile (packed (H, 2H) projection) --------
    xkv = xkv_ref[...].astype(jnp.float32)                           # (TK, H)
    hkv = _layernorm(xkv, ln1_g_ref, ln1_b_ref).astype(jnp.bfloat16)
    kv = jnp.dot(hkv, wkv_ref[...],
                 preferred_element_type=jnp.float32) + bkv_ref[...]  # (TK, 2H)
    k = kv[:, :H].astype(jnp.bfloat16)
    v = kv[:, H:].astype(jnp.bfloat16)

    # -------- online-softmax attention update --------
    # Contract last dims directly (no k.T transpose).
    s = jax.lax.dot_general(q_sc[...], k, (((1,), (1,)), ((), ())),
                            preferred_element_type=jnp.float32)      # (TQ, TK)
    m_prev = m_sc[...]
    m_new = jnp.maximum(m_prev, jnp.max(s, axis=-1, keepdims=True))
    alpha = jnp.exp(m_prev - m_new)
    p = jnp.exp(s - m_new)
    l_sc[...] = alpha * l_sc[...] + jnp.sum(p, axis=-1, keepdims=True)
    acc_sc[...] = alpha * acc_sc[...] + jnp.dot(
        p.astype(jnp.bfloat16), v, preferred_element_type=jnp.float32)
    m_sc[...] = m_new

    # -------- last KV step: finalize attention, residual, LN2, MLP --------
    @pl.when(ki == n_kv - 1)
    def _finalize():
        att = acc_sc[...] * pl.reciprocal(l_sc[...], approx=True)    # (TQ, H)
        att = jnp.dot(att.astype(jnp.bfloat16), wo_ref[...],
                      preferred_element_type=jnp.float32) + bo_ref[...]
        x1 = xq_ref[...].astype(jnp.float32) + att                   # residual 1

        h2 = _layernorm(x1, ln2_g_ref, ln2_b_ref).astype(jnp.bfloat16)

        # MLP with E-dimension chunking (bounded (TQ, e_chunk) activation).
        E = w1_ref.shape[1]
        mlp = jnp.zeros_like(x1)                                     # (TQ, H) f32
        for e0 in range(0, E, e_chunk):
            w1c = w1_ref[:, e0:e0 + e_chunk]
            b1c = b1_ref[:, e0:e0 + e_chunk]
            z = jnp.dot(h2, w1c, preferred_element_type=jnp.float32) + b1c
            z = jnp.maximum(z, 0.0).astype(jnp.bfloat16)
            mlp = mlp + jnp.dot(z, w2_ref[e0:e0 + e_chunk, :],
                                preferred_element_type=jnp.float32)
        mlp = mlp + b2_ref[...]

        o_ref[...] = (x1 + mlp).astype(o_ref.dtype)                  # residual 2


def block_forward(x, params, *, tq=128, tk=128, e_chunk=256):
    """Fused Transformer block forward. x: (B, S, H) float32."""
    B, S, H = x.shape
    E = params["w1"].shape[1]
    assert H % 128 == 0, "hidden dim must be lane-aligned (multiple of 128)"
    assert S % tq == 0 and S % tk == 0
    assert E % e_chunk == 0

    bf = jnp.bfloat16
    wq = params["wq"].astype(bf)
    wkv = jnp.concatenate([params["wk"], params["wv"]], axis=1).astype(bf)
    bkv = jnp.concatenate([params["bk"], params["bv"]], axis=1)
    wo = params["wo"].astype(bf)
    w1 = params["w1"].astype(bf)
    w2 = params["w2"].astype(bf)

    grid = (B, S // tq, S // tk)

    def fixed(shape):
        # Constant-index weight/bias block: whole array, single-buffered.
        nd = len(shape)
        return pl.BlockSpec(shape, lambda b, qi, ki, _nd=nd: (0,) * _nd,
                            pipeline_mode=pl.Buffered(1))

    in_specs = [
        pl.BlockSpec((pl.Squeezed(), tq, H), lambda b, qi, ki: (b, qi, 0)),  # x (q tile)
        pl.BlockSpec((pl.Squeezed(), tk, H), lambda b, qi, ki: (b, ki, 0)),  # x (kv tile)
        fixed((1, H)), fixed((1, H)),              # ln1 gamma / beta
        fixed((H, H)), fixed((1, H)),              # Wq, bq
        fixed((H, 2 * H)), fixed((1, 2 * H)),      # packed Wkv, bkv
        fixed((H, H)), fixed((1, H)),              # Wo, bo
        fixed((1, H)), fixed((1, H)),              # ln2 gamma / beta
        fixed((H, E)), fixed((1, E)),              # W1, b1
        fixed((E, H)), fixed((1, H)),              # W2, b2
    ]
    out_spec = pl.BlockSpec((pl.Squeezed(), tq, H), lambda b, qi, ki: (b, qi, 0))

    # Advisory cost estimate for the XLA scheduler.
    flops = 2 * B * S * (4 * H * H + 2 * H * E + 2 * S * H)
    transcendentals = B * S * S + B * S
    weight_bytes = 2 * (H * H + H * 2 * H + H * H + 2 * H * E)  # bf16 weights
    bias_bytes = 4 * (6 * H + 2 * H + E)
    bytes_accessed = 2 * B * S * H * 4 + weight_bytes + bias_bytes

    kernel = functools.partial(block_kernel, e_chunk=e_chunk)

    return pl.pallas_call(
        kernel,
        out_shape=jax.ShapeDtypeStruct((B, S, H), x.dtype),
        grid_spec=pltpu.PrefetchScalarGridSpec(
            num_scalar_prefetch=0,
            grid=grid,
            in_specs=in_specs,
            out_specs=out_spec,
            scratch_shapes=[
                pltpu.VMEM((tq, H), jnp.bfloat16),   # q (pre-scaled)
                pltpu.VMEM((tq, 1), jnp.float32),    # running max m
                pltpu.VMEM((tq, 1), jnp.float32),    # running denom l
                pltpu.VMEM((tq, H), jnp.float32),    # attention accumulator
            ],
        ),
        compiler_params=pltpu.CompilerParams(
            dimension_semantics=("parallel", "parallel", "arbitrary"),
            vmem_limit_bytes=48 * 1024 * 1024,       # explicit, v7x-safe budget
        ),
        cost_estimate=pl.CostEstimate(
            flops=flops,
            transcendentals=transcendentals,
            bytes_accessed=bytes_accessed,
        ),
    )(x, x,
      params["ln1_g"], params["ln1_b"],
      wq, params["bq"], wkv, bkv, wo, params["bo"],
      params["ln2_g"], params["ln2_b"],
      w1, params["b1"], w2, params["b2"])


def reference_forward(x, p):
    """Pure-JAX reference replicating the PyTorch forward (eval mode), with the
    same bf16-operand / f32-accumulation matmul precision as the kernel."""
    bf = jnp.bfloat16

    def ln(v, g, b):
        mu = jnp.mean(v, axis=-1, keepdims=True)
        var = jnp.mean((v - mu) ** 2, axis=-1, keepdims=True)
        return (v - mu) * jax.lax.rsqrt(var + EPS) * g + b

    H = x.shape[-1]
    h = ln(x, p["ln1_g"], p["ln1_b"]).astype(bf)
    q = jnp.dot(h, p["wq"].astype(bf), preferred_element_type=jnp.float32) + p["bq"]
    q = (q * (1.0 / math.sqrt(H))).astype(bf)
    k = (jnp.dot(h, p["wk"].astype(bf), preferred_element_type=jnp.float32)
         + p["bk"]).astype(bf)
    v = (jnp.dot(h, p["wv"].astype(bf), preferred_element_type=jnp.float32)
         + p["bv"]).astype(bf)
    s = jnp.einsum("bqd,bkd->bqk", q, k, preferred_element_type=jnp.float32)
    a = jax.nn.softmax(s, axis=-1)
    att = jnp.einsum("bqk,bkd->bqd", a.astype(bf), v,
                     preferred_element_type=jnp.float32)
    att = jnp.dot(att.astype(bf), p["wo"].astype(bf),
                  preferred_element_type=jnp.float32) + p["bo"]
    x1 = x + att
    h2 = ln(x1, p["ln2_g"], p["ln2_b"]).astype(bf)
    z = jnp.dot(h2, p["w1"].astype(bf), preferred_element_type=jnp.float32) + p["b1"]
    z = jnp.maximum(z, 0.0).astype(bf)
    z = jnp.dot(z, p["w2"].astype(bf), preferred_element_type=jnp.float32) + p["b2"]
    return x1 + z


def init_params(key, hidden_dim, expansion_factor=4):
    H = hidden_dim
    E = H * expansion_factor
    ks = jax.random.split(key, 8)
    scale = 0.05
    return {
        "ln1_g": jnp.ones((1, H), jnp.float32),
        "ln1_b": jnp.zeros((1, H), jnp.float32),
        "wq": scale * jax.random.normal(ks[0], (H, H), jnp.float32),
        "bq": jnp.zeros((1, H), jnp.float32),
        "wk": scale * jax.random.normal(ks[1], (H, H), jnp.float32),
        "bk": jnp.zeros((1, H), jnp.float32),
        "wv": scale * jax.random.normal(ks[2], (H, H), jnp.float32),
        "bv": jnp.zeros((1, H), jnp.float32),
        "wo": scale * jax.random.normal(ks[3], (H, H), jnp.float32),
        "bo": jnp.zeros((1, H), jnp.float32),
        "ln2_g": jnp.ones((1, H), jnp.float32),
        "ln2_b": jnp.zeros((1, H), jnp.float32),
        "w1": scale * jax.random.normal(ks[4], (H, E), jnp.float32),
        "b1": 0.01 * jnp.ones((1, E), jnp.float32),
        "w2": scale * jax.random.normal(ks[5], (E, H), jnp.float32),
        "b2": 0.01 * jnp.ones((1, H), jnp.float32),
    }


if __name__ == "__main__":
    B, S, H = 2, 256, 128          # lane-aligned hidden dim, tiled sequence
    key = jax.random.PRNGKey(0)
    kx, kp = jax.random.split(key)
    x = jax.random.normal(kx, (B, S, H), jnp.float32)
    params = init_params(kp, H, expansion_factor=4)

    out = block_forward(x, params, tq=128, tk=128, e_chunk=256)
    out = jax.block_until_ready(out)

    ref = reference_forward(x, params)
    assert out.shape == (B, S, H)
    assert jnp.allclose(out, ref, atol=2e-2, rtol=2e-2), "mismatch vs reference"

    print("KERNEL_OK")
</pallas_src>

<mosaic_0001>
module attributes {stable_mosaic.version = 11 : i64} {
  func.func @block_kernel(%arg0: i32, %arg1: i32, %arg2: i32, %arg3: memref<1x128x128xf32, #tpu.memory_space<vmem>>, %arg4: memref<1x128x128xf32, #tpu.memory_space<vmem>>, %arg5: memref<1x128xf32, #tpu.memory_space<vmem>>, %arg6: memref<1x128xf32, #tpu.memory_space<vmem>>, %arg7: memref<128x128xbf16, #tpu.memory_space<vmem>>, %arg8: memref<1x128xf32, #tpu.memory_space<vmem>>, %arg9: memref<128x256xbf16, #tpu.memory_space<vmem>>, %arg10: memref<1x256xf32, #tpu.memory_space<vmem>>, %arg11: memref<128x128xbf16, #tpu.memory_space<vmem>>, %arg12: memref<1x128xf32, #tpu.memory_space<vmem>>, %arg13: memref<1x128xf32, #tpu.memory_space<vmem>>, %arg14: memref<1x128xf32, #tpu.memory_space<vmem>>, %arg15: memref<128x512xbf16, #tpu.memory_space<vmem>>, %arg16: memref<1x512xf32, #tpu.memory_space<vmem>>, %arg17: memref<512x128xbf16, #tpu.memory_space<vmem>>, %arg18: memref<1x128xf32, #tpu.memory_space<vmem>>, %arg19: memref<1x128x128xf32, #tpu.memory_space<vmem>>, %arg20: memref<128x128xbf16, #tpu.memory_space<vmem>>, %arg21: memref<128x1xf32, #tpu.memory_space<vmem>>, %arg22: memref<128x1xf32, #tpu.memory_space<vmem>>, %arg23: memref<128x128xf32, #tpu.memory_space<vmem>>) attributes {dimension_semantics = [#tpu.dimension_semantics<parallel>, #tpu.dimension_semantics<parallel>, #tpu.dimension_semantics<arbitrary>], iteration_bounds = array<i64: 2, 2, 2>, scalar_prefetch = 0 : i64, scratch_operands = 4 : i64, tpu.core_type = #tpu.core_type<tc>, window_params = [{transform_indices = @transform_0, window_bounds = array<i64: 1, 128, 128>}, {transform_indices = @transform_1, window_bounds = array<i64: 1, 128, 128>}, {pipeline_mode = #tpu.pipeline_mode<synchronous>, transform_indices = @transform_2, window_bounds = array<i64: 1, 128>}, {pipeline_mode = #tpu.pipeline_mode<synchronous>, transform_indices = @transform_3, window_bounds = array<i64: 1, 128>}, {pipeline_mode = #tpu.pipeline_mode<synchronous>, transform_indices = @transform_4, window_bounds = array<i64: 128, 128>}, {pipeline_mode = #tpu.pipeline_mode<synchronous>, transform_indices = @transform_5, window_bounds = array<i64: 1, 128>}, {pipeline_mode = #tpu.pipeline_mode<synchronous>, transform_indices = @transform_6, window_bounds = array<i64: 128, 256>}, {pipeline_mode = #tpu.pipeline_mode<synchronous>, transform_indices = @transform_7, window_bounds = array<i64: 1, 256>}, {pipeline_mode = #tpu.pipeline_mode<synchronous>, transform_indices = @transform_8, window_bounds = array<i64: 128, 128>}, {pipeline_mode = #tpu.pipeline_mode<synchronous>, transform_indices = @transform_9, window_bounds = array<i64: 1, 128>}, {pipeline_mode = #tpu.pipeline_mode<synchronous>, transform_indices = @transform_10, window_bounds = array<i64: 1, 128>}, {pipeline_mode = #tpu.pipeline_mode<synchronous>, transform_indices = @transform_11, window_bounds = array<i64: 1, 128>}, {pipeline_mode = #tpu.pipeline_mode<synchronous>, transform_indices = @transform_12, window_bounds = array<i64: 128, 512>}, {pipeline_mode = #tpu.pipeline_mode<synchronous>, transform_indices = @transform_13, window_bounds = array<i64: 1, 512>}, {pipeline_mode = #tpu.pipeline_mode<synchronous>, transform_indices = @transform_14, window_bounds = array<i64: 512, 128>}, {pipeline_mode = #tpu.pipeline_mode<synchronous>, transform_indices = @transform_15, window_bounds = array<i64: 1, 128>}, {transform_indices = @transform_16, window_bounds = array<i64: 1, 128, 128>}]} {
    %c0_i32 = arith.constant 0 : i32
    %0 = arith.cmpi eq, %arg2, %c0_i32 : i32
    %1 = arith.extui %0 : i1 to i32
    %c0_i32_0 = arith.constant 0 : i32
    %2 = arith.cmpi ne, %1, %c0_i32_0 : i32
    scf.if %2 {
      %c0_35 = arith.constant 0 : index
      %c0_36 = arith.constant 0 : index
      %c0_37 = arith.constant 0 : index
      %67 = vector.load %arg3[%c0_35, %c0_36, %c0_37] : memref<1x128x128xf32, #tpu.memory_space<vmem>>, vector<1x128x128xf32>
      %68 = vector.shape_cast %67 : vector<1x128x128xf32> to vector<128x128xf32>
      %cst_38 = arith.constant dense<0.000000e+00> : vector<128xf32>
      %69 = vector.multi_reduction <add>, %68, %cst_38 [1] : vector<128x128xf32> to vector<128xf32>
      %70 = vector.shape_cast %69 : vector<128xf32> to vector<128x1xf32>
      %cst_39 = arith.constant 1.280000e+02 : f32
      %71 = vector.broadcast %cst_39 : f32 to vector<128x1xf32>
      %72 = arith.divf %70, %71 : vector<128x1xf32>
      %73 = vector.broadcast %72 : vector<128x1xf32> to vector<128x128xf32>
      %74 = arith.subf %68, %73 : vector<128x128xf32>
      %75 = arith.mulf %74, %74 : vector<128x128xf32>
      %cst_40 = arith.constant dense<0.000000e+00> : vector<128xf32>
      %76 = vector.multi_reduction <add>, %75, %cst_40 [1] : vector<128x128xf32> to vector<128xf32>
      %77 = vector.shape_cast %76 : vector<128xf32> to vector<128x1xf32>
      %cst_41 = arith.constant 1.280000e+02 : f32
      %78 = vector.broadcast %cst_41 : f32 to vector<128x1xf32>
      %79 = arith.divf %77, %78 : vector<128x1xf32>
      %80 = vector.broadcast %72 : vector<128x1xf32> to vector<128x128xf32>
      %81 = arith.subf %68, %80 : vector<128x128xf32>
      %cst_42 = arith.constant 9.99999974E-6 : f32
      %82 = vector.broadcast %cst_42 : f32 to vector<128x1xf32>
      %83 = arith.addf %79, %82 : vector<128x1xf32>
      %84 = math.rsqrt %83 : vector<128x1xf32>
      %85 = vector.broadcast %84 : vector<128x1xf32> to vector<128x128xf32>
      %86 = arith.mulf %81, %85 : vector<128x128xf32>
      %c0_43 = arith.constant 0 : index
      %c0_44 = arith.constant 0 : index
      %87 = vector.load %arg5[%c0_43, %c0_44] : memref<1x128xf32, #tpu.memory_space<vmem>>, vector<1x128xf32>
      %88 = vector.broadcast %87 : vector<1x128xf32> to vector<128x128xf32>
      %89 = arith.mulf %86, %88 : vector<128x128xf32>
      %c0_45 = arith.constant 0 : index
      %c0_46 = arith.constant 0 : index
      %90 = vector.load %arg6[%c0_45, %c0_46] : memref<1x128xf32, #tpu.memory_space<vmem>>, vector<1x128xf32>
      %91 = vector.broadcast %90 : vector<1x128xf32> to vector<128x128xf32>
      %92 = arith.addf %89, %91 : vector<128x128xf32>
      %93 = arith.truncf %92 : vector<128x128xf32> to vector<128x128xbf16>
      %c0_47 = arith.constant 0 : index
      %c0_48 = arith.constant 0 : index
      %94 = vector.load %arg7[%c0_47, %c0_48] : memref<128x128xbf16, #tpu.memory_space<vmem>>, vector<128x128xbf16>
      %cst_49 = arith.constant dense<0.000000e+00> : vector<128x128xf32>
      %95 = tpu.matmul %93, %94, %cst_49 {dimension_numbers = #tpu.dot_dimension_numbers<[1], [0], [0], [1], [0, 0, 1, 1], [], []>} : vector<128x128xbf16>, vector<128x128xbf16>, vector<128x128xf32> -> vector<128x128xf32>
      %c0_50 = arith.constant 0 : index
      %c0_51 = arith.constant 0 : index
      %96 = vector.load %arg8[%c0_50, %c0_51] : memref<1x128xf32, #tpu.memory_space<vmem>>, vector<1x128xf32>
      %97 = vector.broadcast %96 : vector<1x128xf32> to vector<128x128xf32>
      %98 = arith.addf %95, %97 : vector<128x128xf32>
      %cst_52 = arith.constant 0.0883883461 : f32
      %99 = vector.broadcast %cst_52 : f32 to vector<128x128xf32>
      %100 = arith.mulf %98, %99 : vector<128x128xf32>
      %101 = arith.truncf %100 : vector<128x128xf32> to vector<128x128xbf16>
      %c0_53 = arith.constant 0 : index
      %c0_54 = arith.constant 0 : index
      %102 = vector.load %arg20[%c0_53, %c0_54] : memref<128x128xbf16, #tpu.memory_space<vmem>>, vector<128x128xbf16>
      tpu.vector_store %arg20[%c0_53, %c0_54], %101 {strides = array<i32>} : memref<128x128xbf16, #tpu.memory_space<vmem>>, vector<128x128xbf16>,
      %cst_55 = arith.constant 0xFF800000 : f32
      %103 = vector.broadcast %cst_55 : f32 to vector<128x1xf32>
      %c0_56 = arith.constant 0 : index
      %c0_57 = arith.constant 0 : index
      %104 = vector.load %arg21[%c0_56, %c0_57] : memref<128x1xf32, #tpu.memory_space<vmem>>, vector<128x1xf32>
      tpu.vector_store %arg21[%c0_56, %c0_57], %103 {strides = array<i32>} : memref<128x1xf32, #tpu.memory_space<vmem>>, vector<128x1xf32>,
      %cst_58 = arith.constant 0.000000e+00 : f32
      %105 = vector.broadcast %cst_58 : f32 to vector<128x1xf32>
      %c0_59 = arith.constant 0 : index
      %c0_60 = arith.constant 0 : index
      %106 = vector.load %arg22[%c0_59, %c0_60] : memref<128x1xf32, #tpu.memory_space<vmem>>, vector<128x1xf32>
      tpu.vector_store %arg22[%c0_59, %c0_60], %105 {strides = array<i32>} : memref<128x1xf32, #tpu.memory_space<vmem>>, vector<128x1xf32>,
      %cst_61 = arith.constant 0.000000e+00 : f32
      %107 = vector.broadcast %cst_61 : f32 to vector<128x128xf32>
      %c0_62 = arith.constant 0 : index
      %c0_63 = arith.constant 0 : index
      %108 = vector.load %arg23[%c0_62, %c0_63] : memref<128x128xf32, #tpu.memory_space<vmem>>, vector<128x128xf32>
      tpu.vector_store %arg23[%c0_62, %c0_63], %107 {strides = array<i32>} : memref<128x128xf32, #tpu.memory_space<vmem>>, vector<128x128xf32>,
    } else {
    }
    %c0 = arith.constant 0 : index
    %c0_1 = arith.constant 0 : index
    %c0_2 = arith.constant 0 : index
    %3 = vector.load %arg4[%c0, %c0_1, %c0_2] : memref<1x128x128xf32, #tpu.memory_space<vmem>>, vector<1x128x128xf32>
    %4 = vector.shape_cast %3 : vector<1x128x128xf32> to vector<128x128xf32>
    %cst = arith.constant dense<0.000000e+00> : vector<128xf32>
    %5 = vector.multi_reduction <add>, %4, %cst [1] : vector<128x128xf32> to vector<128xf32>
    %6 = vector.shape_cast %5 : vector<128xf32> to vector<128x1xf32>
    %cst_3 = arith.constant 1.280000e+02 : f32
    %7 = vector.broadcast %cst_3 : f32 to vector<128x1xf32>
    %8 = arith.divf %6, %7 : vector<128x1xf32>
    %9 = vector.broadcast %8 : vector<128x1xf32> to vector<128x128xf32>
    %10 = arith.subf %4, %9 : vector<128x128xf32>
    %11 = arith.mulf %10, %10 : vector<128x128xf32>
    %cst_4 = arith.constant dense<0.000000e+00> : vector<128xf32>
    %12 = vector.multi_reduction <add>, %11, %cst_4 [1] : vector<128x128xf32> to vector<128xf32>
    %13 = vector.shape_cast %12 : vector<128xf32> to vector<128x1xf32>
    %cst_5 = arith.constant 1.280000e+02 : f32
    %14 = vector.broadcast %cst_5 : f32 to vector<128x1xf32>
    %15 = arith.divf %13, %14 : vector<128x1xf32>
    %16 = vector.broadcast %8 : vector<128x1xf32> to vector<128x128xf32>
    %17 = arith.subf %4, %16 : vector<128x128xf32>
    %cst_6 = arith.constant 9.99999974E-6 : f32
    %18 = vector.broadcast %cst_6 : f32 to vector<128x1xf32>
    %19 = arith.addf %15, %18 : vector<128x1xf32>
    %20 = math.rsqrt %19 : vector<128x1xf32>
    %21 = vector.broadcast %20 : vector<128x1xf32> to vector<128x128xf32>
    %22 = arith.mulf %17, %21 : vector<128x128xf32>
    %c0_7 = arith.constant 0 : index
    %c0_8 = arith.constant 0 : index
    %23 = vector.load %arg5[%c0_7, %c0_8] : memref<1x128xf32, #tpu.memory_space<vmem>>, vector<1x128xf32>
    %24 = vector.broadcast %23 : vector<1x128xf32> to vector<128x128xf32>
    %25 = arith.mulf %22, %24 : vector<128x128xf32>
    %c0_9 = arith.constant 0 : index
    %c0_10 = arith.constant 0 : index
    %26 = vector.load %arg6[%c0_9, %c0_10] : memref<1x128xf32, #tpu.memory_space<vmem>>, vector<1x128xf32>
    %27 = vector.broadcast %26 : vector<1x128xf32> to vector<128x128xf32>
    %28 = arith.addf %25, %27 : vector<128x128xf32>
    %29 = arith.truncf %28 : vector<128x128xf32> to vector<128x128xbf16>
    %c0_11 = arith.constant 0 : index
    %c0_12 = arith.constant 0 : index
    %30 = vector.load %arg9[%c0_11, %c0_12] : memref<128x256xbf16, #tpu.memory_space<vmem>>, vector<128x256xbf16>
    %cst_13 = arith.constant dense<0.000000e+00> : vector<128x256xf32>
    %31 = tpu.matmul %29, %30, %cst_13 {dimension_numbers = #tpu.dot_dimension_numbers<[1], [0], [0], [1], [0, 0, 1, 1], [], []>} : vector<128x128xbf16>, vector<128x256xbf16>, vector<128x256xf32> -> vector<128x256xf32>
    %c0_14 = arith.constant 0 : index
    %c0_15 = arith.constant 0 : index
    %32 = vector.load %arg10[%c0_14, %c0_15] : memref<1x256xf32, #tpu.memory_space<vmem>>, vector<1x256xf32>
    %33 = vector.broadcast %32 : vector<1x256xf32> to vector<128x256xf32>
    %34 = arith.addf %31, %33 : vector<128x256xf32>
    %35 = vector.extract_strided_slice %34 {offsets = [0, 0], sizes = [128, 128], strides = [1, 1]} : vector<128x256xf32> to vector<128x128xf32>
    %36 = arith.truncf %35 : vector<128x128xf32> to vector<128x128xbf16>
    %37 = vector.extract_strided_slice %34 {offsets = [0, 128], sizes = [128, 128], strides = [1, 1]} : vector<128x256xf32> to vector<128x128xf32>
    %38 = arith.truncf %37 : vector<128x128xf32> to vector<128x128xbf16>
    %c0_16 = arith.constant 0 : index
    %c0_17 = arith.constant 0 : index
    %39 = vector.load %arg20[%c0_16, %c0_17] : memref<128x128xbf16, #tpu.memory_space<vmem>>, vector<128x128xbf16>
    %cst_18 = arith.constant dense<0.000000e+00> : vector<128x128xf32>
    %40 = tpu.matmul %39, %36, %cst_18 {dimension_numbers = #tpu.dot_dimension_numbers<[1], [1], [0], [0], [0, 0, 1, 0], [], []>} : vector<128x128xbf16>, vector<128x128xbf16>, vector<128x128xf32> -> vector<128x128xf32>
    %c0_19 = arith.constant 0 : index
    %c0_20 = arith.constant 0 : index
    %41 = vector.load %arg21[%c0_19, %c0_20] : memref<128x1xf32, #tpu.memory_space<vmem>>, vector<128x1xf32>
    %cst_21 = arith.constant dense<0xFF800000> : vector<128xf32>
    %42 = vector.multi_reduction <maximumf>, %40, %cst_21 [1] : vector<128x128xf32> to vector<128xf32>
    %43 = vector.shape_cast %42 : vector<128xf32> to vector<128x1xf32>
    %44 = arith.maximumf %41, %43 : vector<128x1xf32>
    %45 = arith.subf %41, %44 : vector<128x1xf32>
    %46 = math.exp %45 : vector<128x1xf32>
    %47 = vector.broadcast %44 : vector<128x1xf32> to vector<128x128xf32>
    %48 = arith.subf %40, %47 : vector<128x128xf32>
    %49 = math.exp %48 : vector<128x128xf32>
    %c0_22 = arith.constant 0 : index
    %c0_23 = arith.constant 0 : index
    %50 = vector.load %arg22[%c0_22, %c0_23] : memref<128x1xf32, #tpu.memory_space<vmem>>, vector<128x1xf32>
    %51 = arith.mulf %46, %50 : vector<128x1xf32>
    %cst_24 = arith.constant dense<0.000000e+00> : vector<128xf32>
    %52 = vector.multi_reduction <add>, %49, %cst_24 [1] : vector<128x128xf32> to vector<128xf32>
    %53 = vector.shape_cast %52 : vector<128xf32> to vector<128x1xf32>
    %54 = arith.addf %51, %53 : vector<128x1xf32>
    %c0_25 = arith.constant 0 : index
    %c0_26 = arith.constant 0 : index
    %55 = vector.load %arg22[%c0_25, %c0_26] : memref<128x1xf32, #tpu.memory_space<vmem>>, vector<128x1xf32>
    tpu.vector_store %arg22[%c0_25, %c0_26], %54 {strides = array<i32>} : memref<128x1xf32, #tpu.memory_space<vmem>>, vector<128x1xf32>,
    %c0_27 = arith.constant 0 : index
    %c0_28 = arith.constant 0 : index
    %56 = vector.load %arg23[%c0_27, %c0_28] : memref<128x128xf32, #tpu.memory_space<vmem>>, vector<128x128xf32>
    %57 = vector.broadcast %46 : vector<128x1xf32> to vector<128x128xf32>
    %58 = arith.mulf %57, %56 : vector<128x128xf32>
    %59 = arith.truncf %49 : vector<128x128xf32> to vector<128x128xbf16>
    %cst_29 = arith.constant dense<0.000000e+00> : vector<128x128xf32>
    %60 = tpu.matmul %59, %38, %cst_29 {dimension_numbers = #tpu.dot_dimension_numbers<[1], [0], [0], [1], [0, 0, 1, 1], [], []>} : vector<128x128xbf16>, vector<128x128xbf16>, vector<128x128xf32> -> vector<128x128xf32>
    %61 = arith.addf %58, %60 : vector<128x128xf32>
    %c0_30 = arith.constant 0 : index
    %c0_31 = arith.constant 0 : index
    %62 = vector.load %arg23[%c0_30, %c0_31] : memref<128x128xf32, #tpu.memory_space<vmem>>, vector<128x128xf32>
    tpu.vector_store %arg23[%c0_30, %c0_31], %61 {strides = array<i32>} : memref<128x128xf32, #tpu.memory_space<vmem>>, vector<128x128xf32>,
    %c0_32 = arith.constant 0 : index
    %c0_33 = arith.constant 0 : index
    %63 = vector.load %arg21[%c0_32, %c0_33] : memref<128x1xf32, #tpu.memory_space<vmem>>, vector<128x1xf32>
    tpu.vector_store %arg21[%c0_32, %c0_33], %44 {strides = array<i32>} : memref<128x1xf32, #tpu.memory_space<vmem>>, vector<128x1xf32>,
    %c1_i32 = arith.constant 1 : i32
    %64 = arith.cmpi eq, %arg2, %c1_i32 : i32
    %65 = arith.extui %64 : i1 to i32
    %c0_i32_34 = arith.constant 0 : i32
    %66 = arith.cmpi ne, %65, %c0_i32_34 : i32
    scf.if %66 {
      %c0_35 = arith.constant 0 : index
      %c0_36 = arith.constant 0 : index
      %67 = vector.load %arg23[%c0_35, %c0_36] : memref<128x128xf32, #tpu.memory_space<vmem>>, vector<128x128xf32>
      %c0_37 = arith.constant 0 : index
      %c0_38 = arith.constant 0 : index
      %68 = vector.load %arg22[%c0_37, %c0_38] : memref<128x1xf32, #tpu.memory_space<vmem>>, vector<128x1xf32>
      %69 = tpu.reciprocal %68 {approx = true} : vector<128x1xf32> -> vector<128x1xf32>
      %70 = vector.broadcast %69 : vector<128x1xf32> to vector<128x128xf32>
      %71 = arith.mulf %67, %70 : vector<128x128xf32>
      %72 = arith.truncf %71 : vector<128x128xf32> to vector<128x128xbf16>
      %c0_39 = arith.constant 0 : index
      %c0_40 = arith.constant 0 : index
      %73 = vector.load %arg11[%c0_39, %c0_40] : memref<128x128xbf16, #tpu.memory_space<vmem>>, vector<128x128xbf16>
      %cst_41 = arith.constant dense<0.000000e+00> : vector<128x128xf32>
      %74 = tpu.matmul %72, %73, %cst_41 {dimension_numbers = #tpu.dot_dimension_numbers<[1], [0], [0], [1], [0, 0, 1, 1], [], []>} : vector<128x128xbf16>, vector<128x128xbf16>, vector<128x128xf32> -> vector<128x128xf32>
      %c0_42 = arith.constant 0 : index
      %c0_43 = arith.constant 0 : index
      %75 = vector.load %arg12[%c0_42, %c0_43] : memref<1x128xf32, #tpu.memory_space<vmem>>, vector<1x128xf32>
      %76 = vector.broadcast %75 : vector<1x128xf32> to vector<128x128xf32>
      %77 = arith.addf %74, %76 : vector<128x128xf32>
      %c0_44 = arith.constant 0 : index
      %c0_45 = arith.constant 0 : index
      %c0_46 = arith.constant 0 : index
      %78 = vector.load %arg3[%c0_44, %c0_45, %c0_46] : memref<1x128x128xf32, #tpu.memory_space<vmem>>, vector<1x128x128xf32>
      %79 = vector.shape_cast %78 : vector<1x128x128xf32> to vector<128x128xf32>
      %80 = arith.addf %79, %77 : vector<128x128xf32>
      %cst_47 = arith.constant dense<0.000000e+00> : vector<128xf32>
      %81 = vector.multi_reduction <add>, %80, %cst_47 [1] : vector<128x128xf32> to vector<128xf32>
      %82 = vector.shape_cast %81 : vector<128xf32> to vector<128x1xf32>
      %cst_48 = arith.constant 1.280000e+02 : f32
      %83 = vector.broadcast %cst_48 : f32 to vector<128x1xf32>
      %84 = arith.divf %82, %83 : vector<128x1xf32>
      %85 = vector.broadcast %84 : vector<128x1xf32> to vector<128x128xf32>
      %86 = arith.subf %80, %85 : vector<128x128xf32>
      %87 = arith.mulf %86, %86 : vector<128x128xf32>
      %cst_49 = arith.constant dense<0.000000e+00> : vector<128xf32>
      %88 = vector.multi_reduction <add>, %87, %cst_49 [1] : vector<128x128xf32> to vector<128xf32>
      %89 = vector.shape_cast %88 : vector<128xf32> to vector<128x1xf32>
      %cst_50 = arith.constant 1.280000e+02 : f32
      %90 = vector.broadcast %cst_50 : f32 to vector<128x1xf32>
      %91 = arith.divf %89, %90 : vector<128x1xf32>
      %92 = vector.broadcast %84 : vector<128x1xf32> to vector<128x128xf32>
      %93 = arith.subf %80, %92 : vector<128x128xf32>
      %cst_51 = arith.constant 9.99999974E-6 : f32
      %94 = vector.broadcast %cst_51 : f32 to vector<128x1xf32>
      %95 = arith.addf %91, %94 : vector<128x1xf32>
      %96 = math.rsqrt %95 : vector<128x1xf32>
      %97 = vector.broadcast %96 : vector<128x1xf32> to vector<128x128xf32>
      %98 = arith.mulf %93, %97 : vector<128x128xf32>
      %c0_52 = arith.constant 0 : index
      %c0_53 = arith.constant 0 : index
      %99 = vector.load %arg13[%c0_52, %c0_53] : memref<1x128xf32, #tpu.memory_space<vmem>>, vector<1x128xf32>
      %100 = vector.broadcast %99 : vector<1x128xf32> to vector<128x128xf32>
      %101 = arith.mulf %98, %100 : vector<128x128xf32>
      %c0_54 = arith.constant 0 : index
      %c0_55 = arith.constant 0 : index
      %102 = vector.load %arg14[%c0_54, %c0_55] : memref<1x128xf32, #tpu.memory_space<vmem>>, vector<1x128xf32>
      %103 = vector.broadcast %102 : vector<1x128xf32> to vector<128x128xf32>
      %104 = arith.addf %101, %103 : vector<128x128xf32>
      %105 = arith.truncf %104 : vector<128x128xf32> to vector<128x128xbf16>
      %cst_56 = arith.constant 0.000000e+00 : f32
      %106 = vector.broadcast %cst_56 : f32 to vector<128x128xf32>
      %c0_57 = arith.constant 0 : index
      %c0_58 = arith.constant 0 : index
      %107 = vector.load %arg15[%c0_57, %c0_58] : memref<128x512xbf16, #tpu.memory_space<vmem>>, vector<128x256xbf16>
      %c0_59 = arith.constant 0 : index
      %c0_60 = arith.constant 0 : index
      %108 = vector.load %arg16[%c0_59, %c0_60] : memref<1x512xf32, #tpu.memory_space<vmem>>, vector<1x256xf32>
      %cst_61 = arith.constant dense<0.000000e+00> : vector<128x256xf32>
      %109 = tpu.matmul %105, %107, %cst_61 {dimension_numbers = #tpu.dot_dimension_numbers<[1], [0], [0], [1], [0, 0, 1, 1], [], []>} : vector<128x128xbf16>, vector<128x256xbf16>, vector<128x256xf32> -> vector<128x256xf32>
      %110 = vector.broadcast %108 : vector<1x256xf32> to vector<128x256xf32>
      %111 = arith.addf %109, %110 : vector<128x256xf32>
      %cst_62 = arith.constant 0.000000e+00 : f32
      %112 = vector.broadcast %cst_62 : f32 to vector<128x256xf32>
      %113 = arith.maximumf %111, %112 : vector<128x256xf32>
      %114 = arith.truncf %113 : vector<128x256xf32> to vector<128x256xbf16>
      %c0_63 = arith.constant 0 : index
      %c0_64 = arith.constant 0 : index
      %115 = vector.load %arg17[%c0_63, %c0_64] : memref<512x128xbf16, #tpu.memory_space<vmem>>, vector<256x128xbf16>
      %cst_65 = arith.constant dense<0.000000e+00> : vector<128x128xf32>
      %116 = tpu.matmul %114, %115, %cst_65 {dimension_numbers = #tpu.dot_dimension_numbers<[1], [0], [0], [1], [0, 0, 1, 1], [], []>} : vector<128x256xbf16>, vector<256x128xbf16>, vector<128x128xf32> -> vector<128x128xf32>
      %117 = arith.addf %106, %116 : vector<128x128xf32>
      %c0_66 = arith.constant 0 : index
      %c256 = arith.constant 256 : index
      %118 = vector.load %arg15[%c0_66, %c256] : memref<128x512xbf16, #tpu.memory_space<vmem>>, vector<128x256xbf16>
      %c0_67 = arith.constant 0 : index
      %c256_68 = arith.constant 256 : index
      %119 = vector.load %arg16[%c0_67, %c256_68] : memref<1x512xf32, #tpu.memory_space<vmem>>, vector<1x256xf32>
      %cst_69 = arith.constant dense<0.000000e+00> : vector<128x256xf32>
      %120 = tpu.matmul %105, %118, %cst_69 {dimension_numbers = #tpu.dot_dimension_numbers<[1], [0], [0], [1], [0, 0, 1, 1], [], []>} : vector<128x128xbf16>, vector<128x256xbf16>, vector<128x256xf32> -> vector<128x256xf32>
      %121 = vector.broadcast %119 : vector<1x256xf32> to vector<128x256xf32>
      %122 = arith.addf %120, %121 : vector<128x256xf32>
      %cst_70 = arith.constant 0.000000e+00 : f32
      %123 = vector.broadcast %cst_70 : f32 to vector<128x256xf32>
      %124 = arith.maximumf %122, %123 : vector<128x256xf32>
      %125 = arith.truncf %124 : vector<128x256xf32> to vector<128x256xbf16>
      %c256_71 = arith.constant 256 : index
      %c0_72 = arith.constant 0 : index
      %126 = vector.load %arg17[%c256_71, %c0_72] : memref<512x128xbf16, #tpu.memory_space<vmem>>, vector<256x128xbf16>
      %cst_73 = arith.constant dense<0.000000e+00> : vector<128x128xf32>
      %127 = tpu.matmul %125, %126, %cst_73 {dimension_numbers = #tpu.dot_dimension_numbers<[1], [0], [0], [1], [0, 0, 1, 1], [], []>} : vector<128x256xbf16>, vector<256x128xbf16>, vector<128x128xf32> -> vector<128x128xf32>
      %128 = arith.addf %117, %127 : vector<128x128xf32>
      %c0_74 = arith.constant 0 : index
      %c0_75 = arith.constant 0 : index
      %129 = vector.load %arg18[%c0_74, %c0_75] : memref<1x128xf32, #tpu.memory_space<vmem>>, vector<1x128xf32>
      %130 = vector.broadcast %129 : vector<1x128xf32> to vector<128x128xf32>
      %131 = arith.addf %128, %130 : vector<128x128xf32>
      %132 = arith.addf %80, %131 : vector<128x128xf32>
      %c0_76 = arith.constant 0 : index
      %c0_77 = arith.constant 0 : index
      %c0_78 = arith.constant 0 : index
      %133 = vector.load %arg19[%c0_76, %c0_77, %c0_78] : memref<1x128x128xf32, #tpu.memory_space<vmem>>, vector<1x128x128xf32>
      %134 = vector.shape_cast %133 : vector<1x128x128xf32> to vector<128x128xf32>
      %135 = vector.shape_cast %132 : vector<128x128xf32> to vector<1x128x128xf32>
      tpu.vector_store %arg19[%c0_76, %c0_77, %c0_78], %135 {strides = array<i32>} : memref<1x128x128xf32, #tpu.memory_space<vmem>>, vector<1x128x128xf32>,
    } else {
    }
    return
  }
  func.func @transform_0(%arg0: i32, %arg1: i32, %arg2: i32) -> (i32, i32, i32) {
    %c0_i32 = arith.constant 0 : i32
    %c0_i32_0 = arith.constant 0 : i32
    return %arg0, %arg1, %c0_i32 : i32, i32, i32
  }
  func.func @transform_1(%arg0: i32, %arg1: i32, %arg2: i32) -> (i32, i32, i32) {
    %c0_i32 = arith.constant 0 : i32
    %c0_i32_0 = arith.constant 0 : i32
    return %arg0, %arg2, %c0_i32 : i32, i32, i32
  }
  func.func @transform_2(%arg0: i32, %arg1: i32, %arg2: i32) -> (i32, i32) {
    %c0_i32 = arith.constant 0 : i32
    %c0_i32_0 = arith.constant 0 : i32
    %c0_i32_1 = arith.constant 0 : i32
    return %c0_i32, %c0_i32_0 : i32, i32
  }
  func.func @transform_3(%arg0: i32, %arg1: i32, %arg2: i32) -> (i32, i32) {
    %c0_i32 = arith.constant 0 : i32
    %c0_i32_0 = arith.constant 0 : i32
    %c0_i32_1 = arith.constant 0 : i32
    return %c0_i32, %c0_i32_0 : i32, i32
  }
  func.func @transform_4(%arg0: i32, %arg1: i32, %arg2: i32) -> (i32, i32) {
    %c0_i32 = arith.constant 0 : i32
    %c0_i32_0 = arith.constant 0 : i32
    %c0_i32_1 = arith.constant 0 : i32
    return %c0_i32, %c0_i32_0 : i32, i32
  }
  func.func @transform_5(%arg0: i32, %arg1: i32, %arg2: i32) -> (i32, i32) {
    %c0_i32 = arith.constant 0 : i32
    %c0_i32_0 = arith.constant 0 : i32
    %c0_i32_1 = arith.constant 0 : i32
    return %c0_i32, %c0_i32_0 : i32, i32
  }
  func.func @transform_6(%arg0: i32, %arg1: i32, %arg2: i32) -> (i32, i32) {
    %c0_i32 = arith.constant 0 : i32
    %c0_i32_0 = arith.constant 0 : i32
    %c0_i32_1 = arith.constant 0 : i32
    return %c0_i32, %c0_i32_0 : i32, i32
  }
  func.func @transform_7(%arg0: i32, %arg1: i32, %arg2: i32) -> (i32, i32) {
    %c0_i32 = arith.constant 0 : i32
    %c0_i32_0 = arith.constant 0 : i32
    %c0_i32_1 = arith.constant 0 : i32
    return %c0_i32, %c0_i32_0 : i32, i32
  }
  func.func @transform_8(%arg0: i32, %arg1: i32, %arg2: i32) -> (i32, i32) {
    %c0_i32 = arith.constant 0 : i32
    %c0_i32_0 = arith.constant 0 : i32
    %c0_i32_1 = arith.constant 0 : i32
    return %c0_i32, %c0_i32_0 : i32, i32
  }
  func.func @transform_9(%arg0: i32, %arg1: i32, %arg2: i32) -> (i32, i32) {
    %c0_i32 = arith.constant 0 : i32
    %c0_i32_0 = arith.constant 0 : i32
    %c0_i32_1 = arith.constant 0 : i32
    return %c0_i32, %c0_i32_0 : i32, i32
  }
  func.func @transform_10(%arg0: i32, %arg1: i32, %arg2: i32) -> (i32, i32) {
    %c0_i32 = arith.constant 0 : i32
    %c0_i32_0 = arith.constant 0 : i32
    %c0_i32_1 = arith.constant 0 : i32
    return %c0_i32, %c0_i32_0 : i32, i32
  }
  func.func @transform_11(%arg0: i32, %arg1: i32, %arg2: i32) -> (i32, i32) {
    %c0_i32 = arith.constant 0 : i32
    %c0_i32_0 = arith.constant 0 : i32
    %c0_i32_1 = arith.constant 0 : i32
    return %c0_i32, %c0_i32_0 : i32, i32
  }
  func.func @transform_12(%arg0: i32, %arg1: i32, %arg2: i32) -> (i32, i32) {
    %c0_i32 = arith.constant 0 : i32
    %c0_i32_0 = arith.constant 0 : i32
    %c0_i32_1 = arith.constant 0 : i32
    return %c0_i32, %c0_i32_0 : i32, i32
  }
  func.func @transform_13(%arg0: i32, %arg1: i32, %arg2: i32) -> (i32, i32) {
    %c0_i32 = arith.constant 0 : i32
    %c0_i32_0 = arith.constant 0 : i32
    %c0_i32_1 = arith.constant 0 : i32
    return %c0_i32, %c0_i32_0 : i32, i32
  }
  func.func @transform_14(%arg0: i32, %arg1: i32, %arg2: i32) -> (i32, i32) {
    %c0_i32 = arith.constant 0 : i32
    %c0_i32_0 = arith.constant 0 : i32
    %c0_i32_1 = arith.constant 0 : i32
    return %c0_i32, %c0_i32_0 : i32, i32
  }
  func.func @transform_15(%arg0: i32, %arg1: i32, %arg2: i32) -> (i32, i32) {
    %c0_i32 = arith.constant 0 : i32
    %c0_i32_0 = arith.constant 0 : i32
    %c0_i32_1 = arith.constant 0 : i32
    return %c0_i32, %c0_i32_0 : i32, i32
  }
  func.func @transform_16(%arg0: i32, %arg1: i32, %arg2: i32) -> (i32, i32, i32) {
    %c0_i32 = arith.constant 0 : i32
    %c0_i32_0 = arith.constant 0 : i32
    return %arg0, %arg1, %c0_i32 : i32, i32, i32
  }
}

</mosaic_0001>

<llo_original>
// kernel: tpu_custom_call.1
$region0: #{tpu_custom_call.1}
  #allocation0 [shape = 'u32[]', space=smem, size = 0x4, offset = 0x4, fixed_abs, tag = 'smem constant byte address 0x4 - core index']
  #allocation1 [shape = 'u32[72,128]{1,0:T(1,128)}', space=vmem, size = 0x9000, scoped, tag = 'internal scratch']
  #allocation2 [shape = 'bf16[128,128]{1,0:T(8,128)(2,1)}', space=vmem, size = 0x8000, scoped, tag = 'scratch operand']
  #allocation3 [shape = 'f32[128,1]{1,0:T(8,128)}', space=vmem, size = 0x10000, scoped, tag = 'scratch operand']
  #allocation4 [shape = 'f32[128,1]{1,0:T(8,128)}', space=vmem, size = 0x10000, scoped, tag = 'scratch operand']
  #allocation5 [shape = 'f32[128,128]{1,0:T(8,128)}', space=vmem, size = 0x10000, scoped, tag = 'scratch operand']
  %s0 = inlined_call_operand.hbm [shape: f32[2,256,128], index: 0, kind: input, shape index: {}]
  %s1 = inlined_call_operand.hbm [shape: f32[2,256,128], index: 1, kind: input, shape index: {}]
  %s2 = inlined_call_operand.vmem [shape: f32[1,128], index: 2, kind: input, shape index: {}]
  %s3 = inlined_call_operand.hbm [shape: f32[1,128], index: 3, kind: input, shape index: {}]
  %s4 = inlined_call_operand.hbm [shape: bf16[128,128], index: 4, kind: input, shape index: {}]
  %s5 = inlined_call_operand.hbm [shape: f32[1,128], index: 5, kind: input, shape index: {}]
  %s6 = inlined_call_operand.hbm [shape: bf16[128,256], index: 6, kind: input, shape index: {}]
  %s7 = inlined_call_operand.vmem [shape: f32[1,256], index: 7, kind: input, shape index: {}]
  %s8 = inlined_call_operand.hbm [shape: bf16[128,128], index: 8, kind: input, shape index: {}]
  %s9 = inlined_call_operand.vmem [shape: f32[1,128], index: 9, kind: input, shape index: {}]
  %s10 = inlined_call_operand.vmem [shape: f32[1,128], index: 10, kind: input, shape index: {}]
  %s11 = inlined_call_operand.vmem [shape: f32[1,128], index: 11, kind: input, shape index: {}]
  %s12 = inlined_call_operand.hbm [shape: bf16[128,512], index: 12, kind: input, shape index: {}]
  %s13 = inlined_call_operand.vmem [shape: f32[1,512], index: 13, kind: input, shape index: {}]
  %s14 = inlined_call_operand.hbm [shape: bf16[512,128], index: 14, kind: input, shape index: {}]
  %s15 = inlined_call_operand.vmem [shape: f32[1,128], index: 15, kind: input, shape index: {}]
  %s16 = inlined_call_operand.hbm [shape: f32[2,256,128], index: 16, kind: output, shape index: {}]
  %s17 = sld [smem:[#allocation0]]
  $region141: #{tpu_custom_call.1} parent=0
    _
  %s19 = ssub.s32 1, %s17
  %s20 = scalar_select 0, %s19, %s17
  $region1: #{tpu_custom_call.1} parent=0
    #allocation6 [shape = 'u8[131072]{0}', space=vmem, size = 0x20000, scoped, tag = 'input window, operand 0']
    #allocation7 [shape = 's32[2]{0}', space=sflag, size = 0x8, scoped, tag = 'scoped memory for tpu_custom_call.1']
    #allocation8 [shape = 's32[2]{0}', space=sflag, size = 0x8, scoped, tag = 'scoped memory for tpu_custom_call.1']
    #allocation9 [shape = 'u8[131072]{0}', space=vmem, size = 0x20000, scoped, tag = 'input window, operand 1']
    #allocation10 [shape = 's32[2]{0}', space=sflag, size = 0x8, scoped, tag = 'scoped memory for tpu_custom_call.1']
    #allocation11 [shape = 'u8[512]{0}', space=vmem, size = 0x400, scoped, tag = 'input window, operand 3, single buffered']
    #allocation12 [shape = 'u8[32768]{0}', space=vmem, size = 0x8000, scoped, tag = 'input window, operand 4, single buffered']
    #allocation13 [shape = 's32[1]{0}', space=sflag, size = 0x4, scoped, tag = 'scoped memory for tpu_custom_call.1']
    #allocation14 [shape = 'u8[512]{0}', space=vmem, size = 0x400, scoped, tag = 'input window, operand 5, single buffered']
    #allocation15 [shape = 'u8[65536]{0}', space=vmem, size = 0x10000, scoped, tag = 'input window, operand 6, single buffered']
    #allocation16 [shape = 's32[1]{0}', space=sflag, size = 0x4, scoped, tag = 'scoped memory for tpu_custom_call.1']
    #allocation17 [shape = 'u8[32768]{0}', space=vmem, size = 0x8000, scoped, tag = 'input window, operand 8, single buffered']
    #allocation18 [shape = 'u8[131072]{0}', space=vmem, size = 0x20000, scoped, tag = 'input window, operand 12, single buffered']
    #allocation19 [shape = 's32[1]{0}', space=sflag, size = 0x4, scoped, tag = 'scoped memory for tpu_custom_call.1']
    #allocation20 [shape = 'u8[131072]{0}', space=vmem, size = 0x20000, scoped, tag = 'input window, operand 14, single buffered']
    #allocation21 [shape = 'u8[131072]{0}', space=vmem, size = 0x20000, scoped, tag = 'output window, operand 0']
    %21 = vsyncpa [#allocation7], 0
    %s22 = scalar_lea.sflag [#allocation7], 1
    %23 = vsyncpa %s22, 0
    %24 = vsyncpa [#allocation10], 0
    %s25 = scalar_lea.sflag [#allocation10], 1
    %26 = vsyncpa %s25, 0
    %27 = vsyncpa [#allocation13], 0
    %28 = vsyncpa [#allocation16], 0
    %29 = vsyncpa [#allocation19], 0
    %30 = vsyncpa [#allocation8], 0
    %s31 = scalar_lea.sflag [#allocation8], 1
    %32 = vsyncpa %s31, 0
    loop: start=0, step=1, limit=10
    $region2: #{tpu_custom_call.1} parent=1 // loop_pre_header
      _
    $region3: #{tpu_custom_call.1} parent=1 // loop_header
      %s34 = sphi 0, %s38
      %p35 = scmp.ge.s32.totalorder %s34, 10
      %s41 = sphi 0, %s60
      %s42 = sphi 0, %s56
      %s43 = sphi 0, %s52
      %s44 = sphi 0, %s41
      %s45 = sphi 0, %s42
      %s46 = sphi 0, %s43
      %s47 = sphi 0, %s44
      %s48 = sphi 0, %s45
      %s49 = sphi 0, %s46
      %s65 = sphi 0, %s67
      %s68 = sphi 0, %s65
      %s69 = sphi 0, %s68
      %s85 = sphi 0, %s69
      %s93 = sphi 0, %s95
      %s96 = sphi 0, %s93
      %s97 = sphi 0, %s96
      %s113 = sphi 0, %s97
      %s117 = sphi 0, %s117
      %s119 = sphi 0, %s117
      %s120 = sphi 0, %s119
      %s134 = sphi 0, %s120
      %s138 = sphi 0, %s138
      %s140 = sphi 0, %s138
      %s141 = sphi 0, %s140
      %s155 = sphi 0, %s141
      %s159 = sphi 0, %s159
      %s161 = sphi 0, %s159
      %s162 = sphi 0, %s161
      %s176 = sphi 0, %s162
      %s180 = sphi 0, %s180
      %s182 = sphi 0, %s180
      %s183 = sphi 0, %s182
      %s197 = sphi 0, %s183
      %s201 = sphi 0, %s201
      %s203 = sphi 0, %s201
      %s204 = sphi 0, %s203
      %s218 = sphi 0, %s204
      %s222 = sphi 0, %s222
      %s224 = sphi 0, %s222
      %s225 = sphi 0, %s224
      %s239 = sphi 0, %s225
      %s243 = sphi 0, %s243
      %s245 = sphi 0, %s243
      %s246 = sphi 0, %s245
      %s260 = sphi 0, %s246
      %s264 = sphi 0, %s264
      %s266 = sphi 0, %s264
      %s267 = sphi 0, %s266
      %s281 = sphi 0, %s267
      %s285 = sphi 0, %s285
      %s287 = sphi 0, %s285
      %s288 = sphi 0, %s287
      %s302 = sphi 0, %s288
      %s306 = sphi 0, %s306
      %s308 = sphi 0, %s306
      %s309 = sphi 0, %s308
      %s323 = sphi 0, %s309
      %s327 = sphi 0, %s327
      %s329 = sphi 0, %s327
      %s330 = sphi 0, %s329
      %s344 = sphi 0, %s330
      %s348 = sphi 0, %s348
      %s350 = sphi 0, %s348
      %s351 = sphi 0, %s350
      %s365 = sphi 0, %s351
      %s369 = sphi 0, %s369
      %s371 = sphi 0, %s369
      %s372 = sphi 0, %s371
      %s386 = sphi 0, %s372
      %s390 = sphi 0, %s390
      %s392 = sphi 0, %s390
      %s393 = sphi 0, %s392
      %s407 = sphi 0, %s393
      %s415 = sphi 0, %s417
      %s418 = sphi 0, %s415
      %s419 = sphi 0, %s418
      %s435 = sphi 0, %s419
    $region4: #{tpu_custom_call.1} parent=1 // loop_header_branch
      %37 = sbr.rel (%p35) target = $region8
    $region5: #{tpu_custom_call.1} parent=1 // loop_body
      %s39 = ssub.s32 %s34, 1
      %s40 = ssub.s32 %s34, 2
      %s50 = sadd.s32 1, %s43
      %p51 = scmp.ge.s32.totalorder %s50, 2
      %s52 = scalar_select %p51, 0, %s50
      %s53 = sadd.s32 1, %s42
      %s54 = scalar_select %p51, %s53, %s42
      %p55 = scmp.ge.s32.totalorder %s54, 2
      %s56 = scalar_select %p55, 0, %s54
      %s57 = sadd.s32 1, %s41
      %s58 = scalar_select %p55, %s57, %s41
      %p59 = scmp.ge.s32.totalorder %s58, 2
      %s60 = scalar_select %p59, 0, %s58
      %s61 = ssub.s32 %s41, %s60
      %s62 = ssub.s32 %s42, %s56
      %s63 = sor.u32 %s61, %s62
      %p64 = scmp.eq.s32.totalorder %s63, 0
      %s66 = sadd.s32 %s65, 1
      %s67 = scalar_select %p64, %s65, %s66
      %p70 = pneg %p64
      %p71 = scmp.eq.s32.totalorder %s34, 7
      %p72 = por %p70, %p71
      %p73 = scmp.ne.s32.totalorder %s65, %s68
      %p74 = scmp.eq.s32.totalorder %s34, 0
      %p75 = por %p73, %p74
      %p76 = scmp.ne.s32.totalorder %s65, %s68
      %p77 = scmp.eq.s32.totalorder %s39, 7
      %p78 = por %p76, %p77
      %p79 = scmp.ne.s32.totalorder %s68, %s69
      %p80 = scmp.eq.s32.totalorder %s39, 0
      %p81 = por %p79, %p80
      %p82 = scmp.ne.s32.totalorder %s68, %s69
      %p83 = scmp.eq.s32.totalorder %s40, 7
      %p84 = por %p82, %p83
      %p86 = scmp.ne.s32.totalorder %s69, %s85
      %p87 = scmp.eq.s32.totalorder %s40, 0
      %p88 = por %p86, %p87
      %s89 = ssub.s32 %s41, %s60
      %s90 = ssub.s32 %s43, %s52
      %s91 = sor.u32 %s89, %s90
      %p92 = scmp.eq.s32.totalorder %s91, 0
      %s94 = sadd.s32 %s93, 1
      %s95 = scalar_select %p92, %s93, %s94
      %p98 = pneg %p92
      %p99 = scmp.eq.s32.totalorder %s34, 7
      %p100 = por %p98, %p99
      %p101 = scmp.ne.s32.totalorder %s93, %s96
      %p102 = scmp.eq.s32.totalorder %s34, 0
      %p103 = por %p101, %p102
      %p104 = scmp.ne.s32.totalorder %s93, %s96
      %p105 = scmp.eq.s32.totalorder %s39, 7
      %p106 = por %p104, %p105
      %p107 = scmp.ne.s32.totalorder %s96, %s97
      %p108 = scmp.eq.s32.totalorder %s39, 0
      %p109 = por %p107, %p108
      %p110 = scmp.ne.s32.totalorder %s96, %s97
      %p111 = scmp.eq.s32.totalorder %s40, 7
      %p112 = por %p110, %p111
      %p114 = scmp.ne.s32.totalorder %s97, %s113
      %p115 = scmp.eq.s32.totalorder %s40, 0
      %p116 = por %p114, %p115
      %s118 = sadd.s32 %s117, 1
      %p121 = scmp.eq.s32.totalorder %s34, 7
      %p122 = scmp.ne.s32.totalorder %s117, %s119
      %p123 = scmp.eq.s32.totalorder %s34, 0
      %p124 = por %p122, %p123
      %p125 = scmp.ne.s32.totalorder %s117, %s119
      %p126 = scmp.eq.s32.totalorder %s39, 7
      %p127 = por %p125, %p126
      %p128 = scmp.ne.s32.totalorder %s119, %s120
      %p129 = scmp.eq.s32.totalorder %s39, 0
      %p130 = por %p128, %p129
      %p131 = scmp.ne.s32.totalorder %s119, %s120
      %p132 = scmp.eq.s32.totalorder %s40, 7
      %p133 = por %p131, %p132
      %p135 = scmp.ne.s32.totalorder %s120, %s134
      %p136 = scmp.eq.s32.totalorder %s40, 0
      %p137 = por %p135, %p136
      %s139 = sadd.s32 %s138, 1
      %p142 = scmp.eq.s32.totalorder %s34, 7
      %p143 = scmp.ne.s32.totalorder %s138, %s140
      %p144 = scmp.eq.s32.totalorder %s34, 0
      %p145 = por %p143, %p144
      %p146 = scmp.ne.s32.totalorder %s138, %s140
      %p147 = scmp.eq.s32.totalorder %s39, 7
      %p148 = por %p146, %p147
      %p149 = scmp.ne.s32.totalorder %s140, %s141
      %p150 = scmp.eq.s32.totalorder %s39, 0
      %p151 = por %p149, %p150
      %p152 = scmp.ne.s32.totalorder %s140, %s141
      %p153 = scmp.eq.s32.totalorder %s40, 7
      %p154 = por %p152, %p153
      %p156 = scmp.ne.s32.totalorder %s141, %s155
      %p157 = scmp.eq.s32.totalorder %s40, 0
      %p158 = por %p156, %p157
      %s160 = sadd.s32 %s159, 1
      %p163 = scmp.eq.s32.totalorder %s34, 7
      %p164 = scmp.ne.s32.totalorder %s159, %s161
      %p165 = scmp.eq.s32.totalorder %s34, 0
      %p166 = por %p164, %p165
      %p167 = scmp.ne.s32.totalorder %s159, %s161
      %p168 = scmp.eq.s32.totalorder %s39, 7
      %p169 = por %p167, %p168
      %p170 = scmp.ne.s32.totalorder %s161, %s162
      %p171 = scmp.eq.s32.totalorder %s39, 0
      %p172 = por %p170, %p171
      %p173 = scmp.ne.s32.totalorder %s161, %s162
      %p174 = scmp.eq.s32.totalorder %s40, 7
      %p175 = por %p173, %p174
      %p177 = scmp.ne.s32.totalorder %s162, %s176
      %p178 = scmp.eq.s32.totalorder %s40, 0
      %p179 = por %p177, %p178
      %s181 = sadd.s32 %s180, 1
      %p184 = scmp.eq.s32.totalorder %s34, 7
      %p185 = scmp.ne.s32.totalorder %s180, %s182
      %p186 = scmp.eq.s32.totalorder %s34, 0
      %p187 = por %p185, %p186
      %p188 = scmp.ne.s32.totalorder %s180, %s182
      %p189 = scmp.eq.s32.totalorder %s39, 7
      %p190 = por %p188, %p189
      %p191 = scmp.ne.s32.totalorder %s182, %s183
      %p192 = scmp.eq.s32.totalorder %s39, 0
      %p193 = por %p191, %p192
      %p194 = scmp.ne.s32.totalorder %s182, %s183
      %p195 = scmp.eq.s32.totalorder %s40, 7
      %p196 = por %p194, %p195
      %p198 = scmp.ne.s32.totalorder %s183, %s197
      %p199 = scmp.eq.s32.totalorder %s40, 0
      %p200 = por %p198, %p199
      %s202 = sadd.s32 %s201, 1
      %p205 = scmp.eq.s32.totalorder %s34, 7
      %p206 = scmp.ne.s32.totalorder %s201, %s203
      %p207 = scmp.eq.s32.totalorder %s34, 0
      %p208 = por %p206, %p207
      %p209 = scmp.ne.s32.totalorder %s201, %s203
      %p210 = scmp.eq.s32.totalorder %s39, 7
      %p211 = por %p209, %p210
      %p212 = scmp.ne.s32.totalorder %s203, %s204
      %p213 = scmp.eq.s32.totalorder %s39, 0
      %p214 = por %p212, %p213
      %p215 = scmp.ne.s32.totalorder %s203, %s204
      %p216 = scmp.eq.s32.totalorder %s40, 7
      %p217 = por %p215, %p216
      %p219 = scmp.ne.s32.totalorder %s204, %s218
      %p220 = scmp.eq.s32.totalorder %s40, 0
      %p221 = por %p219, %p220
      %s223 = sadd.s32 %s222, 1
      %p226 = scmp.eq.s32.totalorder %s34, 7
      %p227 = scmp.ne.s32.totalorder %s222, %s224
      %p228 = scmp.eq.s32.totalorder %s34, 0
      %p229 = por %p227, %p228
      %p230 = scmp.ne.s32.totalorder %s222, %s224
      %p231 = scmp.eq.s32.totalorder %s39, 7
      %p232 = por %p230, %p231
      %p233 = scmp.ne.s32.totalorder %s224, %s225
      %p234 = scmp.eq.s32.totalorder %s39, 0
      %p235 = por %p233, %p234
      %p236 = scmp.ne.s32.totalorder %s224, %s225
      %p237 = scmp.eq.s32.totalorder %s40, 7
      %p238 = por %p236, %p237
      %p240 = scmp.ne.s32.totalorder %s225, %s239
      %p241 = scmp.eq.s32.totalorder %s40, 0
      %p242 = por %p240, %p241
      %s244 = sadd.s32 %s243, 1
      %p247 = scmp.eq.s32.totalorder %s34, 7
      %p248 = scmp.ne.s32.totalorder %s243, %s245
      %p249 = scmp.eq.s32.totalorder %s34, 0
      %p250 = por %p248, %p249
      %p251 = scmp.ne.s32.totalorder %s243, %s245
      %p252 = scmp.eq.s32.totalorder %s39, 7
      %p253 = por %p251, %p252
      %p254 = scmp.ne.s32.totalorder %s245, %s246
      %p255 = scmp.eq.s32.totalorder %s39, 0
      %p256 = por %p254, %p255
      %p257 = scmp.ne.s32.totalorder %s245, %s246
      %p258 = scmp.eq.s32.totalorder %s40, 7
      %p259 = por %p257, %p258
      %p261 = scmp.ne.s32.totalorder %s246, %s260
      %p262 = scmp.eq.s32.totalorder %s40, 0
      %p263 = por %p261, %p262
      %s265 = sadd.s32 %s264, 1
      %p268 = scmp.eq.s32.totalorder %s34, 7
      %p269 = scmp.ne.s32.totalorder %s264, %s266
      %p270 = scmp.eq.s32.totalorder %s34, 0
      %p271 = por %p269, %p270
      %p272 = scmp.ne.s32.totalorder %s264, %s266
      %p273 = scmp.eq.s32.totalorder %s39, 7
      %p274 = por %p272, %p273
      %p275 = scmp.ne.s32.totalorder %s266, %s267
      %p276 = scmp.eq.s32.totalorder %s39, 0
      %p277 = por %p275, %p276
      %p278 = scmp.ne.s32.totalorder %s266, %s267
      %p279 = scmp.eq.s32.totalorder %s40, 7
      %p280 = por %p278, %p279
      %p282 = scmp.ne.s32.totalorder %s267, %s281
      %p283 = scmp.eq.s32.totalorder %s40, 0
      %p284 = por %p282, %p283
      %s286 = sadd.s32 %s285, 1
      %p289 = scmp.eq.s32.totalorder %s34, 7
      %p290 = scmp.ne.s32.totalorder %s285, %s287
      %p291 = scmp.eq.s32.totalorder %s34, 0
      %p292 = por %p290, %p291
      %p293 = scmp.ne.s32.totalorder %s285, %s287
      %p294 = scmp.eq.s32.totalorder %s39, 7
      %p295 = por %p293, %p294
      %p296 = scmp.ne.s32.totalorder %s287, %s288
      %p297 = scmp.eq.s32.totalorder %s39, 0
      %p298 = por %p296, %p297
      %p299 = scmp.ne.s32.totalorder %s287, %s288
      %p300 = scmp.eq.s32.totalorder %s40, 7
      %p301 = por %p299, %p300
      %p303 = scmp.ne.s32.totalorder %s288, %s302
      %p304 = scmp.eq.s32.totalorder %s40, 0
      %p305 = por %p303, %p304
      %s307 = sadd.s32 %s306, 1
      %p310 = scmp.eq.s32.totalorder %s34, 7
      %p311 = scmp.ne.s32.totalorder %s306, %s308
      %p312 = scmp.eq.s32.totalorder %s34, 0
      %p313 = por %p311, %p312
      %p314 = scmp.ne.s32.totalorder %s306, %s308
      %p315 = scmp.eq.s32.totalorder %s39, 7
      %p316 = por %p314, %p315
      %p317 = scmp.ne.s32.totalorder %s308, %s309
      %p318 = scmp.eq.s32.totalorder %s39, 0
      %p319 = por %p317, %p318
      %p320 = scmp.ne.s32.totalorder %s308, %s309
      %p321 = scmp.eq.s32.totalorder %s40, 7
      %p322 = por %p320, %p321
      %p324 = scmp.ne.s32.totalorder %s309, %s323
      %p325 = scmp.eq.s32.totalorder %s40, 0
      %p326 = por %p324, %p325
      %s328 = sadd.s32 %s327, 1
      %p331 = scmp.eq.s32.totalorder %s34, 7
      %p332 = scmp.ne.s32.totalorder %s327, %s329
      %p333 = scmp.eq.s32.totalorder %s34, 0
      %p334 = por %p332, %p333
      %p335 = scmp.ne.s32.totalorder %s327, %s329
      %p336 = scmp.eq.s32.totalorder %s39, 7
      %p337 = por %p335, %p336
      %p338 = scmp.ne.s32.totalorder %s329, %s330
      %p339 = scmp.eq.s32.totalorder %s39, 0
      %p340 = por %p338, %p339
      %p341 = scmp.ne.s32.totalorder %s329, %s330
      %p342 = scmp.eq.s32.totalorder %s40, 7
      %p343 = por %p341, %p342
      %p345 = scmp.ne.s32.totalorder %s330, %s344
      %p346 = scmp.eq.s32.totalorder %s40, 0
      %p347 = por %p345, %p346
      %s349 = sadd.s32 %s348, 1
      %p352 = scmp.eq.s32.totalorder %s34, 7
      %p353 = scmp.ne.s32.totalorder %s348, %s350
      %p354 = scmp.eq.s32.totalorder %s34, 0
      %p355 = por %p353, %p354
      %p356 = scmp.ne.s32.totalorder %s348, %s350
      %p357 = scmp.eq.s32.totalorder %s39, 7
      %p358 = por %p356, %p357
      %p359 = scmp.ne.s32.totalorder %s350, %s351
      %p360 = scmp.eq.s32.totalorder %s39, 0
      %p361 = por %p359, %p360
      %p362 = scmp.ne.s32.totalorder %s350, %s351
      %p363 = scmp.eq.s32.totalorder %s40, 7
      %p364 = por %p362, %p363
      %p366 = scmp.ne.s32.totalorder %s351, %s365
      %p367 = scmp.eq.s32.totalorder %s40, 0
      %p368 = por %p366, %p367
      %s370 = sadd.s32 %s369, 1
      %p373 = scmp.eq.s32.totalorder %s34, 7
      %p374 = scmp.ne.s32.totalorder %s369, %s371
      %p375 = scmp.eq.s32.totalorder %s34, 0
      %p376 = por %p374, %p375
      %p377 = scmp.ne.s32.totalorder %s369, %s371
      %p378 = scmp.eq.s32.totalorder %s39, 7
      %p379 = por %p377, %p378
      %p380 = scmp.ne.s32.totalorder %s371, %s372
      %p381 = scmp.eq.s32.totalorder %s39, 0
      %p382 = por %p380, %p381
      %p383 = scmp.ne.s32.totalorder %s371, %s372
      %p384 = scmp.eq.s32.totalorder %s40, 7
      %p385 = por %p383, %p384
      %p387 = scmp.ne.s32.totalorder %s372, %s386
      %p388 = scmp.eq.s32.totalorder %s40, 0
      %p389 = por %p387, %p388
      %s391 = sadd.s32 %s390, 1
      %p394 = scmp.eq.s32.totalorder %s34, 7
      %p395 = scmp.ne.s32.totalorder %s390, %s392
      %p396 = scmp.eq.s32.totalorder %s34, 0
      %p397 = por %p395, %p396
      %p398 = scmp.ne.s32.totalorder %s390, %s392
      %p399 = scmp.eq.s32.totalorder %s39, 7
      %p400 = por %p398, %p399
      %p401 = scmp.ne.s32.totalorder %s392, %s393
      %p402 = scmp.eq.s32.totalorder %s39, 0
      %p403 = por %p401, %p402
      %p404 = scmp.ne.s32.totalorder %s392, %s393
      %p405 = scmp.eq.s32.totalorder %s40, 7
      %p406 = por %p404, %p405
      %p408 = scmp.ne.s32.totalorder %s393, %s407
      %p409 = scmp.eq.s32.totalorder %s40, 0
      %p410 = por %p408, %p409
      %s411 = ssub.s32 %s41, %s60
      %s412 = ssub.s32 %s42, %s56
      %s413 = sor.u32 %s411, %s412
      %p414 = scmp.eq.s32.totalorder %s413, 0
      %s416 = sadd.s32 %s415, 1
      %s417 = scalar_select %p414, %s415, %s416
      %p420 = pneg %p414
      %p421 = scmp.eq.s32.totalorder %s34, 7
      %p422 = por %p420, %p421
      %p423 = scmp.ne.s32.totalorder %s415, %s418
      %p424 = scmp.eq.s32.totalorder %s34, 0
      %p425 = por %p423, %p424
      %p426 = scmp.ne.s32.totalorder %s415, %s418
      %p427 = scmp.eq.s32.totalorder %s39, 7
      %p428 = por %p426, %p427
      %p429 = scmp.ne.s32.totalorder %s418, %s419
      %p430 = scmp.eq.s32.totalorder %s39, 0
      %p431 = por %p429, %p430
      %p432 = scmp.ne.s32.totalorder %s418, %s419
      %p433 = scmp.eq.s32.totalorder %s40, 7
      %p434 = por %p432, %p433
      %p436 = scmp.ne.s32.totalorder %s419, %s435
      %p437 = scmp.eq.s32.totalorder %s40, 0
      %p438 = por %p436, %p437
      %p439 = scmp.le.s32.totalorder 1, %s34
      %p440 = scmp.lt.s32.totalorder %s34, 9
      %p441 = pnand %p439, %p440
      %p442 = pneg %p441
      // Predicated region
      $region9: #{tpu_custom_call.1} parent=5 // pred_check
        _
      $region10: #{tpu_custom_call.1} parent=5 // pred_check_branch
        %444 = sbr.rel (%p441) target = $region12
      $region11: #{tpu_custom_call.1} parent=5 // pred_region
        %s445 = ssub.s32 %s34, 1
        // Predicated region
        $region13: #{tpu_custom_call.1} parent=11 // pred_check
          %p446 = pneg %p130
        $region14: #{tpu_custom_call.1} parent=11 // pred_check_branch
          %448 = sbr.rel (%p446) target = $region16
        $region15: #{tpu_custom_call.1} parent=11 // pred_region
          _
        $region16: #{tpu_custom_call.1} parent=11 // pred_fallthru
          _
        // Predicated region
        $region17: #{tpu_custom_call.1} parent=11 // pred_check
          %p449 = pneg %p151
        $region18: #{tpu_custom_call.1} parent=11 // pred_check_branch
          %451 = sbr.rel (%p449) target = $region20
        $region19: #{tpu_custom_call.1} parent=11 // pred_region
          %453 = vsyncadd [#allocation10], 0
          %s455 = sshll.u32 %s3, 4
          %s456 = int_to_ptr.hbm [resolvable:$true] %s455
          %s457 = sshll.u32 [#allocation11], 4
          %s458 = int_to_ptr.vmem [resolvable:$true] %s457
          %460 = dma.hbm_to_vmem [thread:$0]  %s456, 16, %s458, [#allocation10]
        $region20: #{tpu_custom_call.1} parent=11 // pred_fallthru
          _
        // Predicated region
        $region21: #{tpu_custom_call.1} parent=11 // pred_check
          %p461 = pneg %p172
        $region22: #{tpu_custom_call.1} parent=11 // pred_check_branch
          %463 = sbr.rel (%p461) target = $region24
        $region23: #{tpu_custom_call.1} parent=11 // pred_region
          %465 = vsyncadd [#allocation13], 0
          %s466 = sshll.u32 %s4, 4
          %s467 = int_to_ptr.hbm [resolvable:$true] %s466
          %s468 = sshll.u32 [#allocation12], 4
          %s469 = int_to_ptr.vmem [resolvable:$true] %s468
          %474 = dma.hbm_to_vmem [thread:$0]  %s467, 1024, %s469, [#allocation13], 64, 64, 4
        $region24: #{tpu_custom_call.1} parent=11 // pred_fallthru
          _
        // Predicated region
        $region25: #{tpu_custom_call.1} parent=11 // pred_check
          %p475 = pneg %p193
        $region26: #{tpu_custom_call.1} parent=11 // pred_check_branch
          %477 = sbr.rel (%p475) target = $region28
        $region27: #{tpu_custom_call.1} parent=11 // pred_region
          %479 = vsyncadd [#allocation13], 0
          %s481 = sshll.u32 %s5, 4
          %s482 = int_to_ptr.hbm [resolvable:$true] %s481
          %s483 = sshll.u32 [#allocation14], 4
          %s484 = int_to_ptr.vmem [resolvable:$true] %s483
          %486 = dma.hbm_to_vmem [thread:$0]  %s482, 16, %s484, [#allocation13]
        $region28: #{tpu_custom_call.1} parent=11 // pred_fallthru
          _
        // Predicated region
        $region29: #{tpu_custom_call.1} parent=11 // pred_check
          %p487 = pneg %p214
        $region30: #{tpu_custom_call.1} parent=11 // pred_check_branch
          %489 = sbr.rel (%p487) target = $region32
        $region31: #{tpu_custom_call.1} parent=11 // pred_region
          %491 = vsyncadd [#allocation16], 0
          %s492 = sshll.u32 %s6, 4
          %s493 = int_to_ptr.hbm [resolvable:$true] %s492
          %s494 = sshll.u32 [#allocation15], 4
          %s495 = int_to_ptr.vmem [resolvable:$true] %s494
          %500 = dma.hbm_to_vmem [thread:$0]  %s493, 2048, %s495, [#allocation16], 128, 128, 8
        $region32: #{tpu_custom_call.1} parent=11 // pred_fallthru
          _
        // Predicated region
        $region33: #{tpu_custom_call.1} parent=11 // pred_check
          %p501 = pneg %p235
        $region34: #{tpu_custom_call.1} parent=11 // pred_check_branch
          %503 = sbr.rel (%p501) target = $region36
        $region35: #{tpu_custom_call.1} parent=11 // pred_region
          _
        $region36: #{tpu_custom_call.1} parent=11 // pred_fallthru
          _
        // Predicated region
        $region37: #{tpu_custom_call.1} parent=11 // pred_check
          %p504 = pneg %p256
        $region38: #{tpu_custom_call.1} parent=11 // pred_check_branch
          %506 = sbr.rel (%p504) target = $region40
        $region39: #{tpu_custom_call.1} parent=11 // pred_region
          %508 = vsyncadd [#allocation16], 0
          %s509 = sshll.u32 %s8, 4
          %s510 = int_to_ptr.hbm [resolvable:$true] %s509
          %s511 = sshll.u32 [#allocation17], 4
          %s512 = int_to_ptr.vmem [resolvable:$true] %s511
          %517 = dma.hbm_to_vmem [thread:$0]  %s510, 1024, %s512, [#allocation16], 64, 64, 4
        $region40: #{tpu_custom_call.1} parent=11 // pred_fallthru
          _
        // Predicated region
        $region41: #{tpu_custom_call.1} parent=11 // pred_check
          %p518 = pneg %p277
        $region42: #{tpu_custom_call.1} parent=11 // pred_check_branch
          %520 = sbr.rel (%p518) target = $region44
        $region43: #{tpu_custom_call.1} parent=11 // pred_region
          _
        $region44: #{tpu_custom_call.1} parent=11 // pred_fallthru
          _
        // Predicated region
        $region45: #{tpu_custom_call.1} parent=11 // pred_check
          %p521 = pneg %p298
        $region46: #{tpu_custom_call.1} parent=11 // pred_check_branch
          %523 = sbr.rel (%p521) target = $region48
        $region47: #{tpu_custom_call.1} parent=11 // pred_region
          _
        $region48: #{tpu_custom_call.1} parent=11 // pred_fallthru
          _
        // Predicated region
        $region49: #{tpu_custom_call.1} parent=11 // pred_check
          %p524 = pneg %p319
        $region50: #{tpu_custom_call.1} parent=11 // pred_check_branch
          %526 = sbr.rel (%p524) target = $region52
        $region51: #{tpu_custom_call.1} parent=11 // pred_region
          _
        $region52: #{tpu_custom_call.1} parent=11 // pred_fallthru
          _
        // Predicated region
        $region53: #{tpu_custom_call.1} parent=11 // pred_check
          %p527 = pneg %p340
        $region54: #{tpu_custom_call.1} parent=11 // pred_check_branch
          %529 = sbr.rel (%p527) target = $region56
        $region55: #{tpu_custom_call.1} parent=11 // pred_region
          %531 = vsyncadd [#allocation19], 0
          %s532 = sshll.u32 %s12, 4
          %s533 = int_to_ptr.hbm [resolvable:$true] %s532
          %s534 = sshll.u32 [#allocation18], 4
          %s535 = int_to_ptr.vmem [resolvable:$true] %s534
          %540 = dma.hbm_to_vmem [thread:$0]  %s533, 4096, %s535, [#allocation19], 256, 256, 16
        $region56: #{tpu_custom_call.1} parent=11 // pred_fallthru
          _
        // Predicated region
        $region57: #{tpu_custom_call.1} parent=11 // pred_check
          %p541 = pneg %p361
        $region58: #{tpu_custom_call.1} parent=11 // pred_check_branch
          %543 = sbr.rel (%p541) target = $region60
        $region59: #{tpu_custom_call.1} parent=11 // pred_region
          _
        $region60: #{tpu_custom_call.1} parent=11 // pred_fallthru
          _
        // Predicated region
        $region61: #{tpu_custom_call.1} parent=11 // pred_check
          %p544 = pneg %p382
        $region62: #{tpu_custom_call.1} parent=11 // pred_check_branch
          %546 = sbr.rel (%p544) target = $region64
        $region63: #{tpu_custom_call.1} parent=11 // pred_region
          %548 = vsyncadd [#allocation19], 0
          %s549 = sshll.u32 %s14, 4
          %s550 = int_to_ptr.hbm [resolvable:$true] %s549
          %s551 = sshll.u32 [#allocation20], 4
          %s552 = int_to_ptr.vmem [resolvable:$true] %s551
          %557 = dma.hbm_to_vmem [thread:$0]  %s550, 4096, %s552, [#allocation19], 64, 64, 4
        $region64: #{tpu_custom_call.1} parent=11 // pred_fallthru
          _
        // Predicated region
        $region65: #{tpu_custom_call.1} parent=11 // pred_check
          %p558 = pneg %p403
        $region66: #{tpu_custom_call.1} parent=11 // pred_check_branch
          %560 = sbr.rel (%p558) target = $region68
        $region67: #{tpu_custom_call.1} parent=11 // pred_region
          _
        $region68: #{tpu_custom_call.1} parent=11 // pred_fallthru
          _
      $region12: #{tpu_custom_call.1} parent=5 // pred_fallthru
        _
      %p561 = scmp.lt.s32.totalorder %s34, 8
      // Predicated region
      $region69: #{tpu_custom_call.1} parent=5 // pred_check
        %p562 = pneg %p561
      $region70: #{tpu_custom_call.1} parent=5 // pred_check_branch
        %564 = sbr.rel (%p562) target = $region72
      $region71: #{tpu_custom_call.1} parent=5 // pred_region
        // Predicated region
        $region73: #{tpu_custom_call.1} parent=71 // pred_check
          %p565 = pneg %p75
        $region74: #{tpu_custom_call.1} parent=71 // pred_check_branch
          %567 = sbr.rel (%p565) target = $region76
        $region75: #{tpu_custom_call.1} parent=71 // pred_region
          %s568 = sand.u32 %s65, 1
          %s569 = scalar_lea.sflag [#allocation7], %s568
          %s570 = sand.u32 %s65, 1
          %s571 = smul.addr %s570, 128
          %s572 = scalar_lea.vmem [#allocation6], %s571
          %s573 = smul.u32 16, %s42
          %575 = vsyncadd %s569, 0
          %s576 = smul.addr %s41, 32
          %s577 = sadd.s32 %s573, %s576
          %s578 = smul.addr %s577, 8
          %s579 = scalar_lea.hbm %s0, %s578
          %s580 = sshll.u32 %s579, 4
          %s581 = int_to_ptr.hbm [resolvable:$true] %s580
          %s582 = sshll.u32 %s572, 4
          %s583 = int_to_ptr.vmem [resolvable:$true] %s582
          %588 = dma.hbm_to_vmem [thread:$0]  %s581, 2048, %s583, %s569, 128, 128, 8
        $region76: #{tpu_custom_call.1} parent=71 // pred_fallthru
          _
        // Predicated region
        $region77: #{tpu_custom_call.1} parent=71 // pred_check
          %p589 = pneg %p103
        $region78: #{tpu_custom_call.1} parent=71 // pred_check_branch
          %591 = sbr.rel (%p589) target = $region80
        $region79: #{tpu_custom_call.1} parent=71 // pred_region
          %s592 = sand.u32 %s34, 1
          %s593 = scalar_lea.sflag [#allocation10], %s592
          %s594 = sand.u32 %s93, 1
          %s595 = smul.addr %s594, 128
          %s596 = scalar_lea.vmem [#allocation9], %s595
          %s597 = smul.u32 16, %s43
          %599 = vsyncadd %s593, 0
          %s600 = smul.addr %s41, 32
          %s601 = sadd.s32 %s597, %s600
          %s602 = smul.addr %s601, 8
          %s603 = scalar_lea.hbm %s1, %s602
          %s604 = sshll.u32 %s603, 4
          %s605 = int_to_ptr.hbm [resolvable:$true] %s604
          %s606 = sshll.u32 %s596, 4
          %s607 = int_to_ptr.vmem [resolvable:$true] %s606
          %612 = dma.hbm_to_vmem [thread:$0]  %s605, 2048, %s607, %s593, 128, 128, 8
        $region80: #{tpu_custom_call.1} parent=71 // pred_fallthru
          _
      $region72: #{tpu_custom_call.1} parent=5 // pred_fallthru
        _
      %p613 = scmp.le.s32.totalorder 1, %s34
      %p614 = scmp.lt.s32.totalorder %s34, 9
      %p615 = pnand %p613, %p614
      %p616 = pneg %p615
      // Predicated region
      $region81: #{tpu_custom_call.1} parent=5 // pred_check
        _
      $region82: #{tpu_custom_call.1} parent=5 // pred_check_branch
        %618 = sbr.rel (%p615) target = $region84
      $region83: #{tpu_custom_call.1} parent=5 // pred_region
        %s619 = ssub.s32 %s34, 1
        %s620 = sand.u32 %s68, 1
        %s621 = scalar_lea.sflag [#allocation7], %s620
        %s622 = sand.u32 %s68, 1
        %s623 = smul.addr %s622, 128
        %s624 = scalar_lea.vmem [#allocation6], %s623
        // Predicated region
        $region85: #{tpu_custom_call.1} parent=83 // pred_check
          %p625 = pneg %p81
        $region86: #{tpu_custom_call.1} parent=83 // pred_check_branch
          %627 = sbr.rel (%p625) target = $region88
        $region87: #{tpu_custom_call.1} parent=83 // pred_region
          %629 = dma.done %s621, 2048
        $region88: #{tpu_custom_call.1} parent=83 // pred_fallthru
          _
        %s630 = sand.u32 %s39, 1
        %s631 = scalar_lea.sflag [#allocation10], %s630
        %s632 = sand.u32 %s96, 1
        %s633 = smul.addr %s632, 128
        %s634 = scalar_lea.vmem [#allocation9], %s633
        // Predicated region
        $region89: #{tpu_custom_call.1} parent=83 // pred_check
          %p635 = pneg %p109
        $region90: #{tpu_custom_call.1} parent=83 // pred_check_branch
          %637 = sbr.rel (%p635) target = $region92
        $region91: #{tpu_custom_call.1} parent=83 // pred_region
          %639 = dma.done %s631, 2048
        $region92: #{tpu_custom_call.1} parent=83 // pred_fallthru
          _
        // Predicated region
        $region93: #{tpu_custom_call.1} parent=83 // pred_check
          %p640 = pneg %p151
        $region94: #{tpu_custom_call.1} parent=83 // pred_check_branch
          %642 = sbr.rel (%p640) target = $region96
        $region95: #{tpu_custom_call.1} parent=83 // pred_region
          %644 = dma.done [#allocation10], 16
        $region96: #{tpu_custom_call.1} parent=83 // pred_fallthru
          _
        // Predicated region
        $region97: #{tpu_custom_call.1} parent=83 // pred_check
          %p645 = pneg %p172
        $region98: #{tpu_custom_call.1} parent=83 // pred_check_branch
          %647 = sbr.rel (%p645) target = $region100
        $region99: #{tpu_custom_call.1} parent=83 // pred_region
          %649 = dma.done [#allocation13], 1024
        $region100: #{tpu_custom_call.1} parent=83 // pred_fallthru
          _
        // Predicated region
        $region101: #{tpu_custom_call.1} parent=83 // pred_check
          %p650 = pneg %p193
        $region102: #{tpu_custom_call.1} parent=83 // pred_check_branch
          %652 = sbr.rel (%p650) target = $region104
        $region103: #{tpu_custom_call.1} parent=83 // pred_region
          %654 = dma.done [#allocation13], 16
        $region104: #{tpu_custom_call.1} parent=83 // pred_fallthru
          _
        // Predicated region
        $region105: #{tpu_custom_call.1} parent=83 // pred_check
          %p655 = pneg %p214
        $region106: #{tpu_custom_call.1} parent=83 // pred_check_branch
          %657 = sbr.rel (%p655) target = $region108
        $region107: #{tpu_custom_call.1} parent=83 // pred_region
          %659 = dma.done [#allocation16], 2048
        $region108: #{tpu_custom_call.1} parent=83 // pred_fallthru
          _
        // Predicated region
        $region109: #{tpu_custom_call.1} parent=83 // pred_check
          %p660 = pneg %p256
        $region110: #{tpu_custom_call.1} parent=83 // pred_check_branch
          %662 = sbr.rel (%p660) target = $region112
        $region111: #{tpu_custom_call.1} parent=83 // pred_region
          %664 = dma.done [#allocation16], 1024
        $region112: #{tpu_custom_call.1} parent=83 // pred_fallthru
          _
        // Predicated region
        $region113: #{tpu_custom_call.1} parent=83 // pred_check
          %p665 = pneg %p340
        $region114: #{tpu_custom_call.1} parent=83 // pred_check_branch
          %667 = sbr.rel (%p665) target = $region116
        $region115: #{tpu_custom_call.1} parent=83 // pred_region
          %669 = dma.done [#allocation19], 4096
        $region116: #{tpu_custom_call.1} parent=83 // pred_fallthru
          _
        // Predicated region
        $region117: #{tpu_custom_call.1} parent=83 // pred_check
          %p670 = pneg %p382
        $region118: #{tpu_custom_call.1} parent=83 // pred_check_branch
          %672 = sbr.rel (%p670) target = $region120
        $region119: #{tpu_custom_call.1} parent=83 // pred_region
          %674 = dma.done [#allocation19], 4096
        $region120: #{tpu_custom_call.1} parent=83 // pred_fallthru
          _
        %s675 = sand.u32 %s68, 1
        %s676 = scalar_lea.sflag [#allocation7], %s675
        %s677 = sand.u32 %s68, 1
        %s678 = smul.addr %s677, 128
        %s679 = scalar_lea.vmem [#allocation6], %s678
        %p680 = pneg %p81
        %p681 = pneg %p78
        %s682 = sand.u32 %s39, 1
        %s683 = scalar_lea.sflag [#allocation10], %s682
        %s684 = sand.u32 %s96, 1
        %s685 = smul.addr %s684, 128
        %s686 = scalar_lea.vmem [#allocation9], %s685
        %p687 = pneg %p109
        %p688 = pneg %p106
        %p689 = pneg %p130
        %p690 = pneg %p127
        %p691 = pneg %p151
        %p692 = pneg %p148
        %p693 = pneg %p172
        %p694 = pneg %p169
        %p695 = pneg %p193
        %p696 = pneg %p190
        %p697 = pneg %p214
        %p698 = pneg %p211
        %p699 = pneg %p235
        %p700 = pneg %p232
        %p701 = pneg %p256
        %p702 = pneg %p253
        %p703 = pneg %p277
        %p704 = pneg %p274
        %p705 = pneg %p298
        %p706 = pneg %p295
        %p707 = pneg %p319
        %p708 = pneg %p316
        %p709 = pneg %p340
        %p710 = pneg %p337
        %p711 = pneg %p361
        %p712 = pneg %p358
        %p713 = pneg %p382
        %p714 = pneg %p379
        %p715 = pneg %p403
        %p716 = pneg %p400
        %p717 = pneg %p431
        %p718 = pneg %p428
        %s719 = sand.u32 %s418, 1
        %s720 = scalar_lea.sflag [#allocation8], %s719
        %s721 = sand.u32 %s418, 1
        %s722 = smul.addr %s721, 128
        %s723 = scalar_lea.vmem [#allocation21], %s722
        %s724 = smul.u32 16, %s45
        %s725 = smul.u32 16, %s46
        %s726 = smul.u32 16, %s45
        %p727 = scmp.eq.s32.totalorder %s46, 0
        // Predicated region
        $region121: #{tpu_custom_call.1} parent=83 // pred_check
          %p728 = pneg %p727
        $region122: #{tpu_custom_call.1} parent=83 // pred_check_branch
          %730 = sbr.rel (%p728) target = $region124
        $region123: #{tpu_custom_call.1} parent=83 // pred_region
          %v731 = vld [vmem:[%s624] sm:$0xff]
          %v732 = vld [vmem:[%s624 + $0x8] sm:$0xff]
          %v733 = vld [vmem:[%s624 + $0x10] sm:$0xff]
          %v734 = vld [vmem:[%s624 + $0x18] sm:$0xff]
          %v735 = vld [vmem:[%s624 + $0x20] sm:$0xff]
          %v736 = vld [vmem:[%s624 + $0x28] sm:$0xff]
          %v737 = vld [vmem:[%s624 + $0x30] sm:$0xff]
          %v738 = vld [vmem:[%s624 + $0x38] sm:$0xff]
          %v739 = vld [vmem:[%s624 + $0x40] sm:$0xff]
          %v740 = vld [vmem:[%s624 + $0x48] sm:$0xff]
          %v741 = vld [vmem:[%s624 + $0x50] sm:$0xff]
          %v742 = vld [vmem:[%s624 + $0x58] sm:$0xff]
          %v743 = vld [vmem:[%s624 + $0x60] sm:$0xff]
          %v744 = vld [vmem:[%s624 + $0x68] sm:$0xff]
          %v745 = vld [vmem:[%s624 + $0x70] sm:$0xff]
          %v746 = vld [vmem:[%s624 + $0x78] sm:$0xff]
          %747 = vadd.xlane.f32.xlu0 %v731
          %v748 = vpop.xlane.xlu0 %747
          %749 = vadd.xlane.f32.xlu0 %v732
          %v750 = vpop.xlane.xlu0 %749
          %751 = vadd.xlane.f32.xlu0 %v733
          %v752 = vpop.xlane.xlu0 %751
          %753 = vadd.xlane.f32.xlu0 %v734
          %v754 = vpop.xlane.xlu0 %753
          %755 = vadd.xlane.f32.xlu0 %v735
          %v756 = vpop.xlane.xlu0 %755
          %757 = vadd.xlane.f32.xlu0 %v736
          %v758 = vpop.xlane.xlu0 %757
          %759 = vadd.xlane.f32.xlu0 %v737
          %v760 = vpop.xlane.xlu0 %759
          %761 = vadd.xlane.f32.xlu0 %v738
          %v762 = vpop.xlane.xlu0 %761
          %763 = vadd.xlane.f32.xlu0 %v739
          %v764 = vpop.xlane.xlu0 %763
          %765 = vadd.xlane.f32.xlu0 %v740
          %v766 = vpop.xlane.xlu0 %765
          %767 = vadd.xlane.f32.xlu0 %v741
          %v768 = vpop.xlane.xlu0 %767
          %769 = vadd.xlane.f32.xlu0 %v742
          %v770 = vpop.xlane.xlu0 %769
          %771 = vadd.xlane.f32.xlu0 %v743
          %v772 = vpop.xlane.xlu0 %771
          %773 = vadd.xlane.f32.xlu0 %v744
          %v774 = vpop.xlane.xlu0 %773
          %775 = vadd.xlane.f32.xlu0 %v745
          %v776 = vpop.xlane.xlu0 %775
          %777 = vadd.xlane.f32.xlu0 %v746
          %v778 = vpop.xlane.xlu0 %777
          %v779 = vrcp.pop 128.0
          %v780 = vmul.f32 128.0, %v779
          %v781 = vsub.f32 1.0, %v780
          %v782 = vmul.f32 %v779, %v781
          %v783 = vadd.f32 %v779, %v782
          %vm784 = vweird.f32 %v779
          %v785 = vsel %vm784, %v779, %v783
          %v786 = vmul.f32 %v748, %v785
          %v787 = vmul.f32 %v750, %v785
          %v788 = vmul.f32 %v752, %v785
          %v789 = vmul.f32 %v754, %v785
          %v790 = vmul.f32 %v756, %v785
          %v791 = vmul.f32 %v758, %v785
          %v792 = vmul.f32 %v760, %v785
          %v793 = vmul.f32 %v762, %v785
          %v794 = vmul.f32 %v764, %v785
          %v795 = vmul.f32 %v766, %v785
          %v796 = vmul.f32 %v768, %v785
          %v797 = vmul.f32 %v770, %v785
          %v798 = vmul.f32 %v772, %v785
          %v799 = vmul.f32 %v774, %v785
          %v800 = vmul.f32 %v776, %v785
          %v801 = vmul.f32 %v778, %v785
          %v802 = vsub.f32 %v731, %v786
          %v803 = vsub.f32 %v732, %v787
          %v804 = vsub.f32 %v733, %v788
          %v805 = vsub.f32 %v734, %v789
          %v806 = vsub.f32 %v735, %v790
          %v807 = vsub.f32 %v736, %v791
          %v808 = vsub.f32 %v737, %v792
          %v809 = vsub.f32 %v738, %v793
          %v810 = vsub.f32 %v739, %v794
          %v811 = vsub.f32 %v740, %v795
          %v812 = vsub.f32 %v741, %v796
          %v813 = vsub.f32 %v742, %v797
          %v814 = vsub.f32 %v743, %v798
          %v815 = vsub.f32 %v744, %v799
          %v816 = vsub.f32 %v745, %v800
          %v817 = vsub.f32 %v746, %v801
          %v818 = vmul.f32 %v802, %v802
          %v819 = vmul.f32 %v803, %v803
          %v820 = vmul.f32 %v804, %v804
          %v821 = vmul.f32 %v805, %v805
          %v822 = vmul.f32 %v806, %v806
          %v823 = vmul.f32 %v807, %v807
          %v824 = vmul.f32 %v808, %v808
          %v825 = vmul.f32 %v809, %v809
          %v826 = vmul.f32 %v810, %v810
          %v827 = vmul.f32 %v811, %v811
          %v828 = vmul.f32 %v812, %v812
          %v829 = vmul.f32 %v813, %v813
          %v830 = vmul.f32 %v814, %v814
          %v831 = vmul.f32 %v815, %v815
          %v832 = vmul.f32 %v816, %v816
          %v833 = vmul.f32 %v817, %v817
          %834 = vadd.xlane.f32.xlu0 %v818
          %v835 = vpop.xlane.xlu0 %834
          %836 = vadd.xlane.f32.xlu0 %v819
          %v837 = vpop.xlane.xlu0 %836
          %838 = vadd.xlane.f32.xlu0 %v820
          %v839 = vpop.xlane.xlu0 %838
          %840 = vadd.xlane.f32.xlu0 %v821
          %v841 = vpop.xlane.xlu0 %840
          %842 = vadd.xlane.f32.xlu0 %v822
          %v843 = vpop.xlane.xlu0 %842
          %844 = vadd.xlane.f32.xlu0 %v823
          %v845 = vpop.xlane.xlu0 %844
          %846 = vadd.xlane.f32.xlu0 %v824
          %v847 = vpop.xlane.xlu0 %846
          %848 = vadd.xlane.f32.xlu0 %v825
          %v849 = vpop.xlane.xlu0 %848
          %850 = vadd.xlane.f32.xlu0 %v826
          %v851 = vpop.xlane.xlu0 %850
          %852 = vadd.xlane.f32.xlu0 %v827
          %v853 = vpop.xlane.xlu0 %852
          %854 = vadd.xlane.f32.xlu0 %v828
          %v855 = vpop.xlane.xlu0 %854
          %856 = vadd.xlane.f32.xlu0 %v829
          %v857 = vpop.xlane.xlu0 %856
          %858 = vadd.xlane.f32.xlu0 %v830
          %v859 = vpop.xlane.xlu0 %858
          %860 = vadd.xlane.f32.xlu0 %v831
          %v861 = vpop.xlane.xlu0 %860
          %862 = vadd.xlane.f32.xlu0 %v832
          %v863 = vpop.xlane.xlu0 %862
          %864 = vadd.xlane.f32.xlu0 %v833
          %v865 = vpop.xlane.xlu0 %864
          %v866 = vmul.f32 %v835, %v785
          %v867 = vmul.f32 %v837, %v785
          %v868 = vmul.f32 %v839, %v785
          %v869 = vmul.f32 %v841, %v785
          %v870 = vmul.f32 %v843, %v785
          %v871 = vmul.f32 %v845, %v785
          %v872 = vmul.f32 %v847, %v785
          %v873 = vmul.f32 %v849, %v785
          %v874 = vmul.f32 %v851, %v785
          %v875 = vmul.f32 %v853, %v785
          %v876 = vmul.f32 %v855, %v785
          %v877 = vmul.f32 %v857, %v785
          %v878 = vmul.f32 %v859, %v785
          %v879 = vmul.f32 %v861, %v785
          %v880 = vmul.f32 %v863, %v785
          %v881 = vmul.f32 %v865, %v785
          %v882 = vadd.f32 %v866, 1e-05
          %v883 = vadd.f32 %v867, 1e-05
          %v884 = vadd.f32 %v868, 1e-05
          %v885 = vadd.f32 %v869, 1e-05
          %v886 = vadd.f32 %v870, 1e-05
          %v887 = vadd.f32 %v871, 1e-05
          %v888 = vadd.f32 %v872, 1e-05
          %v889 = vadd.f32 %v873, 1e-05
          %v890 = vadd.f32 %v874, 1e-05
          %v891 = vadd.f32 %v875, 1e-05
          %v892 = vadd.f32 %v876, 1e-05
          %v893 = vadd.f32 %v877, 1e-05
          %v894 = vadd.f32 %v878, 1e-05
          %v895 = vadd.f32 %v879, 1e-05
          %v896 = vadd.f32 %v880, 1e-05
          %v897 = vadd.f32 %v881, 1e-05
          %v898 = vrsqrt.pop %v882
          %v899 = vmul.f32 %v898, %v882
          %v900 = vmul.f32 %v899, %v898
          %v901 = vmul.f32 0.5, %v900
          %v902 = vsub.f32 1.5, %v901
          %v903 = vmul.f32 %v898, %v902
          %vm904 = vweird.f32 %v882
          %vm905 = vweird.f32 %v898
          %vm906 = vmor %vm904, %vm905
          %v907 = vsel %vm906, %v898, %v903
          %v908 = vrsqrt.pop %v883
          %v909 = vmul.f32 %v908, %v883
          %v910 = vmul.f32 %v909, %v908
          %v911 = vmul.f32 0.5, %v910
          %v912 = vsub.f32 1.5, %v911
          %v913 = vmul.f32 %v908, %v912
          %vm914 = vweird.f32 %v883
          %vm915 = vweird.f32 %v908
          %vm916 = vmor %vm914, %vm915
          %v917 = vsel %vm916, %v908, %v913
          %v918 = vrsqrt.pop %v884
          %v919 = vmul.f32 %v918, %v884
          %v920 = vmul.f32 %v919, %v918
          %v921 = vmul.f32 0.5, %v920
          %v922 = vsub.f32 1.5, %v921
          %v923 = vmul.f32 %v918, %v922
          %vm924 = vweird.f32 %v884
          %vm925 = vweird.f32 %v918
          %vm926 = vmor %vm924, %vm925
          %v927 = vsel %vm926, %v918, %v923
          %v928 = vrsqrt.pop %v885
          %v929 = vmul.f32 %v928, %v885
          %v930 = vmul.f32 %v929, %v928
          %v931 = vmul.f32 0.5, %v930
          %v932 = vsub.f32 1.5, %v931
          %v933 = vmul.f32 %v928, %v932
          %vm934 = vweird.f32 %v885
          %vm935 = vweird.f32 %v928
          %vm936 = vmor %vm934, %vm935
          %v937 = vsel %vm936, %v928, %v933
          %v938 = vrsqrt.pop %v886
          %v939 = vmul.f32 %v938, %v886
          %v940 = vmul.f32 %v939, %v938
          %v941 = vmul.f32 0.5, %v940
          %v942 = vsub.f32 1.5, %v941
          %v943 = vmul.f32 %v938, %v942
          %vm944 = vweird.f32 %v886
          %vm945 = vweird.f32 %v938
          %vm946 = vmor %vm944, %vm945
          %v947 = vsel %vm946, %v938, %v943
          %v948 = vrsqrt.pop %v887
          %v949 = vmul.f32 %v948, %v887
          %v950 = vmul.f32 %v949, %v948
          %v951 = vmul.f32 0.5, %v950
          %v952 = vsub.f32 1.5, %v951
          %v953 = vmul.f32 %v948, %v952
          %vm954 = vweird.f32 %v887
          %vm955 = vweird.f32 %v948
          %vm956 = vmor %vm954, %vm955
          %v957 = vsel %vm956, %v948, %v953
          %v958 = vrsqrt.pop %v888
          %v959 = vmul.f32 %v958, %v888
          %v960 = vmul.f32 %v959, %v958
          %v961 = vmul.f32 0.5, %v960
          %v962 = vsub.f32 1.5, %v961
          %v963 = vmul.f32 %v958, %v962
          %vm964 = vweird.f32 %v888
          %vm965 = vweird.f32 %v958
          %vm966 = vmor %vm964, %vm965
          %v967 = vsel %vm966, %v958, %v963
          %v968 = vrsqrt.pop %v889
          %v969 = vmul.f32 %v968, %v889
          %v970 = vmul.f32 %v969, %v968
          %v971 = vmul.f32 0.5, %v970
          %v972 = vsub.f32 1.5, %v971
          %v973 = vmul.f32 %v968, %v972
          %vm974 = vweird.f32 %v889
          %vm975 = vweird.f32 %v968
          %vm976 = vmor %vm974, %vm975
          %v977 = vsel %vm976, %v968, %v973
          %v978 = vrsqrt.pop %v890
          %v979 = vmul.f32 %v978, %v890
          %v980 = vmul.f32 %v979, %v978
          %v981 = vmul.f32 0.5, %v980
          %v982 = vsub.f32 1.5, %v981
          %v983 = vmul.f32 %v978, %v982
          %vm984 = vweird.f32 %v890
          %vm985 = vweird.f32 %v978
          %vm986 = vmor %vm984, %vm985
          %v987 = vsel %vm986, %v978, %v983
          %v988 = vrsqrt.pop %v891
          %v989 = vmul.f32 %v988, %v891
          %v990 = vmul.f32 %v989, %v988
          %v991 = vmul.f32 0.5, %v990
          %v992 = vsub.f32 1.5, %v991
          %v993 = vmul.f32 %v988, %v992
          %vm994 = vweird.f32 %v891
          %vm995 = vweird.f32 %v988
          %vm996 = vmor %vm994, %vm995
          %v997 = vsel %vm996, %v988, %v993
          %v998 = vrsqrt.pop %v892
          %v999 = vmul.f32 %v998, %v892
          %v1000 = vmul.f32 %v999, %v998
          %v1001 = vmul.f32 0.5, %v1000
          %v1002 = vsub.f32 1.5, %v1001
          %v1003 = vmul.f32 %v998, %v1002
          %vm1004 = vweird.f32 %v892
          %vm1005 = vweird.f32 %v998
          %vm1006 = vmor %vm1004, %vm1005
          %v1007 = vsel %vm1006, %v998, %v1003
          %v1008 = vrsqrt.pop %v893
          %v1009 = vmul.f32 %v1008, %v893
          %v1010 = vmul.f32 %v1009, %v1008
          %v1011 = vmul.f32 0.5, %v1010
          %v1012 = vsub.f32 1.5, %v1011
          %v1013 = vmul.f32 %v1008, %v1012
          %vm1014 = vweird.f32 %v893
          %vm1015 = vweird.f32 %v1008
          %vm1016 = vmor %vm1014, %vm1015
          %v1017 = vsel %vm1016, %v1008, %v1013
          %v1018 = vrsqrt.pop %v894
          %v1019 = vmul.f32 %v1018, %v894
          %v1020 = vmul.f32 %v1019, %v1018
          %v1021 = vmul.f32 0.5, %v1020
          %v1022 = vsub.f32 1.5, %v1021
          %v1023 = vmul.f32 %v1018, %v1022
          %vm1024 = vweird.f32 %v894
          %vm1025 = vweird.f32 %v1018
          %vm1026 = vmor %vm1024, %vm1025
          %v1027 = vsel %vm1026, %v1018, %v1023
          %v1028 = vrsqrt.pop %v895
          %v1029 = vmul.f32 %v1028, %v895
          %v1030 = vmul.f32 %v1029, %v1028
          %v1031 = vmul.f32 0.5, %v1030
          %v1032 = vsub.f32 1.5, %v1031
          %v1033 = vmul.f32 %v1028, %v1032
          %vm1034 = vweird.f32 %v895
          %vm1035 = vweird.f32 %v1028
          %vm1036 = vmor %vm1034, %vm1035
          %v1037 = vsel %vm1036, %v1028, %v1033
          %v1038 = vrsqrt.pop %v896
          %v1039 = vmul.f32 %v1038, %v896
          %v1040 = vmul.f32 %v1039, %v1038
          %v1041 = vmul.f32 0.5, %v1040
          %v1042 = vsub.f32 1.5, %v1041
          %v1043 = vmul.f32 %v1038, %v1042
          %vm1044 = vweird.f32 %v896
          %vm1045 = vweird.f32 %v1038
          %vm1046 = vmor %vm1044, %vm1045
          %v1047 = vsel %vm1046, %v1038, %v1043
          %v1048 = vrsqrt.pop %v897
          %v1049 = vmul.f32 %v1048, %v897
          %v1050 = vmul.f32 %v1049, %v1048
          %v1051 = vmul.f32 0.5, %v1050
          %v1052 = vsub.f32 1.5, %v1051
          %v1053 = vmul.f32 %v1048, %v1052
          %vm1054 = vweird.f32 %v897
          %vm1055 = vweird.f32 %v1048
          %vm1056 = vmor %vm1054, %vm1055
          %v1057 = vsel %vm1056, %v1048, %v1053
          %v1058 = vmul.f32 %v802, %v907
          %v1059 = vmul.f32 %v803, %v917
          %v1060 = vmul.f32 %v804, %v927
          %v1061 = vmul.f32 %v805, %v937
          %v1062 = vmul.f32 %v806, %v947
          %v1063 = vmul.f32 %v807, %v957
          %v1064 = vmul.f32 %v808, %v967
          %v1065 = vmul.f32 %v809, %v977
          %v1066 = vmul.f32 %v810, %v987
          %v1067 = vmul.f32 %v811, %v997
          %v1068 = vmul.f32 %v812, %v1007
          %v1069 = vmul.f32 %v813, %v1017
          %v1070 = vmul.f32 %v814, %v1027
          %v1071 = vmul.f32 %v815, %v1037
          %v1072 = vmul.f32 %v816, %v1047
          %v1073 = vmul.f32 %v817, %v1057
          %v1074 = vld [vmem:[%s2] sm:$0x1]
          %v1076 = vperm.slane %v1074, 0
          %v1078 = vmul.f32 %v1058, %v1076
          %v1079 = vmul.f32 %v1059, %v1076
          %v1080 = vmul.f32 %v1060, %v1076
          %v1081 = vmul.f32 %v1061, %v1076
          %v1082 = vmul.f32 %v1062, %v1076
          %v1083 = vmul.f32 %v1063, %v1076
          %v1084 = vmul.f32 %v1064, %v1076
          %v1085 = vmul.f32 %v1065, %v1076
          %v1086 = vmul.f32 %v1066, %v1076
          %v1087 = vmul.f32 %v1067, %v1076
          %v1088 = vmul.f32 %v1068, %v1076
          %v1089 = vmul.f32 %v1069, %v1076
          %v1090 = vmul.f32 %v1070, %v1076
          %v1091 = vmul.f32 %v1071, %v1076
          %v1092 = vmul.f32 %v1072, %v1076
          %v1093 = vmul.f32 %v1073, %v1076
          %v1094 = vld [vmem:[#allocation11] sm:$0x1]
          %v1096 = vperm.slane %v1094, 0
          %v1098 = vadd.f32 %v1078, %v1096
          %v1099 = vadd.f32 %v1079, %v1096
          %v1100 = vadd.f32 %v1080, %v1096
          %v1101 = vadd.f32 %v1081, %v1096
          %v1102 = vadd.f32 %v1082, %v1096
          %v1103 = vadd.f32 %v1083, %v1096
          %v1104 = vadd.f32 %v1084, %v1096
          %v1105 = vadd.f32 %v1085, %v1096
          %v1106 = vadd.f32 %v1086, %v1096
          %v1107 = vadd.f32 %v1087, %v1096
          %v1108 = vadd.f32 %v1088, %v1096
          %v1109 = vadd.f32 %v1089, %v1096
          %v1110 = vadd.f32 %v1090, %v1096
          %v1111 = vadd.f32 %v1091, %v1096
          %v1112 = vadd.f32 %v1092, %v1096
          %v1113 = vadd.f32 %v1093, %v1096
          %v1114 = vpack.c.bf16 %v1099, %v1098
          %v1115 = vpack.c.bf16 %v1101, %v1100
          %v1116 = vpack.c.bf16 %v1103, %v1102
          %v1117 = vpack.c.bf16 %v1105, %v1104
          %v1118 = vpack.c.bf16 %v1107, %v1106
          %v1119 = vpack.c.bf16 %v1109, %v1108
          %v1120 = vpack.c.bf16 %v1111, %v1110
          %v1121 = vpack.c.bf16 %v1113, %v1112
          %v1122 = vld [vmem:[#allocation12] sm:$0xf]
          %v1123 = vld [vmem:[#allocation12 + $0x4] sm:$0xf]
          %v1124 = vld [vmem:[#allocation12 + $0x8] sm:$0xf]
          %v1125 = vld [vmem:[#allocation12 + $0xc] sm:$0xf]
          %v1126 = vld [vmem:[#allocation12 + $0x10] sm:$0xf]
          %v1127 = vld [vmem:[#allocation12 + $0x14] sm:$0xf]
          %v1128 = vld [vmem:[#allocation12 + $0x18] sm:$0xf]
          %v1129 = vld [vmem:[#allocation12 + $0x1c] sm:$0xf]
          %v1130 = vld [vmem:[#allocation12 + $0x20] sm:$0xf]
          %v1131 = vld [vmem:[#allocation12 + $0x24] sm:$0xf]
          %v1132 = vld [vmem:[#allocation12 + $0x28] sm:$0xf]
          %v1133 = vld [vmem:[#allocation12 + $0x2c] sm:$0xf]
          %v1134 = vld [vmem:[#allocation12 + $0x30] sm:$0xf]
          %v1135 = vld [vmem:[#allocation12 + $0x34] sm:$0xf]
          %v1136 = vld [vmem:[#allocation12 + $0x38] sm:$0xf]
          %v1137 = vld [vmem:[#allocation12 + $0x3c] sm:$0xf]
          %v1138 = vld [vmem:[#allocation14] sm:$0x1]
          %v1140 = vperm.slane %v1138, 0
          %v1158 = vunpack.c.l.b16 %v1122
          %v1159 = vunpack.c.l.b16 %v1123
          %v1160 = vunpack.c.l.b16 %v1124
          %v1161 = vunpack.c.l.b16 %v1125
          %v1162 = vunpack.c.l.b16 %v1126
          %v1163 = vunpack.c.l.b16 %v1127
          %v1164 = vunpack.c.l.b16 %v1128
          %v1165 = vunpack.c.l.b16 %v1129
          %v1166 = vunpack.c.l.b16 %v1130
          %v1167 = vunpack.c.l.b16 %v1131
          %v1168 = vunpack.c.l.b16 %v1132
          %v1169 = vunpack.c.l.b16 %v1133
          %v1170 = vunpack.c.l.b16 %v1134
          %v1171 = vunpack.c.l.b16 %v1135
          %v1172 = vunpack.c.l.b16 %v1136
          %v1173 = vunpack.c.l.b16 %v1137
          %v1174 = vpack.c.b16 %v1159, %v1158
          %v1175 = vpack.c.b16 %v1161, %v1160
          %v1176 = vpack.c.b16 %v1163, %v1162
          %v1177 = vpack.c.b16 %v1165, %v1164
          %v1178 = vpack.c.b16 %v1167, %v1166
          %v1179 = vpack.c.b16 %v1169, %v1168
          %v1180 = vpack.c.b16 %v1171, %v1170
          %v1181 = vpack.c.b16 %v1173, %v1172
          %1190 = vmatpush.bf16.msra.mxu0 %v1181
          %1191 = vmatpush.bf16.msra.mxu0 %v1180
          %1192 = vmatpush.bf16.msra.mxu0 %v1179
          %1193 = vmatpush.bf16.msra.mxu0 %v1178
          %1194 = vmatpush.bf16.msra.mxu0 %v1177
          %1195 = vmatpush.bf16.msra.mxu0 %v1176
          %1196 = vmatpush.bf16.msra.mxu0 %v1175
          %1197 = vmatpush.bf16.msra.mxu0 %v1174
          %1198 = vmatmul.bf16.gmra.mxu0 %v1114
          %v1199 = vpop.f32.mrf.mxu0
          %v1200 = vadd.f32 %v1140, %v1199
          %v1201 = vpop.f32.mrf.mxu0
          %v1202 = vadd.f32 %v1140, %v1201
          %1203 = vmatmul.bf16.gmra.mxu0 %v1115
          %v1204 = vpop.f32.mrf.mxu0
          %v1205 = vadd.f32 %v1140, %v1204
          %v1206 = vpop.f32.mrf.mxu0
          %v1207 = vadd.f32 %v1140, %v1206
          %1208 = vmatmul.bf16.gmra.mxu0 %v1116
          %v1209 = vpop.f32.mrf.mxu0
          %v1210 = vadd.f32 %v1140, %v1209
          %v1211 = vpop.f32.mrf.mxu0
          %v1212 = vadd.f32 %v1140, %v1211
          %1213 = vmatmul.bf16.gmra.mxu0 %v1117
          %v1214 = vpop.f32.mrf.mxu0
          %v1215 = vadd.f32 %v1140, %v1214
          %v1216 = vpop.f32.mrf.mxu0
          %v1217 = vadd.f32 %v1140, %v1216
          %1218 = vmatmul.bf16.gmra.mxu0 %v1118
          %v1219 = vpop.f32.mrf.mxu0
          %v1220 = vadd.f32 %v1140, %v1219
          %v1221 = vpop.f32.mrf.mxu0
          %v1222 = vadd.f32 %v1140, %v1221
          %1223 = vmatmul.bf16.gmra.mxu0 %v1119
          %v1224 = vpop.f32.mrf.mxu0
          %v1225 = vadd.f32 %v1140, %v1224
          %v1226 = vpop.f32.mrf.mxu0
          %v1227 = vadd.f32 %v1140, %v1226
          %1228 = vmatmul.bf16.gmra.mxu0 %v1120
          %v1229 = vpop.f32.mrf.mxu0
          %v1230 = vadd.f32 %v1140, %v1229
          %v1231 = vpop.f32.mrf.mxu0
          %v1232 = vadd.f32 %v1140, %v1231
          %1233 = vmatmul.bf16.gmra.mxu0 %v1121
          %v1234 = vpop.f32.mrf.mxu0
          %v1235 = vadd.f32 %v1140, %v1234
          %v1236 = vpop.f32.mrf.mxu0
          %v1237 = vadd.f32 %v1140, %v1236
          %1238 = vdwg.mxu0
          %v1239 = vmul.f32 %v1200, 0.088388346
          %v1240 = vmul.f32 %v1202, 0.088388346
          %v1241 = vmul.f32 %v1205, 0.088388346
          %v1242 = vmul.f32 %v1207, 0.088388346
          %v1243 = vmul.f32 %v1210, 0.088388346
          %v1244 = vmul.f32 %v1212, 0.088388346
          %v1245 = vmul.f32 %v1215, 0.088388346
          %v1246 = vmul.f32 %v1217, 0.088388346
          %v1247 = vmul.f32 %v1220, 0.088388346
          %v1248 = vmul.f32 %v1222, 0.088388346
          %v1249 = vmul.f32 %v1225, 0.088388346
          %v1250 = vmul.f32 %v1227, 0.088388346
          %v1251 = vmul.f32 %v1230, 0.088388346
          %v1252 = vmul.f32 %v1232, 0.088388346
          %v1253 = vmul.f32 %v1235, 0.088388346
          %v1254 = vmul.f32 %v1237, 0.088388346
          %v1255 = vpack.c.bf16 %v1239, %v1239
          %v1256 = vpack.c.bf16 %v1240, %v1240
          %v1257 = vpack.c.bf16 %v1241, %v1241
          %v1258 = vpack.c.bf16 %v1242, %v1242
          %v1259 = vpack.c.bf16 %v1243, %v1243
          %v1260 = vpack.c.bf16 %v1244, %v1244
          %v1261 = vpack.c.bf16 %v1245, %v1245
          %v1262 = vpack.c.bf16 %v1246, %v1246
          %v1263 = vpack.c.bf16 %v1247, %v1247
          %v1264 = vpack.c.bf16 %v1248, %v1248
          %v1265 = vpack.c.bf16 %v1249, %v1249
          %v1266 = vpack.c.bf16 %v1250, %v1250
          %v1267 = vpack.c.bf16 %v1251, %v1251
          %v1268 = vpack.c.bf16 %v1252, %v1252
          %v1269 = vpack.c.bf16 %v1253, %v1253
          %v1270 = vpack.c.bf16 %v1254, %v1254
          %1271 = vst [vmem:[#allocation2] sm:$0xf] %v1255
          %1272 = vst [vmem:[#allocation2 + $0x4] sm:$0xf] %v1256
          %1273 = vst [vmem:[#allocation2 + $0x8] sm:$0xf] %v1257
          %1274 = vst [vmem:[#allocation2 + $0xc] sm:$0xf] %v1258
          %1275 = vst [vmem:[#allocation2 + $0x10] sm:$0xf] %v1259
          %1276 = vst [vmem:[#allocation2 + $0x14] sm:$0xf] %v1260
          %1277 = vst [vmem:[#allocation2 + $0x18] sm:$0xf] %v1261
          %1278 = vst [vmem:[#allocation2 + $0x1c] sm:$0xf] %v1262
          %1279 = vst [vmem:[#allocation2 + $0x20] sm:$0xf] %v1263
          %1280 = vst [vmem:[#allocation2 + $0x24] sm:$0xf] %v1264
          %1281 = vst [vmem:[#allocation2 + $0x28] sm:$0xf] %v1265
          %1282 = vst [vmem:[#allocation2 + $0x2c] sm:$0xf] %v1266
          %1283 = vst [vmem:[#allocation2 + $0x30] sm:$0xf] %v1267
          %1284 = vst [vmem:[#allocation2 + $0x34] sm:$0xf] %v1268
          %1285 = vst [vmem:[#allocation2 + $0x38] sm:$0xf] %v1269
          %1286 = vst [vmem:[#allocation2 + $0x3c] sm:$0xf] %v1270
          %vm1287 = vcmask 7168
          %1288 = vst.msk [vmem:[#allocation3] sm:$0xff] %vm1287, -inf
          %1289 = vst.msk [vmem:[#allocation3 + $0x8] sm:$0xff] %vm1287, -inf
          %1290 = vst.msk [vmem:[#allocation3 + $0x10] sm:$0xff] %vm1287, -inf
          %1291 = vst.msk [vmem:[#allocation3 + $0x18] sm:$0xff] %vm1287, -inf
          %1292 = vst.msk [vmem:[#allocation3 + $0x20] sm:$0xff] %vm1287, -inf
          %1293 = vst.msk [vmem:[#allocation3 + $0x28] sm:$0xff] %vm1287, -inf
          %1294 = vst.msk [vmem:[#allocation3 + $0x30] sm:$0xff] %vm1287, -inf
          %1295 = vst.msk [vmem:[#allocation3 + $0x38] sm:$0xff] %vm1287, -inf
          %1296 = vst.msk [vmem:[#allocation3 + $0x40] sm:$0xff] %vm1287, -inf
          %1297 = vst.msk [vmem:[#allocation3 + $0x48] sm:$0xff] %vm1287, -inf
          %1298 = vst.msk [vmem:[#allocation3 + $0x50] sm:$0xff] %vm1287, -inf
          %1299 = vst.msk [vmem:[#allocation3 + $0x58] sm:$0xff] %vm1287, -inf
          %1300 = vst.msk [vmem:[#allocation3 + $0x60] sm:$0xff] %vm1287, -inf
          %1301 = vst.msk [vmem:[#allocation3 + $0x68] sm:$0xff] %vm1287, -inf
          %1302 = vst.msk [vmem:[#allocation3 + $0x70] sm:$0xff] %vm1287, -inf
          %1303 = vst.msk [vmem:[#allocation3 + $0x78] sm:$0xff] %vm1287, -inf
          %1304 = vst.msk [vmem:[#allocation4] sm:$0xff] %vm1287, 0.0
          %1305 = vst.msk [vmem:[#allocation4 + $0x8] sm:$0xff] %vm1287, 0.0
          %1306 = vst.msk [vmem:[#allocation4 + $0x10] sm:$0xff] %vm1287, 0.0
          %1307 = vst.msk [vmem:[#allocation4 + $0x18] sm:$0xff] %vm1287, 0.0
          %1308 = vst.msk [vmem:[#allocation4 + $0x20] sm:$0xff] %vm1287, 0.0
          %1309 = vst.msk [vmem:[#allocation4 + $0x28] sm:$0xff] %vm1287, 0.0
          %1310 = vst.msk [vmem:[#allocation4 + $0x30] sm:$0xff] %vm1287, 0.0
          %1311 = vst.msk [vmem:[#allocation4 + $0x38] sm:$0xff] %vm1287, 0.0
          %1312 = vst.msk [vmem:[#allocation4 + $0x40] sm:$0xff] %vm1287, 0.0
          %1313 = vst.msk [vmem:[#allocation4 + $0x48] sm:$0xff] %vm1287, 0.0
          %1314 = vst.msk [vmem:[#allocation4 + $0x50] sm:$0xff] %vm1287, 0.0
          %1315 = vst.msk [vmem:[#allocation4 + $0x58] sm:$0xff] %vm1287, 0.0
          %1316 = vst.msk [vmem:[#allocation4 + $0x60] sm:$0xff] %vm1287, 0.0
          %1317 = vst.msk [vmem:[#allocation4 + $0x68] sm:$0xff] %vm1287, 0.0
          %1318 = vst.msk [vmem:[#allocation4 + $0x70] sm:$0xff] %vm1287, 0.0
          %1319 = vst.msk [vmem:[#allocation4 + $0x78] sm:$0xff] %vm1287, 0.0
          %1320 = vst [vmem:[#allocation5] sm:$0xff] 0.0
          %1321 = vst [vmem:[#allocation5 + $0x8] sm:$0xff] 0.0
          %1322 = vst [vmem:[#allocation5 + $0x10] sm:$0xff] 0.0
          %1323 = vst [vmem:[#allocation5 + $0x18] sm:$0xff] 0.0
          %1324 = vst [vmem:[#allocation5 + $0x20] sm:$0xff] 0.0
          %1325 = vst [vmem:[#allocation5 + $0x28] sm:$0xff] 0.0
          %1326 = vst [vmem:[#allocation5 + $0x30] sm:$0xff] 0.0
          %1327 = vst [vmem:[#allocation5 + $0x38] sm:$0xff] 0.0
          %1328 = vst [vmem:[#allocation5 + $0x40] sm:$0xff] 0.0
          %1329 = vst [vmem:[#allocation5 + $0x48] sm:$0xff] 0.0
          %1330 = vst [vmem:[#allocation5 + $0x50] sm:$0xff] 0.0
          %1331 = vst [vmem:[#allocation5 + $0x58] sm:$0xff] 0.0
          %1332 = vst [vmem:[#allocation5 + $0x60] sm:$0xff] 0.0
          %1333 = vst [vmem:[#allocation5 + $0x68] sm:$0xff] 0.0
          %1334 = vst [vmem:[#allocation5 + $0x70] sm:$0xff] 0.0
          %1335 = vst [vmem:[#allocation5 + $0x78] sm:$0xff] 0.0
        $region124: #{tpu_custom_call.1} parent=83 // pred_fallthru
          _
        %v1336 = vld [vmem:[%s634] sm:$0xff]
        %v1337 = vld [vmem:[%s634 + $0x8] sm:$0xff]
        %v1338 = vld [vmem:[%s634 + $0x10] sm:$0xff]
        %v1339 = vld [vmem:[%s634 + $0x18] sm:$0xff]
        %v1340 = vld [vmem:[%s634 + $0x20] sm:$0xff]
        %v1341 = vld [vmem:[%s634 + $0x28] sm:$0xff]
        %v1342 = vld [vmem:[%s634 + $0x30] sm:$0xff]
        %v1343 = vld [vmem:[%s634 + $0x38] sm:$0xff]
        %v1344 = vld [vmem:[%s634 + $0x40] sm:$0xff]
        %v1345 = vld [vmem:[%s634 + $0x48] sm:$0xff]
        %v1346 = vld [vmem:[%s634 + $0x50] sm:$0xff]
        %v1347 = vld [vmem:[%s634 + $0x58] sm:$0xff]
        %v1348 = vld [vmem:[%s634 + $0x60] sm:$0xff]
        %v1349 = vld [vmem:[%s634 + $0x68] sm:$0xff]
        %v1350 = vld [vmem:[%s634 + $0x70] sm:$0xff]
        %v1351 = vld [vmem:[%s634 + $0x78] sm:$0xff]
        %1352 = vadd.xlane.f32.xlu0 %v1336
        %v1353 = vpop.xlane.xlu0 %1352
        %1354 = vadd.xlane.f32.xlu0 %v1337
        %v1355 = vpop.xlane.xlu0 %1354
        %1356 = vadd.xlane.f32.xlu0 %v1338
        %v1357 = vpop.xlane.xlu0 %1356
        %1358 = vadd.xlane.f32.xlu0 %v1339
        %v1359 = vpop.xlane.xlu0 %1358
        %1360 = vadd.xlane.f32.xlu0 %v1340
        %v1361 = vpop.xlane.xlu0 %1360
        %1362 = vadd.xlane.f32.xlu0 %v1341
        %v1363 = vpop.xlane.xlu0 %1362
        %1364 = vadd.xlane.f32.xlu0 %v1342
        %v1365 = vpop.xlane.xlu0 %1364
        %1366 = vadd.xlane.f32.xlu0 %v1343
        %v1367 = vpop.xlane.xlu0 %1366
        %1368 = vadd.xlane.f32.xlu0 %v1344
        %v1369 = vpop.xlane.xlu0 %1368
        %1370 = vadd.xlane.f32.xlu0 %v1345
        %v1371 = vpop.xlane.xlu0 %1370
        %1372 = vadd.xlane.f32.xlu0 %v1346
        %v1373 = vpop.xlane.xlu0 %1372
        %1374 = vadd.xlane.f32.xlu0 %v1347
        %v1375 = vpop.xlane.xlu0 %1374
        %1376 = vadd.xlane.f32.xlu0 %v1348
        %v1377 = vpop.xlane.xlu0 %1376
        %1378 = vadd.xlane.f32.xlu0 %v1349
        %v1379 = vpop.xlane.xlu0 %1378
        %1380 = vadd.xlane.f32.xlu0 %v1350
        %v1381 = vpop.xlane.xlu0 %1380
        %1382 = vadd.xlane.f32.xlu0 %v1351
        %v1383 = vpop.xlane.xlu0 %1382
        %v1384 = vrcp.pop 128.0
        %v1385 = vmul.f32 128.0, %v1384
        %v1386 = vsub.f32 1.0, %v1385
        %v1387 = vmul.f32 %v1384, %v1386
        %v1388 = vadd.f32 %v1384, %v1387
        %vm1389 = vweird.f32 %v1384
        %v1390 = vsel %vm1389, %v1384, %v1388
        %v1391 = vmul.f32 %v1353, %v1390
        %v1392 = vmul.f32 %v1355, %v1390
        %v1393 = vmul.f32 %v1357, %v1390
        %v1394 = vmul.f32 %v1359, %v1390
        %v1395 = vmul.f32 %v1361, %v1390
        %v1396 = vmul.f32 %v1363, %v1390
        %v1397 = vmul.f32 %v1365, %v1390
        %v1398 = vmul.f32 %v1367, %v1390
        %v1399 = vmul.f32 %v1369, %v1390
        %v1400 = vmul.f32 %v1371, %v1390
        %v1401 = vmul.f32 %v1373, %v1390
        %v1402 = vmul.f32 %v1375, %v1390
        %v1403 = vmul.f32 %v1377, %v1390
        %v1404 = vmul.f32 %v1379, %v1390
        %v1405 = vmul.f32 %v1381, %v1390
        %v1406 = vmul.f32 %v1383, %v1390
        %v1407 = vsub.f32 %v1336, %v1391
        %v1408 = vsub.f32 %v1337, %v1392
        %v1409 = vsub.f32 %v1338, %v1393
        %v1410 = vsub.f32 %v1339, %v1394
        %v1411 = vsub.f32 %v1340, %v1395
        %v1412 = vsub.f32 %v1341, %v1396
        %v1413 = vsub.f32 %v1342, %v1397
        %v1414 = vsub.f32 %v1343, %v1398
        %v1415 = vsub.f32 %v1344, %v1399
        %v1416 = vsub.f32 %v1345, %v1400
        %v1417 = vsub.f32 %v1346, %v1401
        %v1418 = vsub.f32 %v1347, %v1402
        %v1419 = vsub.f32 %v1348, %v1403
        %v1420 = vsub.f32 %v1349, %v1404
        %v1421 = vsub.f32 %v1350, %v1405
        %v1422 = vsub.f32 %v1351, %v1406
        %v1423 = vmul.f32 %v1407, %v1407
        %v1424 = vmul.f32 %v1408, %v1408
        %v1425 = vmul.f32 %v1409, %v1409
        %v1426 = vmul.f32 %v1410, %v1410
        %v1427 = vmul.f32 %v1411, %v1411
        %v1428 = vmul.f32 %v1412, %v1412
        %v1429 = vmul.f32 %v1413, %v1413
        %v1430 = vmul.f32 %v1414, %v1414
        %v1431 = vmul.f32 %v1415, %v1415
        %v1432 = vmul.f32 %v1416, %v1416
        %v1433 = vmul.f32 %v1417, %v1417
        %v1434 = vmul.f32 %v1418, %v1418
        %v1435 = vmul.f32 %v1419, %v1419
        %v1436 = vmul.f32 %v1420, %v1420
        %v1437 = vmul.f32 %v1421, %v1421
        %v1438 = vmul.f32 %v1422, %v1422
        %1439 = vadd.xlane.f32.xlu0 %v1423
        %v1440 = vpop.xlane.xlu0 %1439
        %1441 = vadd.xlane.f32.xlu0 %v1424
        %v1442 = vpop.xlane.xlu0 %1441
        %1443 = vadd.xlane.f32.xlu0 %v1425
        %v1444 = vpop.xlane.xlu0 %1443
        %1445 = vadd.xlane.f32.xlu0 %v1426
        %v1446 = vpop.xlane.xlu0 %1445
        %1447 = vadd.xlane.f32.xlu0 %v1427
        %v1448 = vpop.xlane.xlu0 %1447
        %1449 = vadd.xlane.f32.xlu0 %v1428
        %v1450 = vpop.xlane.xlu0 %1449
        %1451 = vadd.xlane.f32.xlu0 %v1429
        %v1452 = vpop.xlane.xlu0 %1451
        %1453 = vadd.xlane.f32.xlu0 %v1430
        %v1454 = vpop.xlane.xlu0 %1453
        %1455 = vadd.xlane.f32.xlu0 %v1431
        %v1456 = vpop.xlane.xlu0 %1455
        %1457 = vadd.xlane.f32.xlu0 %v1432
        %v1458 = vpop.xlane.xlu0 %1457
        %1459 = vadd.xlane.f32.xlu0 %v1433
        %v1460 = vpop.xlane.xlu0 %1459
        %1461 = vadd.xlane.f32.xlu0 %v1434
        %v1462 = vpop.xlane.xlu0 %1461
        %1463 = vadd.xlane.f32.xlu0 %v1435
        %v1464 = vpop.xlane.xlu0 %1463
        %1465 = vadd.xlane.f32.xlu0 %v1436
        %v1466 = vpop.xlane.xlu0 %1465
        %1467 = vadd.xlane.f32.xlu0 %v1437
        %v1468 = vpop.xlane.xlu0 %1467
        %1469 = vadd.xlane.f32.xlu0 %v1438
        %v1470 = vpop.xlane.xlu0 %1469
        %v1471 = vmul.f32 %v1440, %v1390
        %v1472 = vmul.f32 %v1442, %v1390
        %v1473 = vmul.f32 %v1444, %v1390
        %v1474 = vmul.f32 %v1446, %v1390
        %v1475 = vmul.f32 %v1448, %v1390
        %v1476 = vmul.f32 %v1450, %v1390
        %v1477 = vmul.f32 %v1452, %v1390
        %v1478 = vmul.f32 %v1454, %v1390
        %v1479 = vmul.f32 %v1456, %v1390
        %v1480 = vmul.f32 %v1458, %v1390
        %v1481 = vmul.f32 %v1460, %v1390
        %v1482 = vmul.f32 %v1462, %v1390
        %v1483 = vmul.f32 %v1464, %v1390
        %v1484 = vmul.f32 %v1466, %v1390
        %v1485 = vmul.f32 %v1468, %v1390
        %v1486 = vmul.f32 %v1470, %v1390
        %v1487 = vadd.f32 %v1471, 1e-05
        %v1488 = vadd.f32 %v1472, 1e-05
        %v1489 = vadd.f32 %v1473, 1e-05
        %v1490 = vadd.f32 %v1474, 1e-05
        %v1491 = vadd.f32 %v1475, 1e-05
        %v1492 = vadd.f32 %v1476, 1e-05
        %v1493 = vadd.f32 %v1477, 1e-05
        %v1494 = vadd.f32 %v1478, 1e-05
        %v1495 = vadd.f32 %v1479, 1e-05
        %v1496 = vadd.f32 %v1480, 1e-05
        %v1497 = vadd.f32 %v1481, 1e-05
        %v1498 = vadd.f32 %v1482, 1e-05
        %v1499 = vadd.f32 %v1483, 1e-05
        %v1500 = vadd.f32 %v1484, 1e-05
        %v1501 = vadd.f32 %v1485, 1e-05
        %v1502 = vadd.f32 %v1486, 1e-05
        %v1503 = vrsqrt.pop %v1487
        %v1504 = vmul.f32 %v1503, %v1487
        %v1505 = vmul.f32 %v1504, %v1503
        %v1506 = vmul.f32 0.5, %v1505
        %v1507 = vsub.f32 1.5, %v1506
        %v1508 = vmul.f32 %v1503, %v1507
        %vm1509 = vweird.f32 %v1487
        %vm1510 = vweird.f32 %v1503
        %vm1511 = vmor %vm1509, %vm1510
        %v1512 = vsel %vm1511, %v1503, %v1508
        %v1513 = vrsqrt.pop %v1488
        %v1514 = vmul.f32 %v1513, %v1488
        %v1515 = vmul.f32 %v1514, %v1513
        %v1516 = vmul.f32 0.5, %v1515
        %v1517 = vsub.f32 1.5, %v1516
        %v1518 = vmul.f32 %v1513, %v1517
        %vm1519 = vweird.f32 %v1488
        %vm1520 = vweird.f32 %v1513
        %vm1521 = vmor %vm1519, %vm1520
        %v1522 = vsel %vm1521, %v1513, %v1518
        %v1523 = vrsqrt.pop %v1489
        %v1524 = vmul.f32 %v1523, %v1489
        %v1525 = vmul.f32 %v1524, %v1523
        %v1526 = vmul.f32 0.5, %v1525
        %v1527 = vsub.f32 1.5, %v1526
        %v1528 = vmul.f32 %v1523, %v1527
        %vm1529 = vweird.f32 %v1489
        %vm1530 = vweird.f32 %v1523
        %vm1531 = vmor %vm1529, %vm1530
        %v1532 = vsel %vm1531, %v1523, %v1528
        %v1533 = vrsqrt.pop %v1490
        %v1534 = vmul.f32 %v1533, %v1490
        %v1535 = vmul.f32 %v1534, %v1533
        %v1536 = vmul.f32 0.5, %v1535
        %v1537 = vsub.f32 1.5, %v1536
        %v1538 = vmul.f32 %v1533, %v1537
        %vm1539 = vweird.f32 %v1490
        %vm1540 = vweird.f32 %v1533
        %vm1541 = vmor %vm1539, %vm1540
        %v1542 = vsel %vm1541, %v1533, %v1538
        %v1543 = vrsqrt.pop %v1491
        %v1544 = vmul.f32 %v1543, %v1491
        %v1545 = vmul.f32 %v1544, %v1543
        %v1546 = vmul.f32 0.5, %v1545
        %v1547 = vsub.f32 1.5, %v1546
        %v1548 = vmul.f32 %v1543, %v1547
        %vm1549 = vweird.f32 %v1491
        %vm1550 = vweird.f32 %v1543
        %vm1551 = vmor %vm1549, %vm1550
        %v1552 = vsel %vm1551, %v1543, %v1548
        %v1553 = vrsqrt.pop %v1492
        %v1554 = vmul.f32 %v1553, %v1492
        %v1555 = vmul.f32 %v1554, %v1553
        %v1556 = vmul.f32 0.5, %v1555
        %v1557 = vsub.f32 1.5, %v1556
        %v1558 = vmul.f32 %v1553, %v1557
        %vm1559 = vweird.f32 %v1492
        %vm1560 = vweird.f32 %v1553
        %vm1561 = vmor %vm1559, %vm1560
        %v1562 = vsel %vm1561, %v1553, %v1558
        %v1563 = vrsqrt.pop %v1493
        %v1564 = vmul.f32 %v1563, %v1493
        %v1565 = vmul.f32 %v1564, %v1563
        %v1566 = vmul.f32 0.5, %v1565
        %v1567 = vsub.f32 1.5, %v1566
        %v1568 = vmul.f32 %v1563, %v1567
        %vm1569 = vweird.f32 %v1493
        %vm1570 = vweird.f32 %v1563
        %vm1571 = vmor %vm1569, %vm1570
        %v1572 = vsel %vm1571, %v1563, %v1568
        %v1573 = vrsqrt.pop %v1494
        %v1574 = vmul.f32 %v1573, %v1494
        %v1575 = vmul.f32 %v1574, %v1573
        %v1576 = vmul.f32 0.5, %v1575
        %v1577 = vsub.f32 1.5, %v1576
        %v1578 = vmul.f32 %v1573, %v1577
        %vm1579 = vweird.f32 %v1494
        %vm1580 = vweird.f32 %v1573
        %vm1581 = vmor %vm1579, %vm1580
        %v1582 = vsel %vm1581, %v1573, %v1578
        %v1583 = vrsqrt.pop %v1495
        %v1584 = vmul.f32 %v1583, %v1495
        %v1585 = vmul.f32 %v1584, %v1583
        %v1586 = vmul.f32 0.5, %v1585
        %v1587 = vsub.f32 1.5, %v1586
        %v1588 = vmul.f32 %v1583, %v1587
        %vm1589 = vweird.f32 %v1495
        %vm1590 = vweird.f32 %v1583
        %vm1591 = vmor %vm1589, %vm1590
        %v1592 = vsel %vm1591, %v1583, %v1588
        %v1593 = vrsqrt.pop %v1496
        %v1594 = vmul.f32 %v1593, %v1496
        %v1595 = vmul.f32 %v1594, %v1593
        %v1596 = vmul.f32 0.5, %v1595
        %v1597 = vsub.f32 1.5, %v1596
        %v1598 = vmul.f32 %v1593, %v1597
        %vm1599 = vweird.f32 %v1496
        %vm1600 = vweird.f32 %v1593
        %vm1601 = vmor %vm1599, %vm1600
        %v1602 = vsel %vm1601, %v1593, %v1598
        %v1603 = vrsqrt.pop %v1497
        %v1604 = vmul.f32 %v1603, %v1497
        %v1605 = vmul.f32 %v1604, %v1603
        %v1606 = vmul.f32 0.5, %v1605
        %v1607 = vsub.f32 1.5, %v1606
        %v1608 = vmul.f32 %v1603, %v1607
        %vm1609 = vweird.f32 %v1497
        %vm1610 = vweird.f32 %v1603
        %vm1611 = vmor %vm1609, %vm1610
        %v1612 = vsel %vm1611, %v1603, %v1608
        %v1613 = vrsqrt.pop %v1498
        %v1614 = vmul.f32 %v1613, %v1498
        %v1615 = vmul.f32 %v1614, %v1613
        %v1616 = vmul.f32 0.5, %v1615
        %v1617 = vsub.f32 1.5, %v1616
        %v1618 = vmul.f32 %v1613, %v1617
        %vm1619 = vweird.f32 %v1498
        %vm1620 = vweird.f32 %v1613
        %vm1621 = vmor %vm1619, %vm1620
        %v1622 = vsel %vm1621, %v1613, %v1618
        %v1623 = vrsqrt.pop %v1499
        %v1624 = vmul.f32 %v1623, %v1499
        %v1625 = vmul.f32 %v1624, %v1623
        %v1626 = vmul.f32 0.5, %v1625
        %v1627 = vsub.f32 1.5, %v1626
        %v1628 = vmul.f32 %v1623, %v1627
        %vm1629 = vweird.f32 %v1499
        %vm1630 = vweird.f32 %v1623
        %vm1631 = vmor %vm1629, %vm1630
        %v1632 = vsel %vm1631, %v1623, %v1628
        %v1633 = vrsqrt.pop %v1500
        %v1634 = vmul.f32 %v1633, %v1500
        %v1635 = vmul.f32 %v1634, %v1633
        %v1636 = vmul.f32 0.5, %v1635
        %v1637 = vsub.f32 1.5, %v1636
        %v1638 = vmul.f32 %v1633, %v1637
        %vm1639 = vweird.f32 %v1500
        %vm1640 = vweird.f32 %v1633
        %vm1641 = vmor %vm1639, %vm1640
        %v1642 = vsel %vm1641, %v1633, %v1638
        %v1643 = vrsqrt.pop %v1501
        %v1644 = vmul.f32 %v1643, %v1501
        %v1645 = vmul.f32 %v1644, %v1643
        %v1646 = vmul.f32 0.5, %v1645
        %v1647 = vsub.f32 1.5, %v1646
        %v1648 = vmul.f32 %v1643, %v1647
        %vm1649 = vweird.f32 %v1501
        %vm1650 = vweird.f32 %v1643
        %vm1651 = vmor %vm1649, %vm1650
        %v1652 = vsel %vm1651, %v1643, %v1648
        %v1653 = vrsqrt.pop %v1502
        %v1654 = vmul.f32 %v1653, %v1502
        %v1655 = vmul.f32 %v1654, %v1653
        %v1656 = vmul.f32 0.5, %v1655
        %v1657 = vsub.f32 1.5, %v1656
        %v1658 = vmul.f32 %v1653, %v1657
        %vm1659 = vweird.f32 %v1502
        %vm1660 = vweird.f32 %v1653
        %vm1661 = vmor %vm1659, %vm1660
        %v1662 = vsel %vm1661, %v1653, %v1658
        %v1663 = vmul.f32 %v1407, %v1512
        %v1664 = vmul.f32 %v1408, %v1522
        %v1665 = vmul.f32 %v1409, %v1532
        %v1666 = vmul.f32 %v1410, %v1542
        %v1667 = vmul.f32 %v1411, %v1552
        %v1668 = vmul.f32 %v1412, %v1562
        %v1669 = vmul.f32 %v1413, %v1572
        %v1670 = vmul.f32 %v1414, %v1582
        %v1671 = vmul.f32 %v1415, %v1592
        %v1672 = vmul.f32 %v1416, %v1602
        %v1673 = vmul.f32 %v1417, %v1612
        %v1674 = vmul.f32 %v1418, %v1622
        %v1675 = vmul.f32 %v1419, %v1632
        %v1676 = vmul.f32 %v1420, %v1642
        %v1677 = vmul.f32 %v1421, %v1652
        %v1678 = vmul.f32 %v1422, %v1662
        %v1679 = vld [vmem:[%s2] sm:$0x1]
        %v1681 = vperm.slane %v1679, 0
        %v1683 = vmul.f32 %v1663, %v1681
        %v1684 = vmul.f32 %v1664, %v1681
        %v1685 = vmul.f32 %v1665, %v1681
        %v1686 = vmul.f32 %v1666, %v1681
        %v1687 = vmul.f32 %v1667, %v1681
        %v1688 = vmul.f32 %v1668, %v1681
        %v1689 = vmul.f32 %v1669, %v1681
        %v1690 = vmul.f32 %v1670, %v1681
        %v1691 = vmul.f32 %v1671, %v1681
        %v1692 = vmul.f32 %v1672, %v1681
        %v1693 = vmul.f32 %v1673, %v1681
        %v1694 = vmul.f32 %v1674, %v1681
        %v1695 = vmul.f32 %v1675, %v1681
        %v1696 = vmul.f32 %v1676, %v1681
        %v1697 = vmul.f32 %v1677, %v1681
        %v1698 = vmul.f32 %v1678, %v1681
        %v1699 = vld [vmem:[#allocation11] sm:$0x1]
        %v1701 = vperm.slane %v1699, 0
        %v1703 = vadd.f32 %v1683, %v1701
        %v1704 = vadd.f32 %v1684, %v1701
        %v1705 = vadd.f32 %v1685, %v1701
        %v1706 = vadd.f32 %v1686, %v1701
        %v1707 = vadd.f32 %v1687, %v1701
        %v1708 = vadd.f32 %v1688, %v1701
        %v1709 = vadd.f32 %v1689, %v1701
        %v1710 = vadd.f32 %v1690, %v1701
        %v1711 = vadd.f32 %v1691, %v1701
        %v1712 = vadd.f32 %v1692, %v1701
        %v1713 = vadd.f32 %v1693, %v1701
        %v1714 = vadd.f32 %v1694, %v1701
        %v1715 = vadd.f32 %v1695, %v1701
        %v1716 = vadd.f32 %v1696, %v1701
        %v1717 = vadd.f32 %v1697, %v1701
        %v1718 = vadd.f32 %v1698, %v1701
        %v1719 = vpack.c.bf16 %v1704, %v1703
        %v1720 = vpack.c.bf16 %v1706, %v1705
        %v1721 = vpack.c.bf16 %v1708, %v1707
        %v1722 = vpack.c.bf16 %v1710, %v1709
        %v1723 = vpack.c.bf16 %v1712, %v1711
        %v1724 = vpack.c.bf16 %v1714, %v1713
        %v1725 = vpack.c.bf16 %v1716, %v1715
        %v1726 = vpack.c.bf16 %v1718, %v1717
        %v1727 = vld [vmem:[#allocation15] sm:$0xff]
        %v1728 = vld [vmem:[#allocation15 + $0x8] sm:$0xff]
        %v1729 = vld [vmem:[#allocation15 + $0x10] sm:$0xff]
        %v1730 = vld [vmem:[#allocation15 + $0x18] sm:$0xff]
        %v1731 = vld [vmem:[#allocation15 + $0x20] sm:$0xff]
        %v1732 = vld [vmem:[#allocation15 + $0x28] sm:$0xff]
        %v1733 = vld [vmem:[#allocation15 + $0x30] sm:$0xff]
        %v1734 = vld [vmem:[#allocation15 + $0x38] sm:$0xff]
        %v1735 = vld [vmem:[#allocation15 + $0x40] sm:$0xff]
        %v1736 = vld [vmem:[#allocation15 + $0x48] sm:$0xff]
        %v1737 = vld [vmem:[#allocation15 + $0x50] sm:$0xff]
        %v1738 = vld [vmem:[#allocation15 + $0x58] sm:$0xff]
        %v1739 = vld [vmem:[#allocation15 + $0x60] sm:$0xff]
        %v1740 = vld [vmem:[#allocation15 + $0x68] sm:$0xff]
        %v1741 = vld [vmem:[#allocation15 + $0x70] sm:$0xff]
        %v1742 = vld [vmem:[#allocation15 + $0x78] sm:$0xff]
        %v1743 = vld [vmem:[%s7] sm:$0x3]
        %v1745 = vperm.slane %v1743, 0
        %v1746 = vperm.slane %v1743, 1
        %v1765 = vunpack.c.l.b16 %v1727
        %v1766 = vunpack.c.h.b16 %v1727
        %v1767 = vunpack.c.l.b16 %v1728
        %v1768 = vunpack.c.h.b16 %v1728
        %v1769 = vunpack.c.l.b16 %v1729
        %v1770 = vunpack.c.h.b16 %v1729
        %v1771 = vunpack.c.l.b16 %v1730
        %v1772 = vunpack.c.h.b16 %v1730
        %v1773 = vunpack.c.l.b16 %v1731
        %v1774 = vunpack.c.h.b16 %v1731
        %v1775 = vunpack.c.l.b16 %v1732
        %v1776 = vunpack.c.h.b16 %v1732
        %v1777 = vunpack.c.l.b16 %v1733
        %v1778 = vunpack.c.h.b16 %v1733
        %v1779 = vunpack.c.l.b16 %v1734
        %v1780 = vunpack.c.h.b16 %v1734
        %v1781 = vunpack.c.l.b16 %v1735
        %v1782 = vunpack.c.h.b16 %v1735
        %v1783 = vunpack.c.l.b16 %v1736
        %v1784 = vunpack.c.h.b16 %v1736
        %v1785 = vunpack.c.l.b16 %v1737
        %v1786 = vunpack.c.h.b16 %v1737
        %v1787 = vunpack.c.l.b16 %v1738
        %v1788 = vunpack.c.h.b16 %v1738
        %v1789 = vunpack.c.l.b16 %v1739
        %v1790 = vunpack.c.h.b16 %v1739
        %v1791 = vunpack.c.l.b16 %v1740
        %v1792 = vunpack.c.h.b16 %v1740
        %v1793 = vunpack.c.l.b16 %v1741
        %v1794 = vunpack.c.h.b16 %v1741
        %v1795 = vunpack.c.l.b16 %v1742
        %v1796 = vunpack.c.h.b16 %v1742
        %v1797 = vpack.c.b16 %v1767, %v1765
        %v1798 = vpack.c.b16 %v1768, %v1766
        %v1799 = vpack.c.b16 %v1771, %v1769
        %v1800 = vpack.c.b16 %v1772, %v1770
        %v1801 = vpack.c.b16 %v1775, %v1773
        %v1802 = vpack.c.b16 %v1776, %v1774
        %v1803 = vpack.c.b16 %v1779, %v1777
        %v1804 = vpack.c.b16 %v1780, %v1778
        %v1805 = vpack.c.b16 %v1783, %v1781
        %v1806 = vpack.c.b16 %v1784, %v1782
        %v1807 = vpack.c.b16 %v1787, %v1785
        %v1808 = vpack.c.b16 %v1788, %v1786
        %v1809 = vpack.c.b16 %v1791, %v1789
        %v1810 = vpack.c.b16 %v1792, %v1790
        %v1811 = vpack.c.b16 %v1795, %v1793
        %v1812 = vpack.c.b16 %v1796, %v1794
        %1829 = vmatpush.bf16.msra.mxu0 %v1811
        %1830 = vmatpush.bf16.msra.mxu0 %v1809
        %1831 = vmatpush.bf16.msra.mxu0 %v1807
        %1832 = vmatpush.bf16.msra.mxu0 %v1805
        %1833 = vmatpush.bf16.msra.mxu0 %v1803
        %1834 = vmatpush.bf16.msra.mxu0 %v1801
        %1835 = vmatpush.bf16.msra.mxu0 %v1799
        %1836 = vmatpush.bf16.msra.mxu0 %v1797
        %1837 = vmatmul.bf16.gmra.mxu0 %v1719
        %v1838 = vpop.f32.mrf.mxu0
        %v1839 = vadd.f32 %v1745, %v1838
        %v1840 = vpop.f32.mrf.mxu0
        %v1841 = vadd.f32 %v1745, %v1840
        %1842 = vmatmul.bf16.gmra.mxu0 %v1720
        %v1843 = vpop.f32.mrf.mxu0
        %v1844 = vadd.f32 %v1745, %v1843
        %v1845 = vpop.f32.mrf.mxu0
        %v1846 = vadd.f32 %v1745, %v1845
        %1847 = vmatmul.bf16.gmra.mxu0 %v1721
        %v1848 = vpop.f32.mrf.mxu0
        %v1849 = vadd.f32 %v1745, %v1848
        %v1850 = vpop.f32.mrf.mxu0
        %v1851 = vadd.f32 %v1745, %v1850
        %1852 = vmatmul.bf16.gmra.mxu0 %v1722
        %v1853 = vpop.f32.mrf.mxu0
        %v1854 = vadd.f32 %v1745, %v1853
        %v1855 = vpop.f32.mrf.mxu0
        %v1856 = vadd.f32 %v1745, %v1855
        %1857 = vmatmul.bf16.gmra.mxu0 %v1723
        %v1858 = vpop.f32.mrf.mxu0
        %v1859 = vadd.f32 %v1745, %v1858
        %v1860 = vpop.f32.mrf.mxu0
        %v1861 = vadd.f32 %v1745, %v1860
        %1862 = vmatmul.bf16.gmra.mxu0 %v1724
        %v1863 = vpop.f32.mrf.mxu0
        %v1864 = vadd.f32 %v1745, %v1863
        %v1865 = vpop.f32.mrf.mxu0
        %v1866 = vadd.f32 %v1745, %v1865
        %1867 = vmatmul.bf16.gmra.mxu0 %v1725
        %v1868 = vpop.f32.mrf.mxu0
        %v1869 = vadd.f32 %v1745, %v1868
        %v1870 = vpop.f32.mrf.mxu0
        %v1871 = vadd.f32 %v1745, %v1870
        %1872 = vmatmul.bf16.gmra.mxu0 %v1726
        %v1873 = vpop.f32.mrf.mxu0
        %v1874 = vadd.f32 %v1745, %v1873
        %v1875 = vpop.f32.mrf.mxu0
        %v1876 = vadd.f32 %v1745, %v1875
        %1877 = vdwg.mxu0
        %1878 = vmatpush.bf16.msra.mxu0 %v1812
        %1879 = vmatpush.bf16.msra.mxu0 %v1810
        %1880 = vmatpush.bf16.msra.mxu0 %v1808
        %1881 = vmatpush.bf16.msra.mxu0 %v1806
        %1882 = vmatpush.bf16.msra.mxu0 %v1804
        %1883 = vmatpush.bf16.msra.mxu0 %v1802
        %1884 = vmatpush.bf16.msra.mxu0 %v1800
        %1885 = vmatpush.bf16.msra.mxu0 %v1798
        %1886 = vmatmul.bf16.gmra.mxu0 %v1719
        %v1887 = vpop.f32.mrf.mxu0
        %v1888 = vadd.f32 %v1746, %v1887
        %v1889 = vpop.f32.mrf.mxu0
        %v1890 = vadd.f32 %v1746, %v1889
        %1891 = vmatmul.bf16.gmra.mxu0 %v1720
        %v1892 = vpop.f32.mrf.mxu0
        %v1893 = vadd.f32 %v1746, %v1892
        %v1894 = vpop.f32.mrf.mxu0
        %v1895 = vadd.f32 %v1746, %v1894
        %1896 = vmatmul.bf16.gmra.mxu0 %v1721
        %v1897 = vpop.f32.mrf.mxu0
        %v1898 = vadd.f32 %v1746, %v1897
        %v1899 = vpop.f32.mrf.mxu0
        %v1900 = vadd.f32 %v1746, %v1899
        %1901 = vmatmul.bf16.gmra.mxu0 %v1722
        %v1902 = vpop.f32.mrf.mxu0
        %v1903 = vadd.f32 %v1746, %v1902
        %v1904 = vpop.f32.mrf.mxu0
        %v1905 = vadd.f32 %v1746, %v1904
        %1906 = vmatmul.bf16.gmra.mxu0 %v1723
        %v1907 = vpop.f32.mrf.mxu0
        %v1908 = vadd.f32 %v1746, %v1907
        %v1909 = vpop.f32.mrf.mxu0
        %v1910 = vadd.f32 %v1746, %v1909
        %1911 = vmatmul.bf16.gmra.mxu0 %v1724
        %v1912 = vpop.f32.mrf.mxu0
        %v1913 = vadd.f32 %v1746, %v1912
        %v1914 = vpop.f32.mrf.mxu0
        %v1915 = vadd.f32 %v1746, %v1914
        %1916 = vmatmul.bf16.gmra.mxu0 %v1725
        %v1917 = vpop.f32.mrf.mxu0
        %v1918 = vadd.f32 %v1746, %v1917
        %v1919 = vpop.f32.mrf.mxu0
        %v1920 = vadd.f32 %v1746, %v1919
        %1921 = vmatmul.bf16.gmra.mxu0 %v1726
        %v1922 = vpop.f32.mrf.mxu0
        %v1923 = vadd.f32 %v1746, %v1922
        %v1924 = vpop.f32.mrf.mxu0
        %v1925 = vadd.f32 %v1746, %v1924
        %1926 = vdwg.mxu0
        %v1927 = vpack.c.bf16 %v1841, %v1839
        %v1928 = vpack.c.bf16 %v1846, %v1844
        %v1929 = vpack.c.bf16 %v1851, %v1849
        %v1930 = vpack.c.bf16 %v1856, %v1854
        %v1931 = vpack.c.bf16 %v1861, %v1859
        %v1932 = vpack.c.bf16 %v1866, %v1864
        %v1933 = vpack.c.bf16 %v1871, %v1869
        %v1934 = vpack.c.bf16 %v1876, %v1874
        %v1935 = vpack.c.bf16 %v1890, %v1888
        %v1936 = vpack.c.bf16 %v1895, %v1893
        %v1937 = vpack.c.bf16 %v1900, %v1898
        %v1938 = vpack.c.bf16 %v1905, %v1903
        %v1939 = vpack.c.bf16 %v1910, %v1908
        %v1940 = vpack.c.bf16 %v1915, %v1913
        %v1941 = vpack.c.bf16 %v1920, %v1918
        %v1942 = vpack.c.bf16 %v1925, %v1923
        %v1943 = vld [vmem:[#allocation2] sm:$0xf]
        %v1944 = vld [vmem:[#allocation2 + $0x4] sm:$0xf]
        %v1945 = vld [vmem:[#allocation2 + $0x8] sm:$0xf]
        %v1946 = vld [vmem:[#allocation2 + $0xc] sm:$0xf]
        %v1947 = vld [vmem:[#allocation2 + $0x10] sm:$0xf]
        %v1948 = vld [vmem:[#allocation2 + $0x14] sm:$0xf]
        %v1949 = vld [vmem:[#allocation2 + $0x18] sm:$0xf]
        %v1950 = vld [vmem:[#allocation2 + $0x1c] sm:$0xf]
        %v1951 = vld [vmem:[#allocation2 + $0x20] sm:$0xf]
        %v1952 = vld [vmem:[#allocation2 + $0x24] sm:$0xf]
        %v1953 = vld [vmem:[#allocation2 + $0x28] sm:$0xf]
        %v1954 = vld [vmem:[#allocation2 + $0x2c] sm:$0xf]
        %v1955 = vld [vmem:[#allocation2 + $0x30] sm:$0xf]
        %v1956 = vld [vmem:[#allocation2 + $0x34] sm:$0xf]
        %v1957 = vld [vmem:[#allocation2 + $0x38] sm:$0xf]
        %v1958 = vld [vmem:[#allocation2 + $0x3c] sm:$0xf]
        %v1975 = vunpack.c.l.b16 %v1943
        %v1976 = vunpack.c.l.b16 %v1944
        %v1977 = vunpack.c.l.b16 %v1945
        %v1978 = vunpack.c.l.b16 %v1946
        %v1979 = vunpack.c.l.b16 %v1947
        %v1980 = vunpack.c.l.b16 %v1948
        %v1981 = vunpack.c.l.b16 %v1949
        %v1982 = vunpack.c.l.b16 %v1950
        %v1983 = vunpack.c.l.b16 %v1951
        %v1984 = vunpack.c.l.b16 %v1952
        %v1985 = vunpack.c.l.b16 %v1953
        %v1986 = vunpack.c.l.b16 %v1954
        %v1987 = vunpack.c.l.b16 %v1955
        %v1988 = vunpack.c.l.b16 %v1956
        %v1989 = vunpack.c.l.b16 %v1957
        %v1990 = vunpack.c.l.b16 %v1958
        %v1991 = vpack.c.b16 %v1976, %v1975
        %v1992 = vpack.c.b16 %v1978, %v1977
        %v1993 = vpack.c.b16 %v1980, %v1979
        %v1994 = vpack.c.b16 %v1982, %v1981
        %v1995 = vpack.c.b16 %v1984, %v1983
        %v1996 = vpack.c.b16 %v1986, %v1985
        %v1997 = vpack.c.b16 %v1988, %v1987
        %v1998 = vpack.c.b16 %v1990, %v1989
        %2007 = vmatpush.bf16.xpose.msra.mxu0 %v1934
        %2008 = vmatpush.bf16.xpose.msra.mxu0 %v1933
        %2009 = vmatpush.bf16.xpose.msra.mxu0 %v1932
        %2010 = vmatpush.bf16.xpose.msra.mxu0 %v1931
        %2011 = vmatpush.bf16.xpose.msra.mxu0 %v1930
        %2012 = vmatpush.bf16.xpose.msra.mxu0 %v1929
        %2013 = vmatpush.bf16.xpose.msra.mxu0 %v1928
        %2014 = vmatpush.bf16.xpose.msra.mxu0 %v1927
        %2015 = vmatmul.bf16.gmra.mxu0 %v1991
        %v2016 = vpop.f32.mrf.mxu0
        %v2017 = vadd.f32 0.0, %v2016
        %v2018 = vpop.f32.mrf.mxu0
        %v2019 = vadd.f32 0.0, %v2018
        %2020 = vmatmul.bf16.gmra.mxu0 %v1992
        %v2021 = vpop.f32.mrf.mxu0
        %v2022 = vadd.f32 0.0, %v2021
        %v2023 = vpop.f32.mrf.mxu0
        %v2024 = vadd.f32 0.0, %v2023
        %2025 = vmatmul.bf16.gmra.mxu0 %v1993
        %v2026 = vpop.f32.mrf.mxu0
        %v2027 = vadd.f32 0.0, %v2026
        %v2028 = vpop.f32.mrf.mxu0
        %v2029 = vadd.f32 0.0, %v2028
        %2030 = vmatmul.bf16.gmra.mxu0 %v1994
        %v2031 = vpop.f32.mrf.mxu0
        %v2032 = vadd.f32 0.0, %v2031
        %v2033 = vpop.f32.mrf.mxu0
        %v2034 = vadd.f32 0.0, %v2033
        %2035 = vmatmul.bf16.gmra.mxu0 %v1995
        %v2036 = vpop.f32.mrf.mxu0
        %v2037 = vadd.f32 0.0, %v2036
        %v2038 = vpop.f32.mrf.mxu0
        %v2039 = vadd.f32 0.0, %v2038
        %2040 = vmatmul.bf16.gmra.mxu0 %v1996
        %v2041 = vpop.f32.mrf.mxu0
        %v2042 = vadd.f32 0.0, %v2041
        %v2043 = vpop.f32.mrf.mxu0
        %v2044 = vadd.f32 0.0, %v2043
        %2045 = vmatmul.bf16.gmra.mxu0 %v1997
        %v2046 = vpop.f32.mrf.mxu0
        %v2047 = vadd.f32 0.0, %v2046
        %v2048 = vpop.f32.mrf.mxu0
        %v2049 = vadd.f32 0.0, %v2048
        %2050 = vmatmul.bf16.gmra.mxu0 %v1998
        %v2051 = vpop.f32.mrf.mxu0
        %v2052 = vadd.f32 0.0, %v2051
        %v2053 = vpop.f32.mrf.mxu0
        %v2054 = vadd.f32 0.0, %v2053
        %2055 = vdwg.mxu0
        %v2056 = vld [vmem:[#allocation3] sm:$0xff]
        %v2057 = vld [vmem:[#allocation3 + $0x8] sm:$0xff]
        %v2058 = vld [vmem:[#allocation3 + $0x10] sm:$0xff]
        %v2059 = vld [vmem:[#allocation3 + $0x18] sm:$0xff]
        %v2060 = vld [vmem:[#allocation3 + $0x20] sm:$0xff]
        %v2061 = vld [vmem:[#allocation3 + $0x28] sm:$0xff]
        %v2062 = vld [vmem:[#allocation3 + $0x30] sm:$0xff]
        %v2063 = vld [vmem:[#allocation3 + $0x38] sm:$0xff]
        %v2064 = vld [vmem:[#allocation3 + $0x40] sm:$0xff]
        %v2065 = vld [vmem:[#allocation3 + $0x48] sm:$0xff]
        %v2066 = vld [vmem:[#allocation3 + $0x50] sm:$0xff]
        %v2067 = vld [vmem:[#allocation3 + $0x58] sm:$0xff]
        %v2068 = vld [vmem:[#allocation3 + $0x60] sm:$0xff]
        %v2069 = vld [vmem:[#allocation3 + $0x68] sm:$0xff]
        %v2070 = vld [vmem:[#allocation3 + $0x70] sm:$0xff]
        %v2071 = vld [vmem:[#allocation3 + $0x78] sm:$0xff]
        %2072 = vmax.xlane.f32.xlu0 %v2017
        %v2073 = vpop.xlane.xlu0 %2072
        %2074 = vmax.xlane.f32.xlu0 %v2019
        %v2075 = vpop.xlane.xlu0 %2074
        %2076 = vmax.xlane.f32.xlu0 %v2022
        %v2077 = vpop.xlane.xlu0 %2076
        %2078 = vmax.xlane.f32.xlu0 %v2024
        %v2079 = vpop.xlane.xlu0 %2078
        %2080 = vmax.xlane.f32.xlu0 %v2027
        %v2081 = vpop.xlane.xlu0 %2080
        %2082 = vmax.xlane.f32.xlu0 %v2029
        %v2083 = vpop.xlane.xlu0 %2082
        %2084 = vmax.xlane.f32.xlu0 %v2032
        %v2085 = vpop.xlane.xlu0 %2084
        %2086 = vmax.xlane.f32.xlu0 %v2034
        %v2087 = vpop.xlane.xlu0 %2086
        %2088 = vmax.xlane.f32.xlu0 %v2037
        %v2089 = vpop.xlane.xlu0 %2088
        %2090 = vmax.xlane.f32.xlu0 %v2039
        %v2091 = vpop.xlane.xlu0 %2090
        %2092 = vmax.xlane.f32.xlu0 %v2042
        %v2093 = vpop.xlane.xlu0 %2092
        %2094 = vmax.xlane.f32.xlu0 %v2044
        %v2095 = vpop.xlane.xlu0 %2094
        %2096 = vmax.xlane.f32.xlu0 %v2047
        %v2097 = vpop.xlane.xlu0 %2096
        %2098 = vmax.xlane.f32.xlu0 %v2049
        %v2099 = vpop.xlane.xlu0 %2098
        %2100 = vmax.xlane.f32.xlu0 %v2052
        %v2101 = vpop.xlane.xlu0 %2100
        %2102 = vmax.xlane.f32.xlu0 %v2054
        %v2103 = vpop.xlane.xlu0 %2102
        %v2104 = vmax.f32 %v2056, %v2073
        %v2105 = vmax.f32 %v2057, %v2075
        %v2106 = vmax.f32 %v2058, %v2077
        %v2107 = vmax.f32 %v2059, %v2079
        %v2108 = vmax.f32 %v2060, %v2081
        %v2109 = vmax.f32 %v2061, %v2083
        %v2110 = vmax.f32 %v2062, %v2085
        %v2111 = vmax.f32 %v2063, %v2087
        %v2112 = vmax.f32 %v2064, %v2089
        %v2113 = vmax.f32 %v2065, %v2091
        %v2114 = vmax.f32 %v2066, %v2093
        %v2115 = vmax.f32 %v2067, %v2095
        %v2116 = vmax.f32 %v2068, %v2097
        %v2117 = vmax.f32 %v2069, %v2099
        %v2118 = vmax.f32 %v2070, %v2101
        %v2119 = vmax.f32 %v2071, %v2103
        %v2120 = vsub.f32 %v2056, %v2104
        %v2121 = vsub.f32 %v2057, %v2105
        %v2122 = vsub.f32 %v2058, %v2106
        %v2123 = vsub.f32 %v2059, %v2107
        %v2124 = vsub.f32 %v2060, %v2108
        %v2125 = vsub.f32 %v2061, %v2109
        %v2126 = vsub.f32 %v2062, %v2110
        %v2127 = vsub.f32 %v2063, %v2111
        %v2128 = vsub.f32 %v2064, %v2112
        %v2129 = vsub.f32 %v2065, %v2113
        %v2130 = vsub.f32 %v2066, %v2114
        %v2131 = vsub.f32 %v2067, %v2115
        %v2132 = vsub.f32 %v2068, %v2116
        %v2133 = vsub.f32 %v2069, %v2117
        %v2134 = vsub.f32 %v2070, %v2118
        %v2135 = vsub.f32 %v2071, %v2119
        %v2136 = vmul.f32 %v2120, 1.442695
        %v2137 = vpow.pop %v2136
        %v2138 = vmul.f32 %v2121, 1.442695
        %v2139 = vpow.pop %v2138
        %v2140 = vmul.f32 %v2122, 1.442695
        %v2141 = vpow.pop %v2140
        %v2142 = vmul.f32 %v2123, 1.442695
        %v2143 = vpow.pop %v2142
        %v2144 = vmul.f32 %v2124, 1.442695
        %v2145 = vpow.pop %v2144
        %v2146 = vmul.f32 %v2125, 1.442695
        %v2147 = vpow.pop %v2146
        %v2148 = vmul.f32 %v2126, 1.442695
        %v2149 = vpow.pop %v2148
        %v2150 = vmul.f32 %v2127, 1.442695
        %v2151 = vpow.pop %v2150
        %v2152 = vmul.f32 %v2128, 1.442695
        %v2153 = vpow.pop %v2152
        %v2154 = vmul.f32 %v2129, 1.442695
        %v2155 = vpow.pop %v2154
        %v2156 = vmul.f32 %v2130, 1.442695
        %v2157 = vpow.pop %v2156
        %v2158 = vmul.f32 %v2131, 1.442695
        %v2159 = vpow.pop %v2158
        %v2160 = vmul.f32 %v2132, 1.442695
        %v2161 = vpow.pop %v2160
        %v2162 = vmul.f32 %v2133, 1.442695
        %v2163 = vpow.pop %v2162
        %v2164 = vmul.f32 %v2134, 1.442695
        %v2165 = vpow.pop %v2164
        %v2166 = vmul.f32 %v2135, 1.442695
        %v2167 = vpow.pop %v2166
        %2169 = vset.pattern.permute.xlu0 0
        %2170 = vperm.xlu0 %2169, %v2104
        %v2171 = vpop.permute.xlu0 %2170
        %2174 = vset.pattern.permute.xlu0 0
        %2175 = vperm.xlu0 %2174, %v2105
        %v2176 = vpop.permute.xlu0 %2175
        %2179 = vset.pattern.permute.xlu0 0
        %2180 = vperm.xlu0 %2179, %v2106
        %v2181 = vpop.permute.xlu0 %2180
        %2184 = vset.pattern.permute.xlu0 0
        %2185 = vperm.xlu0 %2184, %v2107
        %v2186 = vpop.permute.xlu0 %2185
        %2189 = vset.pattern.permute.xlu0 0
        %2190 = vperm.xlu0 %2189, %v2108
        %v2191 = vpop.permute.xlu0 %2190
        %2194 = vset.pattern.permute.xlu0 0
        %2195 = vperm.xlu0 %2194, %v2109
        %v2196 = vpop.permute.xlu0 %2195
        %2199 = vset.pattern.permute.xlu0 0
        %2200 = vperm.xlu0 %2199, %v2110
        %v2201 = vpop.permute.xlu0 %2200
        %2204 = vset.pattern.permute.xlu0 0
        %2205 = vperm.xlu0 %2204, %v2111
        %v2206 = vpop.permute.xlu0 %2205
        %2209 = vset.pattern.permute.xlu0 0
        %2210 = vperm.xlu0 %2209, %v2112
        %v2211 = vpop.permute.xlu0 %2210
        %2214 = vset.pattern.permute.xlu0 0
        %2215 = vperm.xlu0 %2214, %v2113
        %v2216 = vpop.permute.xlu0 %2215
        %2219 = vset.pattern.permute.xlu0 0
        %2220 = vperm.xlu0 %2219, %v2114
        %v2221 = vpop.permute.xlu0 %2220
        %2224 = vset.pattern.permute.xlu0 0
        %2225 = vperm.xlu0 %2224, %v2115
        %v2226 = vpop.permute.xlu0 %2225
        %2229 = vset.pattern.permute.xlu0 0
        %2230 = vperm.xlu0 %2229, %v2116
        %v2231 = vpop.permute.xlu0 %2230
        %2234 = vset.pattern.permute.xlu0 0
        %2235 = vperm.xlu0 %2234, %v2117
        %v2236 = vpop.permute.xlu0 %2235
        %2239 = vset.pattern.permute.xlu0 0
        %2240 = vperm.xlu0 %2239, %v2118
        %v2241 = vpop.permute.xlu0 %2240
        %2244 = vset.pattern.permute.xlu0 0
        %2245 = vperm.xlu0 %2244, %v2119
        %v2246 = vpop.permute.xlu0 %2245
        %v2248 = vsub.f32 %v2017, %v2171
        %v2249 = vsub.f32 %v2019, %v2176
        %v2250 = vsub.f32 %v2022, %v2181
        %v2251 = vsub.f32 %v2024, %v2186
        %v2252 = vsub.f32 %v2027, %v2191
        %v2253 = vsub.f32 %v2029, %v2196
        %v2254 = vsub.f32 %v2032, %v2201
        %v2255 = vsub.f32 %v2034, %v2206
        %v2256 = vsub.f32 %v2037, %v2211
        %v2257 = vsub.f32 %v2039, %v2216
        %v2258 = vsub.f32 %v2042, %v2221
        %v2259 = vsub.f32 %v2044, %v2226
        %v2260 = vsub.f32 %v2047, %v2231
        %v2261 = vsub.f32 %v2049, %v2236
        %v2262 = vsub.f32 %v2052, %v2241
        %v2263 = vsub.f32 %v2054, %v2246
        %v2264 = vmul.f32 %v2248, 1.442695
        %v2265 = vpow.pop %v2264
        %v2266 = vmul.f32 %v2249, 1.442695
        %v2267 = vpow.pop %v2266
        %v2268 = vmul.f32 %v2250, 1.442695
        %v2269 = vpow.pop %v2268
        %v2270 = vmul.f32 %v2251, 1.442695
        %v2271 = vpow.pop %v2270
        %v2272 = vmul.f32 %v2252, 1.442695
        %v2273 = vpow.pop %v2272
        %v2274 = vmul.f32 %v2253, 1.442695
        %v2275 = vpow.pop %v2274
        %v2276 = vmul.f32 %v2254, 1.442695
        %v2277 = vpow.pop %v2276
        %v2278 = vmul.f32 %v2255, 1.442695
        %v2279 = vpow.pop %v2278
        %v2280 = vmul.f32 %v2256, 1.442695
        %v2281 = vpow.pop %v2280
        %v2282 = vmul.f32 %v2257, 1.442695
        %v2283 = vpow.pop %v2282
        %v2284 = vmul.f32 %v2258, 1.442695
        %v2285 = vpow.pop %v2284
        %v2286 = vmul.f32 %v2259, 1.442695
        %v2287 = vpow.pop %v2286
        %v2288 = vmul.f32 %v2260, 1.442695
        %v2289 = vpow.pop %v2288
        %v2290 = vmul.f32 %v2261, 1.442695
        %v2291 = vpow.pop %v2290
        %v2292 = vmul.f32 %v2262, 1.442695
        %v2293 = vpow.pop %v2292
        %v2294 = vmul.f32 %v2263, 1.442695
        %v2295 = vpow.pop %v2294
        %v2296 = vld [vmem:[#allocation4] sm:$0xff]
        %v2297 = vld [vmem:[#allocation4 + $0x8] sm:$0xff]
        %v2298 = vld [vmem:[#allocation4 + $0x10] sm:$0xff]
        %v2299 = vld [vmem:[#allocation4 + $0x18] sm:$0xff]
        %v2300 = vld [vmem:[#allocation4 + $0x20] sm:$0xff]
        %v2301 = vld [vmem:[#allocation4 + $0x28] sm:$0xff]
        %v2302 = vld [vmem:[#allocation4 + $0x30] sm:$0xff]
        %v2303 = vld [vmem:[#allocation4 + $0x38] sm:$0xff]
        %v2304 = vld [vmem:[#allocation4 + $0x40] sm:$0xff]
        %v2305 = vld [vmem:[#allocation4 + $0x48] sm:$0xff]
        %v2306 = vld [vmem:[#allocation4 + $0x50] sm:$0xff]
        %v2307 = vld [vmem:[#allocation4 + $0x58] sm:$0xff]
        %v2308 = vld [vmem:[#allocation4 + $0x60] sm:$0xff]
        %v2309 = vld [vmem:[#allocation4 + $0x68] sm:$0xff]
        %v2310 = vld [vmem:[#allocation4 + $0x70] sm:$0xff]
        %v2311 = vld [vmem:[#allocation4 + $0x78] sm:$0xff]
        %v2312 = vmul.f32 %v2137, %v2296
        %v2313 = vmul.f32 %v2139, %v2297
        %v2314 = vmul.f32 %v2141, %v2298
        %v2315 = vmul.f32 %v2143, %v2299
        %v2316 = vmul.f32 %v2145, %v2300
        %v2317 = vmul.f32 %v2147, %v2301
        %v2318 = vmul.f32 %v2149, %v2302
        %v2319 = vmul.f32 %v2151, %v2303
        %v2320 = vmul.f32 %v2153, %v2304
        %v2321 = vmul.f32 %v2155, %v2305
        %v2322 = vmul.f32 %v2157, %v2306
        %v2323 = vmul.f32 %v2159, %v2307
        %v2324 = vmul.f32 %v2161, %v2308
        %v2325 = vmul.f32 %v2163, %v2309
        %v2326 = vmul.f32 %v2165, %v2310
        %v2327 = vmul.f32 %v2167, %v2311
        %2328 = vadd.xlane.f32.xlu0 %v2265
        %v2329 = vpop.xlane.xlu0 %2328
        %2330 = vadd.xlane.f32.xlu0 %v2267
        %v2331 = vpop.xlane.xlu0 %2330
        %2332 = vadd.xlane.f32.xlu0 %v2269
        %v2333 = vpop.xlane.xlu0 %2332
        %2334 = vadd.xlane.f32.xlu0 %v2271
        %v2335 = vpop.xlane.xlu0 %2334
        %2336 = vadd.xlane.f32.xlu0 %v2273
        %v2337 = vpop.xlane.xlu0 %2336
        %2338 = vadd.xlane.f32.xlu0 %v2275
        %v2339 = vpop.xlane.xlu0 %2338
        %2340 = vadd.xlane.f32.xlu0 %v2277
        %v2341 = vpop.xlane.xlu0 %2340
        %2342 = vadd.xlane.f32.xlu0 %v2279
        %v2343 = vpop.xlane.xlu0 %2342
        %2344 = vadd.xlane.f32.xlu0 %v2281
        %v2345 = vpop.xlane.xlu0 %2344
        %2346 = vadd.xlane.f32.xlu0 %v2283
        %v2347 = vpop.xlane.xlu0 %2346
        %2348 = vadd.xlane.f32.xlu0 %v2285
        %v2349 = vpop.xlane.xlu0 %2348
        %2350 = vadd.xlane.f32.xlu0 %v2287
        %v2351 = vpop.xlane.xlu0 %2350
        %2352 = vadd.xlane.f32.xlu0 %v2289
        %v2353 = vpop.xlane.xlu0 %2352
        %2354 = vadd.xlane.f32.xlu0 %v2291
        %v2355 = vpop.xlane.xlu0 %2354
        %2356 = vadd.xlane.f32.xlu0 %v2293
        %v2357 = vpop.xlane.xlu0 %2356
        %2358 = vadd.xlane.f32.xlu0 %v2295
        %v2359 = vpop.xlane.xlu0 %2358
        %v2360 = vadd.f32 %v2312, %v2329
        %v2361 = vadd.f32 %v2313, %v2331
        %v2362 = vadd.f32 %v2314, %v2333
        %v2363 = vadd.f32 %v2315, %v2335
        %v2364 = vadd.f32 %v2316, %v2337
        %v2365 = vadd.f32 %v2317, %v2339
        %v2366 = vadd.f32 %v2318, %v2341
        %v2367 = vadd.f32 %v2319, %v2343
        %v2368 = vadd.f32 %v2320, %v2345
        %v2369 = vadd.f32 %v2321, %v2347
        %v2370 = vadd.f32 %v2322, %v2349
        %v2371 = vadd.f32 %v2323, %v2351
        %v2372 = vadd.f32 %v2324, %v2353
        %v2373 = vadd.f32 %v2325, %v2355
        %v2374 = vadd.f32 %v2326, %v2357
        %v2375 = vadd.f32 %v2327, %v2359
        %vm2376 = vcmask 7168
        %2377 = vst.msk [vmem:[#allocation4] sm:$0xff] %vm2376, %v2360
        %2378 = vst.msk [vmem:[#allocation4 + $0x8] sm:$0xff] %vm2376, %v2361
        %2379 = vst.msk [vmem:[#allocation4 + $0x10] sm:$0xff] %vm2376, %v2362
        %2380 = vst.msk [vmem:[#allocation4 + $0x18] sm:$0xff] %vm2376, %v2363
        %2381 = vst.msk [vmem:[#allocation4 + $0x20] sm:$0xff] %vm2376, %v2364
        %2382 = vst.msk [vmem:[#allocation4 + $0x28] sm:$0xff] %vm2376, %v2365
        %2383 = vst.msk [vmem:[#allocation4 + $0x30] sm:$0xff] %vm2376, %v2366
        %2384 = vst.msk [vmem:[#allocation4 + $0x38] sm:$0xff] %vm2376, %v2367
        %2385 = vst.msk [vmem:[#allocation4 + $0x40] sm:$0xff] %vm2376, %v2368
        %2386 = vst.msk [vmem:[#allocation4 + $0x48] sm:$0xff] %vm2376, %v2369
        %2387 = vst.msk [vmem:[#allocation4 + $0x50] sm:$0xff] %vm2376, %v2370
        %2388 = vst.msk [vmem:[#allocation4 + $0x58] sm:$0xff] %vm2376, %v2371
        %2389 = vst.msk [vmem:[#allocation4 + $0x60] sm:$0xff] %vm2376, %v2372
        %2390 = vst.msk [vmem:[#allocation4 + $0x68] sm:$0xff] %vm2376, %v2373
        %2391 = vst.msk [vmem:[#allocation4 + $0x70] sm:$0xff] %vm2376, %v2374
        %2392 = vst.msk [vmem:[#allocation4 + $0x78] sm:$0xff] %vm2376, %v2375
        %v2393 = vld [vmem:[#allocation5] sm:$0xff]
        %v2394 = vld [vmem:[#allocation5 + $0x8] sm:$0xff]
        %v2395 = vld [vmem:[#allocation5 + $0x10] sm:$0xff]
        %v2396 = vld [vmem:[#allocation5 + $0x18] sm:$0xff]
        %v2397 = vld [vmem:[#allocation5 + $0x20] sm:$0xff]
        %v2398 = vld [vmem:[#allocation5 + $0x28] sm:$0xff]
        %v2399 = vld [vmem:[#allocation5 + $0x30] sm:$0xff]
        %v2400 = vld [vmem:[#allocation5 + $0x38] sm:$0xff]
        %v2401 = vld [vmem:[#allocation5 + $0x40] sm:$0xff]
        %v2402 = vld [vmem:[#allocation5 + $0x48] sm:$0xff]
        %v2403 = vld [vmem:[#allocation5 + $0x50] sm:$0xff]
        %v2404 = vld [vmem:[#allocation5 + $0x58] sm:$0xff]
        %v2405 = vld [vmem:[#allocation5 + $0x60] sm:$0xff]
        %v2406 = vld [vmem:[#allocation5 + $0x68] sm:$0xff]
        %v2407 = vld [vmem:[#allocation5 + $0x70] sm:$0xff]
        %v2408 = vld [vmem:[#allocation5 + $0x78] sm:$0xff]
        %2410 = vset.pattern.permute.xlu0 0
        %2411 = vperm.xlu0 %2410, %v2137
        %v2412 = vpop.permute.xlu0 %2411
        %2415 = vset.pattern.permute.xlu0 0
        %2416 = vperm.xlu0 %2415, %v2139
        %v2417 = vpop.permute.xlu0 %2416
        %2420 = vset.pattern.permute.xlu0 0
        %2421 = vperm.xlu0 %2420, %v2141
        %v2422 = vpop.permute.xlu0 %2421
        %2425 = vset.pattern.permute.xlu0 0
        %2426 = vperm.xlu0 %2425, %v2143
        %v2427 = vpop.permute.xlu0 %2426
        %2430 = vset.pattern.permute.xlu0 0
        %2431 = vperm.xlu0 %2430, %v2145
        %v2432 = vpop.permute.xlu0 %2431
        %2435 = vset.pattern.permute.xlu0 0
        %2436 = vperm.xlu0 %2435, %v2147
        %v2437 = vpop.permute.xlu0 %2436
        %2440 = vset.pattern.permute.xlu0 0
        %2441 = vperm.xlu0 %2440, %v2149
        %v2442 = vpop.permute.xlu0 %2441
        %2445 = vset.pattern.permute.xlu0 0
        %2446 = vperm.xlu0 %2445, %v2151
        %v2447 = vpop.permute.xlu0 %2446
        %2450 = vset.pattern.permute.xlu0 0
        %2451 = vperm.xlu0 %2450, %v2153
        %v2452 = vpop.permute.xlu0 %2451
        %2455 = vset.pattern.permute.xlu0 0
        %2456 = vperm.xlu0 %2455, %v2155
        %v2457 = vpop.permute.xlu0 %2456
        %2460 = vset.pattern.permute.xlu0 0
        %2461 = vperm.xlu0 %2460, %v2157
        %v2462 = vpop.permute.xlu0 %2461
        %2465 = vset.pattern.permute.xlu0 0
        %2466 = vperm.xlu0 %2465, %v2159
        %v2467 = vpop.permute.xlu0 %2466
        %2470 = vset.pattern.permute.xlu0 0
        %2471 = vperm.xlu0 %2470, %v2161
        %v2472 = vpop.permute.xlu0 %2471
        %2475 = vset.pattern.permute.xlu0 0
        %2476 = vperm.xlu0 %2475, %v2163
        %v2477 = vpop.permute.xlu0 %2476
        %2480 = vset.pattern.permute.xlu0 0
        %2481 = vperm.xlu0 %2480, %v2165
        %v2482 = vpop.permute.xlu0 %2481
        %2485 = vset.pattern.permute.xlu0 0
        %2486 = vperm.xlu0 %2485, %v2167
        %v2487 = vpop.permute.xlu0 %2486
        %v2489 = vmul.f32 %v2412, %v2393
        %v2490 = vmul.f32 %v2417, %v2394
        %v2491 = vmul.f32 %v2422, %v2395
        %v2492 = vmul.f32 %v2427, %v2396
        %v2493 = vmul.f32 %v2432, %v2397
        %v2494 = vmul.f32 %v2437, %v2398
        %v2495 = vmul.f32 %v2442, %v2399
        %v2496 = vmul.f32 %v2447, %v2400
        %v2497 = vmul.f32 %v2452, %v2401
        %v2498 = vmul.f32 %v2457, %v2402
        %v2499 = vmul.f32 %v2462, %v2403
        %v2500 = vmul.f32 %v2467, %v2404
        %v2501 = vmul.f32 %v2472, %v2405
        %v2502 = vmul.f32 %v2477, %v2406
        %v2503 = vmul.f32 %v2482, %v2407
        %v2504 = vmul.f32 %v2487, %v2408
        %v2505 = vpack.c.bf16 %v2267, %v2265
        %v2506 = vpack.c.bf16 %v2271, %v2269
        %v2507 = vpack.c.bf16 %v2275, %v2273
        %v2508 = vpack.c.bf16 %v2279, %v2277
        %v2509 = vpack.c.bf16 %v2283, %v2281
        %v2510 = vpack.c.bf16 %v2287, %v2285
        %v2511 = vpack.c.bf16 %v2291, %v2289
        %v2512 = vpack.c.bf16 %v2295, %v2293
        %2513 = vmatpush.bf16.msra.mxu0 %v1942
        %2514 = vmatpush.bf16.msra.mxu0 %v1941
        %2515 = vmatpush.bf16.msra.mxu0 %v1940
        %2516 = vmatpush.bf16.msra.mxu0 %v1939
        %2517 = vmatpush.bf16.msra.mxu0 %v1938
        %2518 = vmatpush.bf16.msra.mxu0 %v1937
        %2519 = vmatpush.bf16.msra.mxu0 %v1936
        %2520 = vmatpush.bf16.msra.mxu0 %v1935
        %2521 = vmatmul.bf16.gmra.mxu0 %v2505
        %v2522 = vpop.f32.mrf.mxu0
        %v2523 = vadd.f32 0.0, %v2522
        %v2524 = vpop.f32.mrf.mxu0
        %v2525 = vadd.f32 0.0, %v2524
        %2526 = vmatmul.bf16.gmra.mxu0 %v2506
        %v2527 = vpop.f32.mrf.mxu0
        %v2528 = vadd.f32 0.0, %v2527
        %v2529 = vpop.f32.mrf.mxu0
        %v2530 = vadd.f32 0.0, %v2529
        %2531 = vmatmul.bf16.gmra.mxu0 %v2507
        %v2532 = vpop.f32.mrf.mxu0
        %v2533 = vadd.f32 0.0, %v2532
        %v2534 = vpop.f32.mrf.mxu0
        %v2535 = vadd.f32 0.0, %v2534
        %2536 = vmatmul.bf16.gmra.mxu0 %v2508
        %v2537 = vpop.f32.mrf.mxu0
        %v2538 = vadd.f32 0.0, %v2537
        %v2539 = vpop.f32.mrf.mxu0
        %v2540 = vadd.f32 0.0, %v2539
        %2541 = vmatmul.bf16.gmra.mxu0 %v2509
        %v2542 = vpop.f32.mrf.mxu0
        %v2543 = vadd.f32 0.0, %v2542
        %v2544 = vpop.f32.mrf.mxu0
        %v2545 = vadd.f32 0.0, %v2544
        %2546 = vmatmul.bf16.gmra.mxu0 %v2510
        %v2547 = vpop.f32.mrf.mxu0
        %v2548 = vadd.f32 0.0, %v2547
        %v2549 = vpop.f32.mrf.mxu0
        %v2550 = vadd.f32 0.0, %v2549
        %2551 = vmatmul.bf16.gmra.mxu0 %v2511
        %v2552 = vpop.f32.mrf.mxu0
        %v2553 = vadd.f32 0.0, %v2552
        %v2554 = vpop.f32.mrf.mxu0
        %v2555 = vadd.f32 0.0, %v2554
        %2556 = vmatmul.bf16.gmra.mxu0 %v2512
        %v2557 = vpop.f32.mrf.mxu0
        %v2558 = vadd.f32 0.0, %v2557
        %v2559 = vpop.f32.mrf.mxu0
        %v2560 = vadd.f32 0.0, %v2559
        %2561 = vdwg.mxu0
        %v2562 = vadd.f32 %v2489, %v2523
        %v2563 = vadd.f32 %v2490, %v2525
        %v2564 = vadd.f32 %v2491, %v2528
        %v2565 = vadd.f32 %v2492, %v2530
        %v2566 = vadd.f32 %v2493, %v2533
        %v2567 = vadd.f32 %v2494, %v2535
        %v2568 = vadd.f32 %v2495, %v2538
        %v2569 = vadd.f32 %v2496, %v2540
        %v2570 = vadd.f32 %v2497, %v2543
        %v2571 = vadd.f32 %v2498, %v2545
        %v2572 = vadd.f32 %v2499, %v2548
        %v2573 = vadd.f32 %v2500, %v2550
        %v2574 = vadd.f32 %v2501, %v2553
        %v2575 = vadd.f32 %v2502, %v2555
        %v2576 = vadd.f32 %v2503, %v2558
        %v2577 = vadd.f32 %v2504, %v2560
        %2578 = vst [vmem:[#allocation5] sm:$0xff] %v2562
        %2579 = vst [vmem:[#allocation5 + $0x8] sm:$0xff] %v2563
        %2580 = vst [vmem:[#allocation5 + $0x10] sm:$0xff] %v2564
        %2581 = vst [vmem:[#allocation5 + $0x18] sm:$0xff] %v2565
        %2582 = vst [vmem:[#allocation5 + $0x20] sm:$0xff] %v2566
        %2583 = vst [vmem:[#allocation5 + $0x28] sm:$0xff] %v2567
        %2584 = vst [vmem:[#allocation5 + $0x30] sm:$0xff] %v2568
        %2585 = vst [vmem:[#allocation5 + $0x38] sm:$0xff] %v2569
        %2586 = vst [vmem:[#allocation5 + $0x40] sm:$0xff] %v2570
        %2587 = vst [vmem:[#allocation5 + $0x48] sm:$0xff] %v2571
        %2588 = vst [vmem:[#allocation5 + $0x50] sm:$0xff] %v2572
        %2589 = vst [vmem:[#allocation5 + $0x58] sm:$0xff] %v2573
        %2590 = vst [vmem:[#allocation5 + $0x60] sm:$0xff] %v2574
        %2591 = vst [vmem:[#allocation5 + $0x68] sm:$0xff] %v2575
        %2592 = vst [vmem:[#allocation5 + $0x70] sm:$0xff] %v2576
        %2593 = vst [vmem:[#allocation5 + $0x78] sm:$0xff] %v2577
        %2594 = vst.msk [vmem:[#allocation3] sm:$0xff] %vm2376, %v2104
        %2595 = vst.msk [vmem:[#allocation3 + $0x8] sm:$0xff] %vm2376, %v2105
        %2596 = vst.msk [vmem:[#allocation3 + $0x10] sm:$0xff] %vm2376, %v2106
        %2597 = vst.msk [vmem:[#allocation3 + $0x18] sm:$0xff] %vm2376, %v2107
        %2598 = vst.msk [vmem:[#allocation3 + $0x20] sm:$0xff] %vm2376, %v2108
        %2599 = vst.msk [vmem:[#allocation3 + $0x28] sm:$0xff] %vm2376, %v2109
        %2600 = vst.msk [vmem:[#allocation3 + $0x30] sm:$0xff] %vm2376, %v2110
        %2601 = vst.msk [vmem:[#allocation3 + $0x38] sm:$0xff] %vm2376, %v2111
        %2602 = vst.msk [vmem:[#allocation3 + $0x40] sm:$0xff] %vm2376, %v2112
        %2603 = vst.msk [vmem:[#allocation3 + $0x48] sm:$0xff] %vm2376, %v2113
        %2604 = vst.msk [vmem:[#allocation3 + $0x50] sm:$0xff] %vm2376, %v2114
        %2605 = vst.msk [vmem:[#allocation3 + $0x58] sm:$0xff] %vm2376, %v2115
        %2606 = vst.msk [vmem:[#allocation3 + $0x60] sm:$0xff] %vm2376, %v2116
        %2607 = vst.msk [vmem:[#allocation3 + $0x68] sm:$0xff] %vm2376, %v2117
        %2608 = vst.msk [vmem:[#allocation3 + $0x70] sm:$0xff] %vm2376, %v2118
        %2609 = vst.msk [vmem:[#allocation3 + $0x78] sm:$0xff] %vm2376, %v2119
        %p2610 = scmp.eq.s32.totalorder %s46, 1
        // Predicated region
        $region125: #{tpu_custom_call.1} parent=83 // pred_check
          %p2611 = pneg %p2610
        $region126: #{tpu_custom_call.1} parent=83 // pred_check_branch
          %2613 = sbr.rel (%p2611) target = $region128
        $region127: #{tpu_custom_call.1} parent=83 // pred_region
          %v2614 = vld [vmem:[#allocation5] sm:$0xff]
          %v2615 = vld [vmem:[#allocation5 + $0x8] sm:$0xff]
          %v2616 = vld [vmem:[#allocation5 + $0x10] sm:$0xff]
          %v2617 = vld [vmem:[#allocation5 + $0x18] sm:$0xff]
          %v2618 = vld [vmem:[#allocation5 + $0x20] sm:$0xff]
          %v2619 = vld [vmem:[#allocation5 + $0x28] sm:$0xff]
          %v2620 = vld [vmem:[#allocation5 + $0x30] sm:$0xff]
          %v2621 = vld [vmem:[#allocation5 + $0x38] sm:$0xff]
          %v2622 = vld [vmem:[#allocation5 + $0x40] sm:$0xff]
          %v2623 = vld [vmem:[#allocation5 + $0x48] sm:$0xff]
          %v2624 = vld [vmem:[#allocation5 + $0x50] sm:$0xff]
          %v2625 = vld [vmem:[#allocation5 + $0x58] sm:$0xff]
          %v2626 = vld [vmem:[#allocation5 + $0x60] sm:$0xff]
          %v2627 = vld [vmem:[#allocation5 + $0x68] sm:$0xff]
          %v2628 = vld [vmem:[#allocation5 + $0x70] sm:$0xff]
          %v2629 = vld [vmem:[#allocation5 + $0x78] sm:$0xff]
          %v2630 = vld [vmem:[#allocation4] sm:$0xff]
          %v2631 = vld [vmem:[#allocation4 + $0x8] sm:$0xff]
          %v2632 = vld [vmem:[#allocation4 + $0x10] sm:$0xff]
          %v2633 = vld [vmem:[#allocation4 + $0x18] sm:$0xff]
          %v2634 = vld [vmem:[#allocation4 + $0x20] sm:$0xff]
          %v2635 = vld [vmem:[#allocation4 + $0x28] sm:$0xff]
          %v2636 = vld [vmem:[#allocation4 + $0x30] sm:$0xff]
          %v2637 = vld [vmem:[#allocation4 + $0x38] sm:$0xff]
          %v2638 = vld [vmem:[#allocation4 + $0x40] sm:$0xff]
          %v2639 = vld [vmem:[#allocation4 + $0x48] sm:$0xff]
          %v2640 = vld [vmem:[#allocation4 + $0x50] sm:$0xff]
          %v2641 = vld [vmem:[#allocation4 + $0x58] sm:$0xff]
          %v2642 = vld [vmem:[#allocation4 + $0x60] sm:$0xff]
          %v2643 = vld [vmem:[#allocation4 + $0x68] sm:$0xff]
          %v2644 = vld [vmem:[#allocation4 + $0x70] sm:$0xff]
          %v2645 = vld [vmem:[#allocation4 + $0x78] sm:$0xff]
          %v2646 = vrcp.pop %v2630
          %v2647 = vrcp.pop %v2631
          %v2648 = vrcp.pop %v2632
          %v2649 = vrcp.pop %v2633
          %v2650 = vrcp.pop %v2634
          %v2651 = vrcp.pop %v2635
          %v2652 = vrcp.pop %v2636
          %v2653 = vrcp.pop %v2637
          %v2654 = vrcp.pop %v2638
          %v2655 = vrcp.pop %v2639
          %v2656 = vrcp.pop %v2640
          %v2657 = vrcp.pop %v2641
          %v2658 = vrcp.pop %v2642
          %v2659 = vrcp.pop %v2643
          %v2660 = vrcp.pop %v2644
          %v2661 = vrcp.pop %v2645
          %2663 = vset.pattern.permute.xlu0 0
          %2664 = vperm.xlu0 %2663, %v2646
          %v2665 = vpop.permute.xlu0 %2664
          %2668 = vset.pattern.permute.xlu0 0
          %2669 = vperm.xlu0 %2668, %v2647
          %v2670 = vpop.permute.xlu0 %2669
          %2673 = vset.pattern.permute.xlu0 0
          %2674 = vperm.xlu0 %2673, %v2648
          %v2675 = vpop.permute.xlu0 %2674
          %2678 = vset.pattern.permute.xlu0 0
          %2679 = vperm.xlu0 %2678, %v2649
          %v2680 = vpop.permute.xlu0 %2679
          %2683 = vset.pattern.permute.xlu0 0
          %2684 = vperm.xlu0 %2683, %v2650
          %v2685 = vpop.permute.xlu0 %2684
          %2688 = vset.pattern.permute.xlu0 0
          %2689 = vperm.xlu0 %2688, %v2651
          %v2690 = vpop.permute.xlu0 %2689
          %2693 = vset.pattern.permute.xlu0 0
          %2694 = vperm.xlu0 %2693, %v2652
          %v2695 = vpop.permute.xlu0 %2694
          %2698 = vset.pattern.permute.xlu0 0
          %2699 = vperm.xlu0 %2698, %v2653
          %v2700 = vpop.permute.xlu0 %2699
          %2703 = vset.pattern.permute.xlu0 0
          %2704 = vperm.xlu0 %2703, %v2654
          %v2705 = vpop.permute.xlu0 %2704
          %2708 = vset.pattern.permute.xlu0 0
          %2709 = vperm.xlu0 %2708, %v2655
          %v2710 = vpop.permute.xlu0 %2709
          %2713 = vset.pattern.permute.xlu0 0
          %2714 = vperm.xlu0 %2713, %v2656
          %v2715 = vpop.permute.xlu0 %2714
          %2718 = vset.pattern.permute.xlu0 0
          %2719 = vperm.xlu0 %2718, %v2657
          %v2720 = vpop.permute.xlu0 %2719
          %2723 = vset.pattern.permute.xlu0 0
          %2724 = vperm.xlu0 %2723, %v2658
          %v2725 = vpop.permute.xlu0 %2724
          %2728 = vset.pattern.permute.xlu0 0
          %2729 = vperm.xlu0 %2728, %v2659
          %v2730 = vpop.permute.xlu0 %2729
          %2733 = vset.pattern.permute.xlu0 0
          %2734 = vperm.xlu0 %2733, %v2660
          %v2735 = vpop.permute.xlu0 %2734
          %2738 = vset.pattern.permute.xlu0 0
          %2739 = vperm.xlu0 %2738, %v2661
          %v2740 = vpop.permute.xlu0 %2739
          %v2742 = vmul.f32 %v2614, %v2665
          %v2743 = vmul.f32 %v2615, %v2670
          %v2744 = vmul.f32 %v2616, %v2675
          %v2745 = vmul.f32 %v2617, %v2680
          %v2746 = vmul.f32 %v2618, %v2685
          %v2747 = vmul.f32 %v2619, %v2690
          %v2748 = vmul.f32 %v2620, %v2695
          %v2749 = vmul.f32 %v2621, %v2700
          %v2750 = vmul.f32 %v2622, %v2705
          %v2751 = vmul.f32 %v2623, %v2710
          %v2752 = vmul.f32 %v2624, %v2715
          %v2753 = vmul.f32 %v2625, %v2720
          %v2754 = vmul.f32 %v2626, %v2725
          %v2755 = vmul.f32 %v2627, %v2730
          %v2756 = vmul.f32 %v2628, %v2735
          %v2757 = vmul.f32 %v2629, %v2740
          %v2758 = vpack.c.bf16 %v2743, %v2742
          %v2759 = vpack.c.bf16 %v2745, %v2744
          %v2760 = vpack.c.bf16 %v2747, %v2746
          %v2761 = vpack.c.bf16 %v2749, %v2748
          %v2762 = vpack.c.bf16 %v2751, %v2750
          %v2763 = vpack.c.bf16 %v2753, %v2752
          %v2764 = vpack.c.bf16 %v2755, %v2754
          %v2765 = vpack.c.bf16 %v2757, %v2756
          %v2766 = vld [vmem:[#allocation17] sm:$0xf]
          %v2767 = vld [vmem:[#allocation17 + $0x4] sm:$0xf]
          %v2768 = vld [vmem:[#allocation17 + $0x8] sm:$0xf]
          %v2769 = vld [vmem:[#allocation17 + $0xc] sm:$0xf]
          %v2770 = vld [vmem:[#allocation17 + $0x10] sm:$0xf]
          %v2771 = vld [vmem:[#allocation17 + $0x14] sm:$0xf]
          %v2772 = vld [vmem:[#allocation17 + $0x18] sm:$0xf]
          %v2773 = vld [vmem:[#allocation17 + $0x1c] sm:$0xf]
          %v2774 = vld [vmem:[#allocation17 + $0x20] sm:$0xf]
          %v2775 = vld [vmem:[#allocation17 + $0x24] sm:$0xf]
          %v2776 = vld [vmem:[#allocation17 + $0x28] sm:$0xf]
          %v2777 = vld [vmem:[#allocation17 + $0x2c] sm:$0xf]
          %v2778 = vld [vmem:[#allocation17 + $0x30] sm:$0xf]
          %v2779 = vld [vmem:[#allocation17 + $0x34] sm:$0xf]
          %v2780 = vld [vmem:[#allocation17 + $0x38] sm:$0xf]
          %v2781 = vld [vmem:[#allocation17 + $0x3c] sm:$0xf]
          %v2782 = vld [vmem:[%s9] sm:$0x1]
          %v2784 = vperm.slane %v2782, 0
          %v2802 = vunpack.c.l.b16 %v2766
          %v2803 = vunpack.c.l.b16 %v2767
          %v2804 = vunpack.c.l.b16 %v2768
          %v2805 = vunpack.c.l.b16 %v2769
          %v2806 = vunpack.c.l.b16 %v2770
          %v2807 = vunpack.c.l.b16 %v2771
          %v2808 = vunpack.c.l.b16 %v2772
          %v2809 = vunpack.c.l.b16 %v2773
          %v2810 = vunpack.c.l.b16 %v2774
          %v2811 = vunpack.c.l.b16 %v2775
          %v2812 = vunpack.c.l.b16 %v2776
          %v2813 = vunpack.c.l.b16 %v2777
          %v2814 = vunpack.c.l.b16 %v2778
          %v2815 = vunpack.c.l.b16 %v2779
          %v2816 = vunpack.c.l.b16 %v2780
          %v2817 = vunpack.c.l.b16 %v2781
          %v2818 = vpack.c.b16 %v2803, %v2802
          %v2819 = vpack.c.b16 %v2805, %v2804
          %v2820 = vpack.c.b16 %v2807, %v2806
          %v2821 = vpack.c.b16 %v2809, %v2808
          %v2822 = vpack.c.b16 %v2811, %v2810
          %v2823 = vpack.c.b16 %v2813, %v2812
          %v2824 = vpack.c.b16 %v2815, %v2814
          %v2825 = vpack.c.b16 %v2817, %v2816
          %2834 = vmatpush.bf16.msra.mxu0 %v2825
          %2835 = vmatpush.bf16.msra.mxu0 %v2824
          %2836 = vmatpush.bf16.msra.mxu0 %v2823
          %2837 = vmatpush.bf16.msra.mxu0 %v2822
          %2838 = vmatpush.bf16.msra.mxu0 %v2821
          %2839 = vmatpush.bf16.msra.mxu0 %v2820
          %2840 = vmatpush.bf16.msra.mxu0 %v2819
          %2841 = vmatpush.bf16.msra.mxu0 %v2818
          %2842 = vmatmul.bf16.gmra.mxu0 %v2758
          %v2843 = vpop.f32.mrf.mxu0
          %v2844 = vadd.f32 %v2784, %v2843
          %v2845 = vpop.f32.mrf.mxu0
          %v2846 = vadd.f32 %v2784, %v2845
          %2847 = vmatmul.bf16.gmra.mxu0 %v2759
          %v2848 = vpop.f32.mrf.mxu0
          %v2849 = vadd.f32 %v2784, %v2848
          %v2850 = vpop.f32.mrf.mxu0
          %v2851 = vadd.f32 %v2784, %v2850
          %2852 = vmatmul.bf16.gmra.mxu0 %v2760
          %v2853 = vpop.f32.mrf.mxu0
          %v2854 = vadd.f32 %v2784, %v2853
          %v2855 = vpop.f32.mrf.mxu0
          %v2856 = vadd.f32 %v2784, %v2855
          %2857 = vmatmul.bf16.gmra.mxu0 %v2761
          %v2858 = vpop.f32.mrf.mxu0
          %v2859 = vadd.f32 %v2784, %v2858
          %v2860 = vpop.f32.mrf.mxu0
          %v2861 = vadd.f32 %v2784, %v2860
          %2862 = vmatmul.bf16.gmra.mxu0 %v2762
          %v2863 = vpop.f32.mrf.mxu0
          %v2864 = vadd.f32 %v2784, %v2863
          %v2865 = vpop.f32.mrf.mxu0
          %v2866 = vadd.f32 %v2784, %v2865
          %2867 = vmatmul.bf16.gmra.mxu0 %v2763
          %v2868 = vpop.f32.mrf.mxu0
          %v2869 = vadd.f32 %v2784, %v2868
          %v2870 = vpop.f32.mrf.mxu0
          %v2871 = vadd.f32 %v2784, %v2870
          %2872 = vmatmul.bf16.gmra.mxu0 %v2764
          %v2873 = vpop.f32.mrf.mxu0
          %v2874 = vadd.f32 %v2784, %v2873
          %v2875 = vpop.f32.mrf.mxu0
          %v2876 = vadd.f32 %v2784, %v2875
          %2877 = vmatmul.bf16.gmra.mxu0 %v2765
          %v2878 = vpop.f32.mrf.mxu0
          %v2879 = vadd.f32 %v2784, %v2878
          %v2880 = vpop.f32.mrf.mxu0
          %v2881 = vadd.f32 %v2784, %v2880
          %2882 = vdwg.mxu0
          %v2883 = vld [vmem:[%s624] sm:$0xff]
          %v2884 = vld [vmem:[%s624 + $0x8] sm:$0xff]
          %v2885 = vld [vmem:[%s624 + $0x10] sm:$0xff]
          %v2886 = vld [vmem:[%s624 + $0x18] sm:$0xff]
          %v2887 = vld [vmem:[%s624 + $0x20] sm:$0xff]
          %v2888 = vld [vmem:[%s624 + $0x28] sm:$0xff]
          %v2889 = vld [vmem:[%s624 + $0x30] sm:$0xff]
          %v2890 = vld [vmem:[%s624 + $0x38] sm:$0xff]
          %v2891 = vld [vmem:[%s624 + $0x40] sm:$0xff]
          %v2892 = vld [vmem:[%s624 + $0x48] sm:$0xff]
          %v2893 = vld [vmem:[%s624 + $0x50] sm:$0xff]
          %v2894 = vld [vmem:[%s624 + $0x58] sm:$0xff]
          %v2895 = vld [vmem:[%s624 + $0x60] sm:$0xff]
          %v2896 = vld [vmem:[%s624 + $0x68] sm:$0xff]
          %v2897 = vld [vmem:[%s624 + $0x70] sm:$0xff]
          %v2898 = vld [vmem:[%s624 + $0x78] sm:$0xff]
          %v2899 = vadd.f32 %v2883, %v2844
          %v2900 = vadd.f32 %v2884, %v2846
          %v2901 = vadd.f32 %v2885, %v2849
          %v2902 = vadd.f32 %v2886, %v2851
          %v2903 = vadd.f32 %v2887, %v2854
          %v2904 = vadd.f32 %v2888, %v2856
          %v2905 = vadd.f32 %v2889, %v2859
          %v2906 = vadd.f32 %v2890, %v2861
          %v2907 = vadd.f32 %v2891, %v2864
          %v2908 = vadd.f32 %v2892, %v2866
          %v2909 = vadd.f32 %v2893, %v2869
          %v2910 = vadd.f32 %v2894, %v2871
          %v2911 = vadd.f32 %v2895, %v2874
          %v2912 = vadd.f32 %v2896, %v2876
          %v2913 = vadd.f32 %v2897, %v2879
          %v2914 = vadd.f32 %v2898, %v2881
          %2915 = vadd.xlane.f32.xlu0 %v2899
          %v2916 = vpop.xlane.xlu0 %2915
          %2917 = vadd.xlane.f32.xlu0 %v2900
          %v2918 = vpop.xlane.xlu0 %2917
          %2919 = vadd.xlane.f32.xlu0 %v2901
          %v2920 = vpop.xlane.xlu0 %2919
          %2921 = vadd.xlane.f32.xlu0 %v2902
          %v2922 = vpop.xlane.xlu0 %2921
          %2923 = vadd.xlane.f32.xlu0 %v2903
          %v2924 = vpop.xlane.xlu0 %2923
          %2925 = vadd.xlane.f32.xlu0 %v2904
          %v2926 = vpop.xlane.xlu0 %2925
          %2927 = vadd.xlane.f32.xlu0 %v2905
          %v2928 = vpop.xlane.xlu0 %2927
          %2929 = vadd.xlane.f32.xlu0 %v2906
          %v2930 = vpop.xlane.xlu0 %2929
          %2931 = vadd.xlane.f32.xlu0 %v2907
          %v2932 = vpop.xlane.xlu0 %2931
          %2933 = vadd.xlane.f32.xlu0 %v2908
          %v2934 = vpop.xlane.xlu0 %2933
          %2935 = vadd.xlane.f32.xlu0 %v2909
          %v2936 = vpop.xlane.xlu0 %2935
          %2937 = vadd.xlane.f32.xlu0 %v2910
          %v2938 = vpop.xlane.xlu0 %2937
          %2939 = vadd.xlane.f32.xlu0 %v2911
          %v2940 = vpop.xlane.xlu0 %2939
          %2941 = vadd.xlane.f32.xlu0 %v2912
          %v2942 = vpop.xlane.xlu0 %2941
          %2943 = vadd.xlane.f32.xlu0 %v2913
          %v2944 = vpop.xlane.xlu0 %2943
          %2945 = vadd.xlane.f32.xlu0 %v2914
          %v2946 = vpop.xlane.xlu0 %2945
          %v2947 = vmul.f32 %v2916, %v1390
          %v2948 = vmul.f32 %v2918, %v1390
          %v2949 = vmul.f32 %v2920, %v1390
          %v2950 = vmul.f32 %v2922, %v1390
          %v2951 = vmul.f32 %v2924, %v1390
          %v2952 = vmul.f32 %v2926, %v1390
          %v2953 = vmul.f32 %v2928, %v1390
          %v2954 = vmul.f32 %v2930, %v1390
          %v2955 = vmul.f32 %v2932, %v1390
          %v2956 = vmul.f32 %v2934, %v1390
          %v2957 = vmul.f32 %v2936, %v1390
          %v2958 = vmul.f32 %v2938, %v1390
          %v2959 = vmul.f32 %v2940, %v1390
          %v2960 = vmul.f32 %v2942, %v1390
          %v2961 = vmul.f32 %v2944, %v1390
          %v2962 = vmul.f32 %v2946, %v1390
          %v2963 = vsub.f32 %v2899, %v2947
          %v2964 = vsub.f32 %v2900, %v2948
          %v2965 = vsub.f32 %v2901, %v2949
          %v2966 = vsub.f32 %v2902, %v2950
          %v2967 = vsub.f32 %v2903, %v2951
          %v2968 = vsub.f32 %v2904, %v2952
          %v2969 = vsub.f32 %v2905, %v2953
          %v2970 = vsub.f32 %v2906, %v2954
          %v2971 = vsub.f32 %v2907, %v2955
          %v2972 = vsub.f32 %v2908, %v2956
          %v2973 = vsub.f32 %v2909, %v2957
          %v2974 = vsub.f32 %v2910, %v2958
          %v2975 = vsub.f32 %v2911, %v2959
          %v2976 = vsub.f32 %v2912, %v2960
          %v2977 = vsub.f32 %v2913, %v2961
          %v2978 = vsub.f32 %v2914, %v2962
          %v2979 = vmul.f32 %v2963, %v2963
          %v2980 = vmul.f32 %v2964, %v2964
          %v2981 = vmul.f32 %v2965, %v2965
          %v2982 = vmul.f32 %v2966, %v2966
          %v2983 = vmul.f32 %v2967, %v2967
          %v2984 = vmul.f32 %v2968, %v2968
          %v2985 = vmul.f32 %v2969, %v2969
          %v2986 = vmul.f32 %v2970, %v2970
          %v2987 = vmul.f32 %v2971, %v2971
          %v2988 = vmul.f32 %v2972, %v2972
          %v2989 = vmul.f32 %v2973, %v2973
          %v2990 = vmul.f32 %v2974, %v2974
          %v2991 = vmul.f32 %v2975, %v2975
          %v2992 = vmul.f32 %v2976, %v2976
          %v2993 = vmul.f32 %v2977, %v2977
          %v2994 = vmul.f32 %v2978, %v2978
          %2995 = vadd.xlane.f32.xlu0 %v2979
          %v2996 = vpop.xlane.xlu0 %2995
          %2997 = vadd.xlane.f32.xlu0 %v2980
          %v2998 = vpop.xlane.xlu0 %2997
          %2999 = vadd.xlane.f32.xlu0 %v2981
          %v3000 = vpop.xlane.xlu0 %2999
          %3001 = vadd.xlane.f32.xlu0 %v2982
          %v3002 = vpop.xlane.xlu0 %3001
          %3003 = vadd.xlane.f32.xlu0 %v2983
          %v3004 = vpop.xlane.xlu0 %3003
          %3005 = vadd.xlane.f32.xlu0 %v2984
          %v3006 = vpop.xlane.xlu0 %3005
          %3007 = vadd.xlane.f32.xlu0 %v2985
          %v3008 = vpop.xlane.xlu0 %3007
          %3009 = vadd.xlane.f32.xlu0 %v2986
          %v3010 = vpop.xlane.xlu0 %3009
          %3011 = vadd.xlane.f32.xlu0 %v2987
          %v3012 = vpop.xlane.xlu0 %3011
          %3013 = vadd.xlane.f32.xlu0 %v2988
          %v3014 = vpop.xlane.xlu0 %3013
          %3015 = vadd.xlane.f32.xlu0 %v2989
          %v3016 = vpop.xlane.xlu0 %3015
          %3017 = vadd.xlane.f32.xlu0 %v2990
          %v3018 = vpop.xlane.xlu0 %3017
          %3019 = vadd.xlane.f32.xlu0 %v2991
          %v3020 = vpop.xlane.xlu0 %3019
          %3021 = vadd.xlane.f32.xlu0 %v2992
          %v3022 = vpop.xlane.xlu0 %3021
          %3023 = vadd.xlane.f32.xlu0 %v2993
          %v3024 = vpop.xlane.xlu0 %3023
          %3025 = vadd.xlane.f32.xlu0 %v2994
          %v3026 = vpop.xlane.xlu0 %3025
          %v3027 = vmul.f32 %v2996, %v1390
          %v3028 = vmul.f32 %v2998, %v1390
          %v3029 = vmul.f32 %v3000, %v1390
          %v3030 = vmul.f32 %v3002, %v1390
          %v3031 = vmul.f32 %v3004, %v1390
          %v3032 = vmul.f32 %v3006, %v1390
          %v3033 = vmul.f32 %v3008, %v1390
          %v3034 = vmul.f32 %v3010, %v1390
          %v3035 = vmul.f32 %v3012, %v1390
          %v3036 = vmul.f32 %v3014, %v1390
          %v3037 = vmul.f32 %v3016, %v1390
          %v3038 = vmul.f32 %v3018, %v1390
          %v3039 = vmul.f32 %v3020, %v1390
          %v3040 = vmul.f32 %v3022, %v1390
          %v3041 = vmul.f32 %v3024, %v1390
          %v3042 = vmul.f32 %v3026, %v1390
          %v3043 = vadd.f32 %v3027, 1e-05
          %v3044 = vadd.f32 %v3028, 1e-05
          %v3045 = vadd.f32 %v3029, 1e-05
          %v3046 = vadd.f32 %v3030, 1e-05
          %v3047 = vadd.f32 %v3031, 1e-05
          %v3048 = vadd.f32 %v3032, 1e-05
          %v3049 = vadd.f32 %v3033, 1e-05
          %v3050 = vadd.f32 %v3034, 1e-05
          %v3051 = vadd.f32 %v3035, 1e-05
          %v3052 = vadd.f32 %v3036, 1e-05
          %v3053 = vadd.f32 %v3037, 1e-05
          %v3054 = vadd.f32 %v3038, 1e-05
          %v3055 = vadd.f32 %v3039, 1e-05
          %v3056 = vadd.f32 %v3040, 1e-05
          %v3057 = vadd.f32 %v3041, 1e-05
          %v3058 = vadd.f32 %v3042, 1e-05
          %v3059 = vrsqrt.pop %v3043
          %v3060 = vmul.f32 %v3059, %v3043
          %v3061 = vmul.f32 %v3060, %v3059
          %v3062 = vmul.f32 0.5, %v3061
          %v3063 = vsub.f32 1.5, %v3062
          %v3064 = vmul.f32 %v3059, %v3063
          %vm3065 = vweird.f32 %v3043
          %vm3066 = vweird.f32 %v3059
          %vm3067 = vmor %vm3065, %vm3066
          %v3068 = vsel %vm3067, %v3059, %v3064
          %v3069 = vrsqrt.pop %v3044
          %v3070 = vmul.f32 %v3069, %v3044
          %v3071 = vmul.f32 %v3070, %v3069
          %v3072 = vmul.f32 0.5, %v3071
          %v3073 = vsub.f32 1.5, %v3072
          %v3074 = vmul.f32 %v3069, %v3073
          %vm3075 = vweird.f32 %v3044
          %vm3076 = vweird.f32 %v3069
          %vm3077 = vmor %vm3075, %vm3076
          %v3078 = vsel %vm3077, %v3069, %v3074
          %v3079 = vrsqrt.pop %v3045
          %v3080 = vmul.f32 %v3079, %v3045
          %v3081 = vmul.f32 %v3080, %v3079
          %v3082 = vmul.f32 0.5, %v3081
          %v3083 = vsub.f32 1.5, %v3082
          %v3084 = vmul.f32 %v3079, %v3083
          %vm3085 = vweird.f32 %v3045
          %vm3086 = vweird.f32 %v3079
          %vm3087 = vmor %vm3085, %vm3086
          %v3088 = vsel %vm3087, %v3079, %v3084
          %v3089 = vrsqrt.pop %v3046
          %v3090 = vmul.f32 %v3089, %v3046
          %v3091 = vmul.f32 %v3090, %v3089
          %v3092 = vmul.f32 0.5, %v3091
          %v3093 = vsub.f32 1.5, %v3092
          %v3094 = vmul.f32 %v3089, %v3093
          %vm3095 = vweird.f32 %v3046
          %vm3096 = vweird.f32 %v3089
          %vm3097 = vmor %vm3095, %vm3096
          %v3098 = vsel %vm3097, %v3089, %v3094
          %v3099 = vrsqrt.pop %v3047
          %v3100 = vmul.f32 %v3099, %v3047
          %v3101 = vmul.f32 %v3100, %v3099
          %v3102 = vmul.f32 0.5, %v3101
          %v3103 = vsub.f32 1.5, %v3102
          %v3104 = vmul.f32 %v3099, %v3103
          %vm3105 = vweird.f32 %v3047
          %vm3106 = vweird.f32 %v3099
          %vm3107 = vmor %vm3105, %vm3106
          %v3108 = vsel %vm3107, %v3099, %v3104
          %v3109 = vrsqrt.pop %v3048
          %v3110 = vmul.f32 %v3109, %v3048
          %v3111 = vmul.f32 %v3110, %v3109
          %v3112 = vmul.f32 0.5, %v3111
          %v3113 = vsub.f32 1.5, %v3112
          %v3114 = vmul.f32 %v3109, %v3113
          %vm3115 = vweird.f32 %v3048
          %vm3116 = vweird.f32 %v3109
          %vm3117 = vmor %vm3115, %vm3116
          %v3118 = vsel %vm3117, %v3109, %v3114
          %v3119 = vrsqrt.pop %v3049
          %v3120 = vmul.f32 %v3119, %v3049
          %v3121 = vmul.f32 %v3120, %v3119
          %v3122 = vmul.f32 0.5, %v3121
          %v3123 = vsub.f32 1.5, %v3122
          %v3124 = vmul.f32 %v3119, %v3123
          %vm3125 = vweird.f32 %v3049
          %vm3126 = vweird.f32 %v3119
          %vm3127 = vmor %vm3125, %vm3126
          %v3128 = vsel %vm3127, %v3119, %v3124
          %v3129 = vrsqrt.pop %v3050
          %v3130 = vmul.f32 %v3129, %v3050
          %v3131 = vmul.f32 %v3130, %v3129
          %v3132 = vmul.f32 0.5, %v3131
          %v3133 = vsub.f32 1.5, %v3132
          %v3134 = vmul.f32 %v3129, %v3133
          %vm3135 = vweird.f32 %v3050
          %vm3136 = vweird.f32 %v3129
          %vm3137 = vmor %vm3135, %vm3136
          %v3138 = vsel %vm3137, %v3129, %v3134
          %v3139 = vrsqrt.pop %v3051
          %v3140 = vmul.f32 %v3139, %v3051
          %v3141 = vmul.f32 %v3140, %v3139
          %v3142 = vmul.f32 0.5, %v3141
          %v3143 = vsub.f32 1.5, %v3142
          %v3144 = vmul.f32 %v3139, %v3143
          %vm3145 = vweird.f32 %v3051
          %vm3146 = vweird.f32 %v3139
          %vm3147 = vmor %vm3145, %vm3146
          %v3148 = vsel %vm3147, %v3139, %v3144
          %v3149 = vrsqrt.pop %v3052
          %v3150 = vmul.f32 %v3149, %v3052
          %v3151 = vmul.f32 %v3150, %v3149
          %v3152 = vmul.f32 0.5, %v3151
          %v3153 = vsub.f32 1.5, %v3152
          %v3154 = vmul.f32 %v3149, %v3153
          %vm3155 = vweird.f32 %v3052
          %vm3156 = vweird.f32 %v3149
          %vm3157 = vmor %vm3155, %vm3156
          %v3158 = vsel %vm3157, %v3149, %v3154
          %v3159 = vrsqrt.pop %v3053
          %v3160 = vmul.f32 %v3159, %v3053
          %v3161 = vmul.f32 %v3160, %v3159
          %v3162 = vmul.f32 0.5, %v3161
          %v3163 = vsub.f32 1.5, %v3162
          %v3164 = vmul.f32 %v3159, %v3163
          %vm3165 = vweird.f32 %v3053
          %vm3166 = vweird.f32 %v3159
          %vm3167 = vmor %vm3165, %vm3166
          %v3168 = vsel %vm3167, %v3159, %v3164
          %v3169 = vrsqrt.pop %v3054
          %v3170 = vmul.f32 %v3169, %v3054
          %v3171 = vmul.f32 %v3170, %v3169
          %v3172 = vmul.f32 0.5, %v3171
          %v3173 = vsub.f32 1.5, %v3172
          %v3174 = vmul.f32 %v3169, %v3173
          %vm3175 = vweird.f32 %v3054
          %vm3176 = vweird.f32 %v3169
          %vm3177 = vmor %vm3175, %vm3176
          %v3178 = vsel %vm3177, %v3169, %v3174
          %v3179 = vrsqrt.pop %v3055
          %v3180 = vmul.f32 %v3179, %v3055
          %v3181 = vmul.f32 %v3180, %v3179
          %v3182 = vmul.f32 0.5, %v3181
          %v3183 = vsub.f32 1.5, %v3182
          %v3184 = vmul.f32 %v3179, %v3183
          %vm3185 = vweird.f32 %v3055
          %vm3186 = vweird.f32 %v3179
          %vm3187 = vmor %vm3185, %vm3186
          %v3188 = vsel %vm3187, %v3179, %v3184
          %v3189 = vrsqrt.pop %v3056
          %v3190 = vmul.f32 %v3189, %v3056
          %v3191 = vmul.f32 %v3190, %v3189
          %v3192 = vmul.f32 0.5, %v3191
          %v3193 = vsub.f32 1.5, %v3192
          %v3194 = vmul.f32 %v3189, %v3193
          %vm3195 = vweird.f32 %v3056
          %vm3196 = vweird.f32 %v3189
          %vm3197 = vmor %vm3195, %vm3196
          %v3198 = vsel %vm3197, %v3189, %v3194
          %v3199 = vrsqrt.pop %v3057
          %v3200 = vmul.f32 %v3199, %v3057
          %v3201 = vmul.f32 %v3200, %v3199
          %v3202 = vmul.f32 0.5, %v3201
          %v3203 = vsub.f32 1.5, %v3202
          %v3204 = vmul.f32 %v3199, %v3203
          %vm3205 = vweird.f32 %v3057
          %vm3206 = vweird.f32 %v3199
          %vm3207 = vmor %vm3205, %vm3206
          %v3208 = vsel %vm3207, %v3199, %v3204
          %v3209 = vrsqrt.pop %v3058
          %v3210 = vmul.f32 %v3209, %v3058
          %v3211 = vmul.f32 %v3210, %v3209
          %v3212 = vmul.f32 0.5, %v3211
          %v3213 = vsub.f32 1.5, %v3212
          %v3214 = vmul.f32 %v3209, %v3213
          %vm3215 = vweird.f32 %v3058
          %vm3216 = vweird.f32 %v3209
          %vm3217 = vmor %vm3215, %vm3216
          %v3218 = vsel %vm3217, %v3209, %v3214
          %v3219 = vmul.f32 %v2963, %v3068
          %v3220 = vmul.f32 %v2964, %v3078
          %v3221 = vmul.f32 %v2965, %v3088
          %v3222 = vmul.f32 %v2966, %v3098
          %v3223 = vmul.f32 %v2967, %v3108
          %v3224 = vmul.f32 %v2968, %v3118
          %v3225 = vmul.f32 %v2969, %v3128
          %v3226 = vmul.f32 %v2970, %v3138
          %v3227 = vmul.f32 %v2971, %v3148
          %v3228 = vmul.f32 %v2972, %v3158
          %v3229 = vmul.f32 %v2973, %v3168
          %v3230 = vmul.f32 %v2974, %v3178
          %v3231 = vmul.f32 %v2975, %v3188
          %v3232 = vmul.f32 %v2976, %v3198
          %v3233 = vmul.f32 %v2977, %v3208
          %v3234 = vmul.f32 %v2978, %v3218
          %v3235 = vld [vmem:[%s10] sm:$0x1]
          %v3237 = vperm.slane %v3235, 0
          %v3239 = vmul.f32 %v3219, %v3237
          %v3240 = vmul.f32 %v3220, %v3237
          %v3241 = vmul.f32 %v3221, %v3237
          %v3242 = vmul.f32 %v3222, %v3237
          %v3243 = vmul.f32 %v3223, %v3237
          %v3244 = vmul.f32 %v3224, %v3237
          %v3245 = vmul.f32 %v3225, %v3237
          %v3246 = vmul.f32 %v3226, %v3237
          %v3247 = vmul.f32 %v3227, %v3237
          %v3248 = vmul.f32 %v3228, %v3237
          %v3249 = vmul.f32 %v3229, %v3237
          %v3250 = vmul.f32 %v3230, %v3237
          %v3251 = vmul.f32 %v3231, %v3237
          %v3252 = vmul.f32 %v3232, %v3237
          %v3253 = vmul.f32 %v3233, %v3237
          %v3254 = vmul.f32 %v3234, %v3237
          %v3255 = vld [vmem:[%s11] sm:$0x1]
          %v3257 = vperm.slane %v3255, 0
          %v3259 = vadd.f32 %v3239, %v3257
          %v3260 = vadd.f32 %v3240, %v3257
          %v3261 = vadd.f32 %v3241, %v3257
          %v3262 = vadd.f32 %v3242, %v3257
          %v3263 = vadd.f32 %v3243, %v3257
          %v3264 = vadd.f32 %v3244, %v3257
          %v3265 = vadd.f32 %v3245, %v3257
          %v3266 = vadd.f32 %v3246, %v3257
          %v3267 = vadd.f32 %v3247, %v3257
          %v3268 = vadd.f32 %v3248, %v3257
          %v3269 = vadd.f32 %v3249, %v3257
          %v3270 = vadd.f32 %v3250, %v3257
          %v3271 = vadd.f32 %v3251, %v3257
          %v3272 = vadd.f32 %v3252, %v3257
          %v3273 = vadd.f32 %v3253, %v3257
          %v3274 = vadd.f32 %v3254, %v3257
          %v3275 = vpack.c.bf16 %v3260, %v3259
          %v3276 = vpack.c.bf16 %v3262, %v3261
          %v3277 = vpack.c.bf16 %v3264, %v3263
          %v3278 = vpack.c.bf16 %v3266, %v3265
          %v3279 = vpack.c.bf16 %v3268, %v3267
          %v3280 = vpack.c.bf16 %v3270, %v3269
          %v3281 = vpack.c.bf16 %v3272, %v3271
          %v3282 = vpack.c.bf16 %v3274, %v3273
          %v3283 = vld [vmem:[#allocation18] sm:$0xff]
          %v3284 = vld [vmem:[#allocation18 + $0x10] sm:$0xff]
          %v3285 = vld [vmem:[#allocation18 + $0x20] sm:$0xff]
          %v3286 = vld [vmem:[#allocation18 + $0x30] sm:$0xff]
          %v3287 = vld [vmem:[#allocation18 + $0x40] sm:$0xff]
          %v3288 = vld [vmem:[#allocation18 + $0x50] sm:$0xff]
          %v3289 = vld [vmem:[#allocation18 + $0x60] sm:$0xff]
          %v3290 = vld [vmem:[#allocation18 + $0x70] sm:$0xff]
          %v3291 = vld [vmem:[#allocation18 + $0x80] sm:$0xff]
          %v3292 = vld [vmem:[#allocation18 + $0x90] sm:$0xff]
          %v3293 = vld [vmem:[#allocation18 + $0xa0] sm:$0xff]
          %v3294 = vld [vmem:[#allocation18 + $0xb0] sm:$0xff]
          %v3295 = vld [vmem:[#allocation18 + $0xc0] sm:$0xff]
          %v3296 = vld [vmem:[#allocation18 + $0xd0] sm:$0xff]
          %v3297 = vld [vmem:[#allocation18 + $0xe0] sm:$0xff]
          %v3298 = vld [vmem:[#allocation18 + $0xf0] sm:$0xff]
          %v3299 = vld [vmem:[%s13] sm:$0x3]
          %v3301 = vperm.slane %v3299, 0
          %v3302 = vperm.slane %v3299, 1
          %v3321 = vunpack.c.l.b16 %v3283
          %v3322 = vunpack.c.h.b16 %v3283
          %v3323 = vunpack.c.l.b16 %v3284
          %v3324 = vunpack.c.h.b16 %v3284
          %v3325 = vunpack.c.l.b16 %v3285
          %v3326 = vunpack.c.h.b16 %v3285
          %v3327 = vunpack.c.l.b16 %v3286
          %v3328 = vunpack.c.h.b16 %v3286
          %v3329 = vunpack.c.l.b16 %v3287
          %v3330 = vunpack.c.h.b16 %v3287
          %v3331 = vunpack.c.l.b16 %v3288
          %v3332 = vunpack.c.h.b16 %v3288
          %v3333 = vunpack.c.l.b16 %v3289
          %v3334 = vunpack.c.h.b16 %v3289
          %v3335 = vunpack.c.l.b16 %v3290
          %v3336 = vunpack.c.h.b16 %v3290
          %v3337 = vunpack.c.l.b16 %v3291
          %v3338 = vunpack.c.h.b16 %v3291
          %v3339 = vunpack.c.l.b16 %v3292
          %v3340 = vunpack.c.h.b16 %v3292
          %v3341 = vunpack.c.l.b16 %v3293
          %v3342 = vunpack.c.h.b16 %v3293
          %v3343 = vunpack.c.l.b16 %v3294
          %v3344 = vunpack.c.h.b16 %v3294
          %v3345 = vunpack.c.l.b16 %v3295
          %v3346 = vunpack.c.h.b16 %v3295
          %v3347 = vunpack.c.l.b16 %v3296
          %v3348 = vunpack.c.h.b16 %v3296
          %v3349 = vunpack.c.l.b16 %v3297
          %v3350 = vunpack.c.h.b16 %v3297
          %v3351 = vunpack.c.l.b16 %v3298
          %v3352 = vunpack.c.h.b16 %v3298
          %v3353 = vpack.c.b16 %v3323, %v3321
          %v3354 = vpack.c.b16 %v3324, %v3322
          %v3355 = vpack.c.b16 %v3327, %v3325
          %v3356 = vpack.c.b16 %v3328, %v3326
          %v3357 = vpack.c.b16 %v3331, %v3329
          %v3358 = vpack.c.b16 %v3332, %v3330
          %v3359 = vpack.c.b16 %v3335, %v3333
          %v3360 = vpack.c.b16 %v3336, %v3334
          %v3361 = vpack.c.b16 %v3339, %v3337
          %v3362 = vpack.c.b16 %v3340, %v3338
          %v3363 = vpack.c.b16 %v3343, %v3341
          %v3364 = vpack.c.b16 %v3344, %v3342
          %v3365 = vpack.c.b16 %v3347, %v3345
          %v3366 = vpack.c.b16 %v3348, %v3346
          %v3367 = vpack.c.b16 %v3351, %v3349
          %v3368 = vpack.c.b16 %v3352, %v3350
          %3385 = vmatpush.bf16.msra.mxu0 %v3367
          %3386 = vmatpush.bf16.msra.mxu0 %v3365
          %3387 = vmatpush.bf16.msra.mxu0 %v3363
          %3388 = vmatpush.bf16.msra.mxu0 %v3361
          %3389 = vmatpush.bf16.msra.mxu0 %v3359
          %3390 = vmatpush.bf16.msra.mxu0 %v3357
          %3391 = vmatpush.bf16.msra.mxu0 %v3355
          %3392 = vmatpush.bf16.msra.mxu0 %v3353
          %3393 = vmatmul.bf16.gmra.mxu0 %v3275
          %v3394 = vpop.f32.mrf.mxu0
          %v3395 = vadd.f32 %v3301, %v3394
          %v3396 = vpop.f32.mrf.mxu0
          %v3397 = vadd.f32 %v3301, %v3396
          %3398 = vmatmul.bf16.gmra.mxu0 %v3276
          %v3399 = vpop.f32.mrf.mxu0
          %v3400 = vadd.f32 %v3301, %v3399
          %v3401 = vpop.f32.mrf.mxu0
          %v3402 = vadd.f32 %v3301, %v3401
          %3403 = vmatmul.bf16.gmra.mxu0 %v3277
          %v3404 = vpop.f32.mrf.mxu0
          %v3405 = vadd.f32 %v3301, %v3404
          %v3406 = vpop.f32.mrf.mxu0
          %v3407 = vadd.f32 %v3301, %v3406
          %3408 = vmatmul.bf16.gmra.mxu0 %v3278
          %v3409 = vpop.f32.mrf.mxu0
          %v3410 = vadd.f32 %v3301, %v3409
          %v3411 = vpop.f32.mrf.mxu0
          %v3412 = vadd.f32 %v3301, %v3411
          %3413 = vmatmul.bf16.gmra.mxu0 %v3279
          %v3414 = vpop.f32.mrf.mxu0
          %v3415 = vadd.f32 %v3301, %v3414
          %v3416 = vpop.f32.mrf.mxu0
          %v3417 = vadd.f32 %v3301, %v3416
          %3418 = vmatmul.bf16.gmra.mxu0 %v3280
          %v3419 = vpop.f32.mrf.mxu0
          %v3420 = vadd.f32 %v3301, %v3419
          %v3421 = vpop.f32.mrf.mxu0
          %v3422 = vadd.f32 %v3301, %v3421
          %3423 = vmatmul.bf16.gmra.mxu0 %v3281
          %v3424 = vpop.f32.mrf.mxu0
          %v3425 = vadd.f32 %v3301, %v3424
          %v3426 = vpop.f32.mrf.mxu0
          %v3427 = vadd.f32 %v3301, %v3426
          %3428 = vmatmul.bf16.gmra.mxu0 %v3282
          %v3429 = vpop.f32.mrf.mxu0
          %v3430 = vadd.f32 %v3301, %v3429
          %v3431 = vpop.f32.mrf.mxu0
          %v3432 = vadd.f32 %v3301, %v3431
          %3433 = vdwg.mxu0
          %3434 = vmatpush.bf16.msra.mxu0 %v3368
          %3435 = vmatpush.bf16.msra.mxu0 %v3366
          %3436 = vmatpush.bf16.msra.mxu0 %v3364
          %3437 = vmatpush.bf16.msra.mxu0 %v3362
          %3438 = vmatpush.bf16.msra.mxu0 %v3360
          %3439 = vmatpush.bf16.msra.mxu0 %v3358
          %3440 = vmatpush.bf16.msra.mxu0 %v3356
          %3441 = vmatpush.bf16.msra.mxu0 %v3354
          %3442 = vmatmul.bf16.gmra.mxu0 %v3275
          %v3443 = vpop.f32.mrf.mxu0
          %v3444 = vadd.f32 %v3302, %v3443
          %v3445 = vpop.f32.mrf.mxu0
          %v3446 = vadd.f32 %v3302, %v3445
          %3447 = vmatmul.bf16.gmra.mxu0 %v3276
          %v3448 = vpop.f32.mrf.mxu0
          %v3449 = vadd.f32 %v3302, %v3448
          %v3450 = vpop.f32.mrf.mxu0
          %v3451 = vadd.f32 %v3302, %v3450
          %3452 = vmatmul.bf16.gmra.mxu0 %v3277
          %v3453 = vpop.f32.mrf.mxu0
          %v3454 = vadd.f32 %v3302, %v3453
          %v3455 = vpop.f32.mrf.mxu0
          %v3456 = vadd.f32 %v3302, %v3455
          %3457 = vmatmul.bf16.gmra.mxu0 %v3278
          %v3458 = vpop.f32.mrf.mxu0
          %v3459 = vadd.f32 %v3302, %v3458
          %v3460 = vpop.f32.mrf.mxu0
          %v3461 = vadd.f32 %v3302, %v3460
          %3462 = vmatmul.bf16.gmra.mxu0 %v3279
          %v3463 = vpop.f32.mrf.mxu0
          %v3464 = vadd.f32 %v3302, %v3463
          %v3465 = vpop.f32.mrf.mxu0
          %v3466 = vadd.f32 %v3302, %v3465
          %3467 = vmatmul.bf16.gmra.mxu0 %v3280
          %v3468 = vpop.f32.mrf.mxu0
          %v3469 = vadd.f32 %v3302, %v3468
          %v3470 = vpop.f32.mrf.mxu0
          %v3471 = vadd.f32 %v3302, %v3470
          %3472 = vmatmul.bf16.gmra.mxu0 %v3281
          %v3473 = vpop.f32.mrf.mxu0
          %v3474 = vadd.f32 %v3302, %v3473
          %v3475 = vpop.f32.mrf.mxu0
          %v3476 = vadd.f32 %v3302, %v3475
          %3477 = vmatmul.bf16.gmra.mxu0 %v3282
          %v3478 = vpop.f32.mrf.mxu0
          %v3479 = vadd.f32 %v3302, %v3478
          %v3480 = vpop.f32.mrf.mxu0
          %v3481 = vadd.f32 %v3302, %v3480
          %3482 = vdwg.mxu0
          %v3483 = vmax.f32 %v3395, 0.0
          %v3484 = vmax.f32 %v3444, 0.0
          %v3485 = vmax.f32 %v3397, 0.0
          %v3486 = vmax.f32 %v3446, 0.0
          %v3487 = vmax.f32 %v3400, 0.0
          %v3488 = vmax.f32 %v3449, 0.0
          %v3489 = vmax.f32 %v3402, 0.0
          %v3490 = vmax.f32 %v3451, 0.0
          %v3491 = vmax.f32 %v3405, 0.0
          %v3492 = vmax.f32 %v3454, 0.0
          %v3493 = vmax.f32 %v3407, 0.0
          %v3494 = vmax.f32 %v3456, 0.0
          %v3495 = vmax.f32 %v3410, 0.0
          %v3496 = vmax.f32 %v3459, 0.0
          %v3497 = vmax.f32 %v3412, 0.0
          %v3498 = vmax.f32 %v3461, 0.0
          %v3499 = vmax.f32 %v3415, 0.0
          %v3500 = vmax.f32 %v3464, 0.0
          %v3501 = vmax.f32 %v3417, 0.0
          %v3502 = vmax.f32 %v3466, 0.0
          %v3503 = vmax.f32 %v3420, 0.0
          %v3504 = vmax.f32 %v3469, 0.0
          %v3505 = vmax.f32 %v3422, 0.0
          %v3506 = vmax.f32 %v3471, 0.0
          %v3507 = vmax.f32 %v3425, 0.0
          %v3508 = vmax.f32 %v3474, 0.0
          %v3509 = vmax.f32 %v3427, 0.0
          %v3510 = vmax.f32 %v3476, 0.0
          %v3511 = vmax.f32 %v3430, 0.0
          %v3512 = vmax.f32 %v3479, 0.0
          %v3513 = vmax.f32 %v3432, 0.0
          %v3514 = vmax.f32 %v3481, 0.0
          %v3515 = vpack.c.bf16 %v3485, %v3483
          %v3516 = vpack.c.bf16 %v3486, %v3484
          %v3517 = vpack.c.bf16 %v3489, %v3487
          %v3518 = vpack.c.bf16 %v3490, %v3488
          %v3519 = vpack.c.bf16 %v3493, %v3491
          %v3520 = vpack.c.bf16 %v3494, %v3492
          %v3521 = vpack.c.bf16 %v3497, %v3495
          %v3522 = vpack.c.bf16 %v3498, %v3496
          %v3523 = vpack.c.bf16 %v3501, %v3499
          %v3524 = vpack.c.bf16 %v3502, %v3500
          %v3525 = vpack.c.bf16 %v3505, %v3503
          %v3526 = vpack.c.bf16 %v3506, %v3504
          %v3527 = vpack.c.bf16 %v3509, %v3507
          %v3528 = vpack.c.bf16 %v3510, %v3508
          %v3529 = vpack.c.bf16 %v3513, %v3511
          %v3530 = vpack.c.bf16 %v3514, %v3512
          %v3531 = vld [vmem:[#allocation20] sm:$0xf]
          %v3532 = vld [vmem:[#allocation20 + $0x4] sm:$0xf]
          %v3533 = vld [vmem:[#allocation20 + $0x8] sm:$0xf]
          %v3534 = vld [vmem:[#allocation20 + $0xc] sm:$0xf]
          %v3535 = vld [vmem:[#allocation20 + $0x10] sm:$0xf]
          %v3536 = vld [vmem:[#allocation20 + $0x14] sm:$0xf]
          %v3537 = vld [vmem:[#allocation20 + $0x18] sm:$0xf]
          %v3538 = vld [vmem:[#allocation20 + $0x1c] sm:$0xf]
          %v3539 = vld [vmem:[#allocation20 + $0x20] sm:$0xf]
          %v3540 = vld [vmem:[#allocation20 + $0x24] sm:$0xf]
          %v3541 = vld [vmem:[#allocation20 + $0x28] sm:$0xf]
          %v3542 = vld [vmem:[#allocation20 + $0x2c] sm:$0xf]
          %v3543 = vld [vmem:[#allocation20 + $0x30] sm:$0xf]
          %v3544 = vld [vmem:[#allocation20 + $0x34] sm:$0xf]
          %v3545 = vld [vmem:[#allocation20 + $0x38] sm:$0xf]
          %v3546 = vld [vmem:[#allocation20 + $0x3c] sm:$0xf]
          %v3547 = vld [vmem:[#allocation20 + $0x40] sm:$0xf]
          %v3548 = vld [vmem:[#allocation20 + $0x44] sm:$0xf]
          %v3549 = vld [vmem:[#allocation20 + $0x48] sm:$0xf]
          %v3550 = vld [vmem:[#allocation20 + $0x4c] sm:$0xf]
          %v3551 = vld [vmem:[#allocation20 + $0x50] sm:$0xf]
          %v3552 = vld [vmem:[#allocation20 + $0x54] sm:$0xf]
          %v3553 = vld [vmem:[#allocation20 + $0x58] sm:$0xf]
          %v3554 = vld [vmem:[#allocation20 + $0x5c] sm:$0xf]
          %v3555 = vld [vmem:[#allocation20 + $0x60] sm:$0xf]
          %v3556 = vld [vmem:[#allocation20 + $0x64] sm:$0xf]
          %v3557 = vld [vmem:[#allocation20 + $0x68] sm:$0xf]
          %v3558 = vld [vmem:[#allocation20 + $0x6c] sm:$0xf]
          %v3559 = vld [vmem:[#allocation20 + $0x70] sm:$0xf]
          %v3560 = vld [vmem:[#allocation20 + $0x74] sm:$0xf]
          %v3561 = vld [vmem:[#allocation20 + $0x78] sm:$0xf]
          %v3562 = vld [vmem:[#allocation20 + $0x7c] sm:$0xf]
          %v3563 = vld [vmem:[#allocation18 + $0x8] sm:$0xff]
          %v3564 = vld [vmem:[#allocation18 + $0x18] sm:$0xff]
          %v3565 = vld [vmem:[#allocation18 + $0x28] sm:$0xff]
          %v3566 = vld [vmem:[#allocation18 + $0x38] sm:$0xff]
          %v3567 = vld [vmem:[#allocation18 + $0x48] sm:$0xff]
          %v3568 = vld [vmem:[#allocation18 + $0x58] sm:$0xff]
          %v3569 = vld [vmem:[#allocation18 + $0x68] sm:$0xff]
          %v3570 = vld [vmem:[#allocation18 + $0x78] sm:$0xff]
          %v3571 = vld [vmem:[#allocation18 + $0x88] sm:$0xff]
          %v3572 = vld [vmem:[#allocation18 + $0x98] sm:$0xff]
          %v3573 = vld [vmem:[#allocation18 + $0xa8] sm:$0xff]
          %v3574 = vld [vmem:[#allocation18 + $0xb8] sm:$0xff]
          %v3575 = vld [vmem:[#allocation18 + $0xc8] sm:$0xff]
          %v3576 = vld [vmem:[#allocation18 + $0xd8] sm:$0xff]
          %v3577 = vld [vmem:[#allocation18 + $0xe8] sm:$0xff]
          %v3578 = vld [vmem:[#allocation18 + $0xf8] sm:$0xff]
          %v3579 = vld [vmem:[%s13 + $0x2] sm:$0x3]
          %v3581 = vperm.slane %v3579, 0
          %v3582 = vperm.slane %v3579, 1
          %v3601 = vunpack.c.l.b16 %v3563
          %v3602 = vunpack.c.h.b16 %v3563
          %v3603 = vunpack.c.l.b16 %v3564
          %v3604 = vunpack.c.h.b16 %v3564
          %v3605 = vunpack.c.l.b16 %v3565
          %v3606 = vunpack.c.h.b16 %v3565
          %v3607 = vunpack.c.l.b16 %v3566
          %v3608 = vunpack.c.h.b16 %v3566
          %v3609 = vunpack.c.l.b16 %v3567
          %v3610 = vunpack.c.h.b16 %v3567
          %v3611 = vunpack.c.l.b16 %v3568
          %v3612 = vunpack.c.h.b16 %v3568
          %v3613 = vunpack.c.l.b16 %v3569
          %v3614 = vunpack.c.h.b16 %v3569
          %v3615 = vunpack.c.l.b16 %v3570
          %v3616 = vunpack.c.h.b16 %v3570
          %v3617 = vunpack.c.l.b16 %v3571
          %v3618 = vunpack.c.h.b16 %v3571
          %v3619 = vunpack.c.l.b16 %v3572
          %v3620 = vunpack.c.h.b16 %v3572
          %v3621 = vunpack.c.l.b16 %v3573
          %v3622 = vunpack.c.h.b16 %v3573
          %v3623 = vunpack.c.l.b16 %v3574
          %v3624 = vunpack.c.h.b16 %v3574
          %v3625 = vunpack.c.l.b16 %v3575
          %v3626 = vunpack.c.h.b16 %v3575
          %v3627 = vunpack.c.l.b16 %v3576
          %v3628 = vunpack.c.h.b16 %v3576
          %v3629 = vunpack.c.l.b16 %v3577
          %v3630 = vunpack.c.h.b16 %v3577
          %v3631 = vunpack.c.l.b16 %v3578
          %v3632 = vunpack.c.h.b16 %v3578
          %v3633 = vpack.c.b16 %v3603, %v3601
          %v3634 = vpack.c.b16 %v3604, %v3602
          %v3635 = vpack.c.b16 %v3607, %v3605
          %v3636 = vpack.c.b16 %v3608, %v3606
          %v3637 = vpack.c.b16 %v3611, %v3609
          %v3638 = vpack.c.b16 %v3612, %v3610
          %v3639 = vpack.c.b16 %v3615, %v3613
          %v3640 = vpack.c.b16 %v3616, %v3614
          %v3641 = vpack.c.b16 %v3619, %v3617
          %v3642 = vpack.c.b16 %v3620, %v3618
          %v3643 = vpack.c.b16 %v3623, %v3621
          %v3644 = vpack.c.b16 %v3624, %v3622
          %v3645 = vpack.c.b16 %v3627, %v3625
          %v3646 = vpack.c.b16 %v3628, %v3626
          %v3647 = vpack.c.b16 %v3631, %v3629
          %v3648 = vpack.c.b16 %v3632, %v3630
          %3665 = vmatpush.bf16.msra.mxu0 %v3647
          %3666 = vmatpush.bf16.msra.mxu0 %v3645
          %3667 = vmatpush.bf16.msra.mxu0 %v3643
          %3668 = vmatpush.bf16.msra.mxu0 %v3641
          %3669 = vmatpush.bf16.msra.mxu0 %v3639
          %3670 = vmatpush.bf16.msra.mxu0 %v3637
          %3671 = vmatpush.bf16.msra.mxu0 %v3635
          %3672 = vmatpush.bf16.msra.mxu0 %v3633
          %3673 = vmatmul.bf16.gmra.mxu0 %v3275
          %v3674 = vpop.f32.mrf.mxu0
          %v3675 = vadd.f32 %v3581, %v3674
          %v3676 = vpop.f32.mrf.mxu0
          %v3677 = vadd.f32 %v3581, %v3676
          %3678 = vmatmul.bf16.gmra.mxu0 %v3276
          %v3679 = vpop.f32.mrf.mxu0
          %v3680 = vadd.f32 %v3581, %v3679
          %v3681 = vpop.f32.mrf.mxu0
          %v3682 = vadd.f32 %v3581, %v3681
          %3683 = vmatmul.bf16.gmra.mxu0 %v3277
          %v3684 = vpop.f32.mrf.mxu0
          %v3685 = vadd.f32 %v3581, %v3684
          %v3686 = vpop.f32.mrf.mxu0
          %v3687 = vadd.f32 %v3581, %v3686
          %3688 = vmatmul.bf16.gmra.mxu0 %v3278
          %v3689 = vpop.f32.mrf.mxu0
          %v3690 = vadd.f32 %v3581, %v3689
          %v3691 = vpop.f32.mrf.mxu0
          %v3692 = vadd.f32 %v3581, %v3691
          %3693 = vmatmul.bf16.gmra.mxu0 %v3279
          %v3694 = vpop.f32.mrf.mxu0
          %v3695 = vadd.f32 %v3581, %v3694
          %v3696 = vpop.f32.mrf.mxu0
          %v3697 = vadd.f32 %v3581, %v3696
          %3698 = vmatmul.bf16.gmra.mxu0 %v3280
          %v3699 = vpop.f32.mrf.mxu0
          %v3700 = vadd.f32 %v3581, %v3699
          %v3701 = vpop.f32.mrf.mxu0
          %v3702 = vadd.f32 %v3581, %v3701
          %3703 = vmatmul.bf16.gmra.mxu0 %v3281
          %v3704 = vpop.f32.mrf.mxu0
          %v3705 = vadd.f32 %v3581, %v3704
          %v3706 = vpop.f32.mrf.mxu0
          %v3707 = vadd.f32 %v3581, %v3706
          %3708 = vmatmul.bf16.gmra.mxu0 %v3282
          %v3709 = vpop.f32.mrf.mxu0
          %v3710 = vadd.f32 %v3581, %v3709
          %v3711 = vpop.f32.mrf.mxu0
          %v3712 = vadd.f32 %v3581, %v3711
          %3713 = vdwg.mxu0
          %3714 = vmatpush.bf16.msra.mxu0 %v3648
          %3715 = vmatpush.bf16.msra.mxu0 %v3646
          %3716 = vmatpush.bf16.msra.mxu0 %v3644
          %3717 = vmatpush.bf16.msra.mxu0 %v3642
          %3718 = vmatpush.bf16.msra.mxu0 %v3640
          %3719 = vmatpush.bf16.msra.mxu0 %v3638
          %3720 = vmatpush.bf16.msra.mxu0 %v3636
          %3721 = vmatpush.bf16.msra.mxu0 %v3634
          %3722 = vmatmul.bf16.gmra.mxu0 %v3275
          %v3723 = vpop.f32.mrf.mxu0
          %v3724 = vadd.f32 %v3582, %v3723
          %v3725 = vpop.f32.mrf.mxu0
          %v3726 = vadd.f32 %v3582, %v3725
          %3727 = vmatmul.bf16.gmra.mxu0 %v3276
          %v3728 = vpop.f32.mrf.mxu0
          %v3729 = vadd.f32 %v3582, %v3728
          %v3730 = vpop.f32.mrf.mxu0
          %v3731 = vadd.f32 %v3582, %v3730
          %3732 = vmatmul.bf16.gmra.mxu0 %v3277
          %v3733 = vpop.f32.mrf.mxu0
          %v3734 = vadd.f32 %v3582, %v3733
          %v3735 = vpop.f32.mrf.mxu0
          %v3736 = vadd.f32 %v3582, %v3735
          %3737 = vmatmul.bf16.gmra.mxu0 %v3278
          %v3738 = vpop.f32.mrf.mxu0
          %v3739 = vadd.f32 %v3582, %v3738
          %v3740 = vpop.f32.mrf.mxu0
          %v3741 = vadd.f32 %v3582, %v3740
          %3742 = vmatmul.bf16.gmra.mxu0 %v3279
          %v3743 = vpop.f32.mrf.mxu0
          %v3744 = vadd.f32 %v3582, %v3743
          %v3745 = vpop.f32.mrf.mxu0
          %v3746 = vadd.f32 %v3582, %v3745
          %3747 = vmatmul.bf16.gmra.mxu0 %v3280
          %v3748 = vpop.f32.mrf.mxu0
          %v3749 = vadd.f32 %v3582, %v3748
          %v3750 = vpop.f32.mrf.mxu0
          %v3751 = vadd.f32 %v3582, %v3750
          %3752 = vmatmul.bf16.gmra.mxu0 %v3281
          %v3753 = vpop.f32.mrf.mxu0
          %v3754 = vadd.f32 %v3582, %v3753
          %v3755 = vpop.f32.mrf.mxu0
          %v3756 = vadd.f32 %v3582, %v3755
          %3757 = vmatmul.bf16.gmra.mxu0 %v3282
          %v3758 = vpop.f32.mrf.mxu0
          %v3759 = vadd.f32 %v3582, %v3758
          %v3760 = vpop.f32.mrf.mxu0
          %v3761 = vadd.f32 %v3582, %v3760
          %3762 = vdwg.mxu0
          %v3763 = vmax.f32 %v3675, 0.0
          %v3764 = vmax.f32 %v3724, 0.0
          %v3765 = vmax.f32 %v3677, 0.0
          %v3766 = vmax.f32 %v3726, 0.0
          %v3767 = vmax.f32 %v3680, 0.0
          %v3768 = vmax.f32 %v3729, 0.0
          %v3769 = vmax.f32 %v3682, 0.0
          %v3770 = vmax.f32 %v3731, 0.0
          %v3771 = vmax.f32 %v3685, 0.0
          %v3772 = vmax.f32 %v3734, 0.0
          %v3773 = vmax.f32 %v3687, 0.0
          %v3774 = vmax.f32 %v3736, 0.0
          %v3775 = vmax.f32 %v3690, 0.0
          %v3776 = vmax.f32 %v3739, 0.0
          %v3777 = vmax.f32 %v3692, 0.0
          %v3778 = vmax.f32 %v3741, 0.0
          %v3779 = vmax.f32 %v3695, 0.0
          %v3780 = vmax.f32 %v3744, 0.0
          %v3781 = vmax.f32 %v3697, 0.0
          %v3782 = vmax.f32 %v3746, 0.0
          %v3783 = vmax.f32 %v3700, 0.0
          %v3784 = vmax.f32 %v3749, 0.0
          %v3785 = vmax.f32 %v3702, 0.0
          %v3786 = vmax.f32 %v3751, 0.0
          %v3787 = vmax.f32 %v3705, 0.0
          %v3788 = vmax.f32 %v3754, 0.0
          %v3789 = vmax.f32 %v3707, 0.0
          %v3790 = vmax.f32 %v3756, 0.0
          %v3791 = vmax.f32 %v3710, 0.0
          %v3792 = vmax.f32 %v3759, 0.0
          %v3793 = vmax.f32 %v3712, 0.0
          %v3794 = vmax.f32 %v3761, 0.0
          %v3795 = vpack.c.bf16 %v3765, %v3763
          %v3796 = vpack.c.bf16 %v3766, %v3764
          %v3797 = vpack.c.bf16 %v3769, %v3767
          %v3798 = vpack.c.bf16 %v3770, %v3768
          %v3799 = vpack.c.bf16 %v3773, %v3771
          %v3800 = vpack.c.bf16 %v3774, %v3772
          %v3801 = vpack.c.bf16 %v3777, %v3775
          %v3802 = vpack.c.bf16 %v3778, %v3776
          %v3803 = vpack.c.bf16 %v3781, %v3779
          %v3804 = vpack.c.bf16 %v3782, %v3780
          %v3805 = vpack.c.bf16 %v3785, %v3783
          %v3806 = vpack.c.bf16 %v3786, %v3784
          %v3807 = vpack.c.bf16 %v3789, %v3787
          %v3808 = vpack.c.bf16 %v3790, %v3788
          %v3809 = vpack.c.bf16 %v3793, %v3791
          %v3810 = vpack.c.bf16 %v3794, %v3792
          %v3811 = vld [vmem:[#allocation20 + $0x80] sm:$0xf]
          %v3812 = vld [vmem:[#allocation20 + $0x84] sm:$0xf]
          %v3813 = vld [vmem:[#allocation20 + $0x88] sm:$0xf]
          %v3814 = vld [vmem:[#allocation20 + $0x8c] sm:$0xf]
          %v3815 = vld [vmem:[#allocation20 + $0x90] sm:$0xf]
          %v3816 = vld [vmem:[#allocation20 + $0x94] sm:$0xf]
          %v3817 = vld [vmem:[#allocation20 + $0x98] sm:$0xf]
          %v3818 = vld [vmem:[#allocation20 + $0x9c] sm:$0xf]
          %v3819 = vld [vmem:[#allocation20 + $0xa0] sm:$0xf]
          %v3820 = vld [vmem:[#allocation20 + $0xa4] sm:$0xf]
          %v3821 = vld [vmem:[#allocation20 + $0xa8] sm:$0xf]
          %v3822 = vld [vmem:[#allocation20 + $0xac] sm:$0xf]
          %v3823 = vld [vmem:[#allocation20 + $0xb0] sm:$0xf]
          %v3824 = vld [vmem:[#allocation20 + $0xb4] sm:$0xf]
          %v3825 = vld [vmem:[#allocation20 + $0xb8] sm:$0xf]
          %v3826 = vld [vmem:[#allocation20 + $0xbc] sm:$0xf]
          %v3827 = vld [vmem:[#allocation20 + $0xc0] sm:$0xf]
          %v3828 = vld [vmem:[#allocation20 + $0xc4] sm:$0xf]
          %v3829 = vld [vmem:[#allocation20 + $0xc8] sm:$0xf]
          %v3830 = vld [vmem:[#allocation20 + $0xcc] sm:$0xf]
          %v3831 = vld [vmem:[#allocation20 + $0xd0] sm:$0xf]
          %v3832 = vld [vmem:[#allocation20 + $0xd4] sm:$0xf]
          %v3833 = vld [vmem:[#allocation20 + $0xd8] sm:$0xf]
          %v3834 = vld [vmem:[#allocation20 + $0xdc] sm:$0xf]
          %v3835 = vld [vmem:[#allocation20 + $0xe0] sm:$0xf]
          %v3836 = vld [vmem:[#allocation20 + $0xe4] sm:$0xf]
          %v3837 = vld [vmem:[#allocation20 + $0xe8] sm:$0xf]
          %v3838 = vld [vmem:[#allocation20 + $0xec] sm:$0xf]
          %v3839 = vld [vmem:[#allocation20 + $0xf0] sm:$0xf]
          %v3840 = vld [vmem:[#allocation20 + $0xf4] sm:$0xf]
          %v3841 = vld [vmem:[#allocation20 + $0xf8] sm:$0xf]
          %v3842 = vld [vmem:[#allocation20 + $0xfc] sm:$0xf]
          %v3875 = vunpack.c.l.b16 %v3811
          %v3876 = vunpack.c.l.b16 %v3812
          %v3877 = vunpack.c.l.b16 %v3813
          %v3878 = vunpack.c.l.b16 %v3814
          %v3879 = vunpack.c.l.b16 %v3815
          %v3880 = vunpack.c.l.b16 %v3816
          %v3881 = vunpack.c.l.b16 %v3817
          %v3882 = vunpack.c.l.b16 %v3818
          %v3883 = vunpack.c.l.b16 %v3819
          %v3884 = vunpack.c.l.b16 %v3820
          %v3885 = vunpack.c.l.b16 %v3821
          %v3886 = vunpack.c.l.b16 %v3822
          %v3887 = vunpack.c.l.b16 %v3823
          %v3888 = vunpack.c.l.b16 %v3824
          %v3889 = vunpack.c.l.b16 %v3825
          %v3890 = vunpack.c.l.b16 %v3826
          %v3891 = vunpack.c.l.b16 %v3827
          %v3892 = vunpack.c.l.b16 %v3828
          %v3893 = vunpack.c.l.b16 %v3829
          %v3894 = vunpack.c.l.b16 %v3830
          %v3895 = vunpack.c.l.b16 %v3831
          %v3896 = vunpack.c.l.b16 %v3832
          %v3897 = vunpack.c.l.b16 %v3833
          %v3898 = vunpack.c.l.b16 %v3834
          %v3899 = vunpack.c.l.b16 %v3835
          %v3900 = vunpack.c.l.b16 %v3836
          %v3901 = vunpack.c.l.b16 %v3837
          %v3902 = vunpack.c.l.b16 %v3838
          %v3903 = vunpack.c.l.b16 %v3839
          %v3904 = vunpack.c.l.b16 %v3840
          %v3905 = vunpack.c.l.b16 %v3841
          %v3906 = vunpack.c.l.b16 %v3842
          %v3907 = vpack.c.b16 %v3876, %v3875
          %v3908 = vpack.c.b16 %v3878, %v3877
          %v3909 = vpack.c.b16 %v3880, %v3879
          %v3910 = vpack.c.b16 %v3882, %v3881
          %v3911 = vpack.c.b16 %v3884, %v3883
          %v3912 = vpack.c.b16 %v3886, %v3885
          %v3913 = vpack.c.b16 %v3888, %v3887
          %v3914 = vpack.c.b16 %v3890, %v3889
          %v3915 = vpack.c.b16 %v3892, %v3891
          %v3916 = vpack.c.b16 %v3894, %v3893
          %v3917 = vpack.c.b16 %v3896, %v3895
          %v3918 = vpack.c.b16 %v3898, %v3897
          %v3919 = vpack.c.b16 %v3900, %v3899
          %v3920 = vpack.c.b16 %v3902, %v3901
          %v3921 = vpack.c.b16 %v3904, %v3903
          %v3922 = vpack.c.b16 %v3906, %v3905
          %3939 = vmatpush.bf16.msra.mxu0 %v3914
          %3940 = vmatpush.bf16.msra.mxu0 %v3913
          %3941 = vmatpush.bf16.msra.mxu0 %v3912
          %3942 = vmatpush.bf16.msra.mxu0 %v3911
          %3943 = vmatpush.bf16.msra.mxu0 %v3910
          %3944 = vmatpush.bf16.msra.mxu0 %v3909
          %3945 = vmatpush.bf16.msra.mxu0 %v3908
          %3946 = vmatpush.bf16.msra.mxu0 %v3907
          %3947 = vmatmul.bf16.gmra.mxu0 %v3795
          %v3948 = vpop.f32.mrf.mxu0
          %v3949 = vadd.f32 0.0, %v3948
          %v3950 = vpop.f32.mrf.mxu0
          %v3951 = vadd.f32 0.0, %v3950
          %3952 = vmatmul.bf16.gmra.mxu0 %v3797
          %v3953 = vpop.f32.mrf.mxu0
          %v3954 = vadd.f32 0.0, %v3953
          %v3955 = vpop.f32.mrf.mxu0
          %v3956 = vadd.f32 0.0, %v3955
          %3957 = vmatmul.bf16.gmra.mxu0 %v3799
          %v3958 = vpop.f32.mrf.mxu0
          %v3959 = vadd.f32 0.0, %v3958
          %v3960 = vpop.f32.mrf.mxu0
          %v3961 = vadd.f32 0.0, %v3960
          %3962 = vmatmul.bf16.gmra.mxu0 %v3801
          %v3963 = vpop.f32.mrf.mxu0
          %v3964 = vadd.f32 0.0, %v3963
          %v3965 = vpop.f32.mrf.mxu0
          %v3966 = vadd.f32 0.0, %v3965
          %3967 = vmatmul.bf16.gmra.mxu0 %v3803
          %v3968 = vpop.f32.mrf.mxu0
          %v3969 = vadd.f32 0.0, %v3968
          %v3970 = vpop.f32.mrf.mxu0
          %v3971 = vadd.f32 0.0, %v3970
          %3972 = vmatmul.bf16.gmra.mxu0 %v3805
          %v3973 = vpop.f32.mrf.mxu0
          %v3974 = vadd.f32 0.0, %v3973
          %v3975 = vpop.f32.mrf.mxu0
          %v3976 = vadd.f32 0.0, %v3975
          %3977 = vmatmul.bf16.gmra.mxu0 %v3807
          %v3978 = vpop.f32.mrf.mxu0
          %v3979 = vadd.f32 0.0, %v3978
          %v3980 = vpop.f32.mrf.mxu0
          %v3981 = vadd.f32 0.0, %v3980
          %3982 = vmatmul.bf16.gmra.mxu0 %v3809
          %v3983 = vpop.f32.mrf.mxu0
          %v3984 = vadd.f32 0.0, %v3983
          %v3985 = vpop.f32.mrf.mxu0
          %v3986 = vadd.f32 0.0, %v3985
          %3987 = vdwg.mxu0
          %3988 = vmatpush.bf16.msra.mxu0 %v3922
          %3989 = vmatpush.bf16.msra.mxu0 %v3921
          %3990 = vmatpush.bf16.msra.mxu0 %v3920
          %3991 = vmatpush.bf16.msra.mxu0 %v3919
          %3992 = vmatpush.bf16.msra.mxu0 %v3918
          %3993 = vmatpush.bf16.msra.mxu0 %v3917
          %3994 = vmatpush.bf16.msra.mxu0 %v3916
          %3995 = vmatpush.bf16.msra.mxu0 %v3915
          %3996 = vmatmul.bf16.gmra.mxu0 %v3796
          %v3997 = vpop.f32.mrf.mxu0
          %v3998 = vadd.f32 %v3949, %v3997
          %v3999 = vpop.f32.mrf.mxu0
          %v4000 = vadd.f32 %v3951, %v3999
          %4001 = vmatmul.bf16.gmra.mxu0 %v3798
          %v4002 = vpop.f32.mrf.mxu0
          %v4003 = vadd.f32 %v3954, %v4002
          %v4004 = vpop.f32.mrf.mxu0
          %v4005 = vadd.f32 %v3956, %v4004
          %4006 = vmatmul.bf16.gmra.mxu0 %v3800
          %v4007 = vpop.f32.mrf.mxu0
          %v4008 = vadd.f32 %v3959, %v4007
          %v4009 = vpop.f32.mrf.mxu0
          %v4010 = vadd.f32 %v3961, %v4009
          %4011 = vmatmul.bf16.gmra.mxu0 %v3802
          %v4012 = vpop.f32.mrf.mxu0
          %v4013 = vadd.f32 %v3964, %v4012
          %v4014 = vpop.f32.mrf.mxu0
          %v4015 = vadd.f32 %v3966, %v4014
          %4016 = vmatmul.bf16.gmra.mxu0 %v3804
          %v4017 = vpop.f32.mrf.mxu0
          %v4018 = vadd.f32 %v3969, %v4017
          %v4019 = vpop.f32.mrf.mxu0
          %v4020 = vadd.f32 %v3971, %v4019
          %4021 = vmatmul.bf16.gmra.mxu0 %v3806
          %v4022 = vpop.f32.mrf.mxu0
          %v4023 = vadd.f32 %v3974, %v4022
          %v4024 = vpop.f32.mrf.mxu0
          %v4025 = vadd.f32 %v3976, %v4024
          %4026 = vmatmul.bf16.gmra.mxu0 %v3808
          %v4027 = vpop.f32.mrf.mxu0
          %v4028 = vadd.f32 %v3979, %v4027
          %v4029 = vpop.f32.mrf.mxu0
          %v4030 = vadd.f32 %v3981, %v4029
          %4031 = vmatmul.bf16.gmra.mxu0 %v3810
          %v4032 = vpop.f32.mrf.mxu0
          %v4033 = vadd.f32 %v3984, %v4032
          %v4034 = vpop.f32.mrf.mxu0
          %v4035 = vadd.f32 %v3986, %v4034
          %4036 = vdwg.mxu0
          %v4069 = vunpack.c.l.b16 %v3531
          %v4070 = vunpack.c.l.b16 %v3532
          %v4071 = vunpack.c.l.b16 %v3533
          %v4072 = vunpack.c.l.b16 %v3534
          %v4073 = vunpack.c.l.b16 %v3535
          %v4074 = vunpack.c.l.b16 %v3536
          %v4075 = vunpack.c.l.b16 %v3537
          %v4076 = vunpack.c.l.b16 %v3538
          %v4077 = vunpack.c.l.b16 %v3539
          %v4078 = vunpack.c.l.b16 %v3540
          %v4079 = vunpack.c.l.b16 %v3541
          %v4080 = vunpack.c.l.b16 %v3542
          %v4081 = vunpack.c.l.b16 %v3543
          %v4082 = vunpack.c.l.b16 %v3544
          %v4083 = vunpack.c.l.b16 %v3545
          %v4084 = vunpack.c.l.b16 %v3546
          %v4085 = vunpack.c.l.b16 %v3547
          %v4086 = vunpack.c.l.b16 %v3548
          %v4087 = vunpack.c.l.b16 %v3549
          %v4088 = vunpack.c.l.b16 %v3550
          %v4089 = vunpack.c.l.b16 %v3551
          %v4090 = vunpack.c.l.b16 %v3552
          %v4091 = vunpack.c.l.b16 %v3553
          %v4092 = vunpack.c.l.b16 %v3554
          %v4093 = vunpack.c.l.b16 %v3555
          %v4094 = vunpack.c.l.b16 %v3556
          %v4095 = vunpack.c.l.b16 %v3557
          %v4096 = vunpack.c.l.b16 %v3558
          %v4097 = vunpack.c.l.b16 %v3559
          %v4098 = vunpack.c.l.b16 %v3560
          %v4099 = vunpack.c.l.b16 %v3561
          %v4100 = vunpack.c.l.b16 %v3562
          %v4101 = vpack.c.b16 %v4070, %v4069
          %v4102 = vpack.c.b16 %v4072, %v4071
          %v4103 = vpack.c.b16 %v4074, %v4073
          %v4104 = vpack.c.b16 %v4076, %v4075
          %v4105 = vpack.c.b16 %v4078, %v4077
          %v4106 = vpack.c.b16 %v4080, %v4079
          %v4107 = vpack.c.b16 %v4082, %v4081
          %v4108 = vpack.c.b16 %v4084, %v4083
          %v4109 = vpack.c.b16 %v4086, %v4085
          %v4110 = vpack.c.b16 %v4088, %v4087
          %v4111 = vpack.c.b16 %v4090, %v4089
          %v4112 = vpack.c.b16 %v4092, %v4091
          %v4113 = vpack.c.b16 %v4094, %v4093
          %v4114 = vpack.c.b16 %v4096, %v4095
          %v4115 = vpack.c.b16 %v4098, %v4097
          %v4116 = vpack.c.b16 %v4100, %v4099
          %4133 = vmatpush.bf16.msra.mxu0 %v4108
          %4134 = vmatpush.bf16.msra.mxu0 %v4107
          %4135 = vmatpush.bf16.msra.mxu0 %v4106
          %4136 = vmatpush.bf16.msra.mxu0 %v4105
          %4137 = vmatpush.bf16.msra.mxu0 %v4104
          %4138 = vmatpush.bf16.msra.mxu0 %v4103
          %4139 = vmatpush.bf16.msra.mxu0 %v4102
          %4140 = vmatpush.bf16.msra.mxu0 %v4101
          %4141 = vmatmul.bf16.gmra.mxu0 %v3515
          %v4142 = vpop.f32.mrf.mxu0
          %v4143 = vadd.f32 %v3998, %v4142
          %v4144 = vpop.f32.mrf.mxu0
          %v4145 = vadd.f32 %v4000, %v4144
          %4146 = vmatmul.bf16.gmra.mxu0 %v3517
          %v4147 = vpop.f32.mrf.mxu0
          %v4148 = vadd.f32 %v4003, %v4147
          %v4149 = vpop.f32.mrf.mxu0
          %v4150 = vadd.f32 %v4005, %v4149
          %4151 = vmatmul.bf16.gmra.mxu0 %v3519
          %v4152 = vpop.f32.mrf.mxu0
          %v4153 = vadd.f32 %v4008, %v4152
          %v4154 = vpop.f32.mrf.mxu0
          %v4155 = vadd.f32 %v4010, %v4154
          %4156 = vmatmul.bf16.gmra.mxu0 %v3521
          %v4157 = vpop.f32.mrf.mxu0
          %v4158 = vadd.f32 %v4013, %v4157
          %v4159 = vpop.f32.mrf.mxu0
          %v4160 = vadd.f32 %v4015, %v4159
          %4161 = vmatmul.bf16.gmra.mxu0 %v3523
          %v4162 = vpop.f32.mrf.mxu0
          %v4163 = vadd.f32 %v4018, %v4162
          %v4164 = vpop.f32.mrf.mxu0
          %v4165 = vadd.f32 %v4020, %v4164
          %4166 = vmatmul.bf16.gmra.mxu0 %v3525
          %v4167 = vpop.f32.mrf.mxu0
          %v4168 = vadd.f32 %v4023, %v4167
          %v4169 = vpop.f32.mrf.mxu0
          %v4170 = vadd.f32 %v4025, %v4169
          %4171 = vmatmul.bf16.gmra.mxu0 %v3527
          %v4172 = vpop.f32.mrf.mxu0
          %v4173 = vadd.f32 %v4028, %v4172
          %v4174 = vpop.f32.mrf.mxu0
          %v4175 = vadd.f32 %v4030, %v4174
          %4176 = vmatmul.bf16.gmra.mxu0 %v3529
          %v4177 = vpop.f32.mrf.mxu0
          %v4178 = vadd.f32 %v4033, %v4177
          %v4179 = vpop.f32.mrf.mxu0
          %v4180 = vadd.f32 %v4035, %v4179
          %4181 = vdwg.mxu0
          %4182 = vmatpush.bf16.msra.mxu0 %v4116
          %4183 = vmatpush.bf16.msra.mxu0 %v4115
          %4184 = vmatpush.bf16.msra.mxu0 %v4114
          %4185 = vmatpush.bf16.msra.mxu0 %v4113
          %4186 = vmatpush.bf16.msra.mxu0 %v4112
          %4187 = vmatpush.bf16.msra.mxu0 %v4111
          %4188 = vmatpush.bf16.msra.mxu0 %v4110
          %4189 = vmatpush.bf16.msra.mxu0 %v4109
          %4190 = vmatmul.bf16.gmra.mxu0 %v3516
          %v4191 = vpop.f32.mrf.mxu0
          %v4192 = vadd.f32 %v4143, %v4191
          %v4193 = vpop.f32.mrf.mxu0
          %v4194 = vadd.f32 %v4145, %v4193
          %4195 = vmatmul.bf16.gmra.mxu0 %v3518
          %v4196 = vpop.f32.mrf.mxu0
          %v4197 = vadd.f32 %v4148, %v4196
          %v4198 = vpop.f32.mrf.mxu0
          %v4199 = vadd.f32 %v4150, %v4198
          %4200 = vmatmul.bf16.gmra.mxu0 %v3520
          %v4201 = vpop.f32.mrf.mxu0
          %v4202 = vadd.f32 %v4153, %v4201
          %v4203 = vpop.f32.mrf.mxu0
          %v4204 = vadd.f32 %v4155, %v4203
          %4205 = vmatmul.bf16.gmra.mxu0 %v3522
          %v4206 = vpop.f32.mrf.mxu0
          %v4207 = vadd.f32 %v4158, %v4206
          %v4208 = vpop.f32.mrf.mxu0
          %v4209 = vadd.f32 %v4160, %v4208
          %4210 = vmatmul.bf16.gmra.mxu0 %v3524
          %v4211 = vpop.f32.mrf.mxu0
          %v4212 = vadd.f32 %v4163, %v4211
          %v4213 = vpop.f32.mrf.mxu0
          %v4214 = vadd.f32 %v4165, %v4213
          %4215 = vmatmul.bf16.gmra.mxu0 %v3526
          %v4216 = vpop.f32.mrf.mxu0
          %v4217 = vadd.f32 %v4168, %v4216
          %v4218 = vpop.f32.mrf.mxu0
          %v4219 = vadd.f32 %v4170, %v4218
          %4220 = vmatmul.bf16.gmra.mxu0 %v3528
          %v4221 = vpop.f32.mrf.mxu0
          %v4222 = vadd.f32 %v4173, %v4221
          %v4223 = vpop.f32.mrf.mxu0
          %v4224 = vadd.f32 %v4175, %v4223
          %4225 = vmatmul.bf16.gmra.mxu0 %v3530
          %v4226 = vpop.f32.mrf.mxu0
          %v4227 = vadd.f32 %v4178, %v4226
          %v4228 = vpop.f32.mrf.mxu0
          %v4229 = vadd.f32 %v4180, %v4228
          %4230 = vdwg.mxu0
          %v4231 = vld [vmem:[%s15] sm:$0x1]
          %v4233 = vperm.slane %v4231, 0
          %v4235 = vadd.f32 %v4192, %v4233
          %v4236 = vadd.f32 %v4194, %v4233
          %v4237 = vadd.f32 %v4197, %v4233
          %v4238 = vadd.f32 %v4199, %v4233
          %v4239 = vadd.f32 %v4202, %v4233
          %v4240 = vadd.f32 %v4204, %v4233
          %v4241 = vadd.f32 %v4207, %v4233
          %v4242 = vadd.f32 %v4209, %v4233
          %v4243 = vadd.f32 %v4212, %v4233
          %v4244 = vadd.f32 %v4214, %v4233
          %v4245 = vadd.f32 %v4217, %v4233
          %v4246 = vadd.f32 %v4219, %v4233
          %v4247 = vadd.f32 %v4222, %v4233
          %v4248 = vadd.f32 %v4224, %v4233
          %v4249 = vadd.f32 %v4227, %v4233
          %v4250 = vadd.f32 %v4229, %v4233
          %v4251 = vadd.f32 %v2899, %v4235
          %v4252 = vadd.f32 %v2900, %v4236
          %v4253 = vadd.f32 %v2901, %v4237
          %v4254 = vadd.f32 %v2902, %v4238
          %v4255 = vadd.f32 %v2903, %v4239
          %v4256 = vadd.f32 %v2904, %v4240
          %v4257 = vadd.f32 %v2905, %v4241
          %v4258 = vadd.f32 %v2906, %v4242
          %v4259 = vadd.f32 %v2907, %v4243
          %v4260 = vadd.f32 %v2908, %v4244
          %v4261 = vadd.f32 %v2909, %v4245
          %v4262 = vadd.f32 %v2910, %v4246
          %v4263 = vadd.f32 %v2911, %v4247
          %v4264 = vadd.f32 %v2912, %v4248
          %v4265 = vadd.f32 %v2913, %v4249
          %v4266 = vadd.f32 %v2914, %v4250
          %4267 = vst [vmem:[%s723] sm:$0xff] %v4251
          %4268 = vst [vmem:[%s723 + $0x8] sm:$0xff] %v4252
          %4269 = vst [vmem:[%s723 + $0x10] sm:$0xff] %v4253
          %4270 = vst [vmem:[%s723 + $0x18] sm:$0xff] %v4254
          %4271 = vst [vmem:[%s723 + $0x20] sm:$0xff] %v4255
          %4272 = vst [vmem:[%s723 + $0x28] sm:$0xff] %v4256
          %4273 = vst [vmem:[%s723 + $0x30] sm:$0xff] %v4257
          %4274 = vst [vmem:[%s723 + $0x38] sm:$0xff] %v4258
          %4275 = vst [vmem:[%s723 + $0x40] sm:$0xff] %v4259
          %4276 = vst [vmem:[%s723 + $0x48] sm:$0xff] %v4260
          %4277 = vst [vmem:[%s723 + $0x50] sm:$0xff] %v4261
          %4278 = vst [vmem:[%s723 + $0x58] sm:$0xff] %v4262
          %4279 = vst [vmem:[%s723 + $0x60] sm:$0xff] %v4263
          %4280 = vst [vmem:[%s723 + $0x68] sm:$0xff] %v4264
          %4281 = vst [vmem:[%s723 + $0x70] sm:$0xff] %v4265
          %4282 = vst [vmem:[%s723 + $0x78] sm:$0xff] %v4266
        $region128: #{tpu_custom_call.1} parent=83 // pred_fallthru
          _
        %s4283 = sand.u32 %s418, 1
        %s4284 = scalar_lea.sflag [#allocation8], %s4283
        %s4285 = sand.u32 %s418, 1
        %s4286 = smul.addr %s4285, 128
        %s4287 = scalar_lea.vmem [#allocation21], %s4286
        // Predicated region
        $region129: #{tpu_custom_call.1} parent=83 // pred_check
          %p4288 = pneg %p428
        $region130: #{tpu_custom_call.1} parent=83 // pred_check_branch
          %4290 = sbr.rel (%p4288) target = $region132
        $region131: #{tpu_custom_call.1} parent=83 // pred_region
          %s4291 = smul.u32 16, %s45
          %4293 = vsyncadd %s4284, 0
          %s4294 = smul.addr %s44, 32
          %s4295 = sadd.s32 %s4291, %s4294
          %s4296 = smul.addr %s4295, 8
          %s4297 = scalar_lea.hbm %s16, %s4296
          %s4298 = sshll.u32 %s4287, 4
          %s4299 = int_to_ptr.vmem [resolvable:$true] %s4298
          %s4300 = sshll.u32 %s4297, 4
          %s4301 = int_to_ptr.hbm [resolvable:$true] %s4300
          %4306 = dma.vmem_to_hbm [thread:$0]  %s4299, 2048, %s4301, %s4284, 128, 128, 8
        $region132: #{tpu_custom_call.1} parent=83 // pred_fallthru
          _
      $region84: #{tpu_custom_call.1} parent=5 // pred_fallthru
        _
      %p4307 = scmp.le.s32.totalorder 2, %s34
      // Predicated region
      $region133: #{tpu_custom_call.1} parent=5 // pred_check
        %p4308 = pneg %p4307
      $region134: #{tpu_custom_call.1} parent=5 // pred_check_branch
        %4310 = sbr.rel (%p4308) target = $region136
      $region135: #{tpu_custom_call.1} parent=5 // pred_region
        %s4311 = ssub.s32 %s34, 2
        // Predicated region
        $region137: #{tpu_custom_call.1} parent=135 // pred_check
          %p4312 = pneg %p434
        $region138: #{tpu_custom_call.1} parent=135 // pred_check_branch
          %4314 = sbr.rel (%p4312) target = $region140
        $region139: #{tpu_custom_call.1} parent=135 // pred_region
          %s4315 = sand.u32 %s419, 1
          %s4316 = scalar_lea.sflag [#allocation8], %s4315
          %s4317 = sand.u32 %s419, 1
          %s4318 = smul.addr %s4317, 128
          %s4319 = scalar_lea.vmem [#allocation21], %s4318
          %4321 = dma.done %s4316, 2048
        $region140: #{tpu_custom_call.1} parent=135 // pred_fallthru
          _
      $region136: #{tpu_custom_call.1} parent=5 // pred_fallthru
        _
    $region6: #{tpu_custom_call.1} parent=1 // loop_footer
      %s38 = sadd.s32 1, %s34
    $region7: #{tpu_custom_call.1} parent=1 // loop_footer_branch
      %33 = sbr.rel target = $region3
    $region8: #{tpu_custom_call.1} parent=1 // loop_exit
      _
    %4322 = vsyncpa [#allocation7], 1
    %s4323 = scalar_lea.sflag [#allocation7], 1
    %4324 = vsyncpa %s4323, 1
    %4325 = vsyncpa [#allocation10], 1
    %s4326 = scalar_lea.sflag [#allocation10], 1
    %4327 = vsyncpa %s4326, 1
    %4328 = vsyncpa [#allocation13], 1
    %4329 = vsyncpa [#allocation16], 1
    %4330 = vsyncpa [#allocation19], 1
    %4331 = vsyncpa [#allocation8], 1
    %s4332 = scalar_lea.sflag [#allocation8], 1
    %4333 = vsyncpa %s4332, 1

</llo_original>
